<compile_context>
chip_gen: v7x
topology: tpu7x:2x2x1
jax: 0.10.0
libtpu: 0.0.40
codegen_flags: <defaults>
</compile_context>

<pallas_src>
import functools

import jax
import jax.numpy as jnp
from jax import lax
from jax.experimental import pallas as pl
from jax.experimental.pallas import tpu as pltpu


def basic_block_kernel(x_ref, w1_ref, w2_ref, s1_ref, b1_ref, s2_ref, b2_ref,
                       out_ref, plane_scr, *, w_valid):
    """One grid step = one batch element.

    x_ref    : (1, H, Wp, Cp)   input block (also the residual identity), f32
    w1_ref   : (3, 3*Cp, Cp)    conv1 weights; row layout [kw*Cp + cin, cout]
    w2_ref   : (3, 3*Cp, Cp)    conv2 weights
    s*/b*    : (1, Cp)          folded BN scale / shift (zero on padded channels)
    out_ref  : (1, H, Wp, Cp)
    plane_scr: (H+2, Wp, 3*Cp)  kw-shifted image planes with a 1-row top/bottom
                                halo, reused by both convs.  Lane slots:
                                [0:Cp]=shift-right (kw=0), [Cp:2Cp]=center (kw=1),
                                [2Cp:3Cp]=shift-left (kw=2).
    """
    Hp2, Wp, C3 = plane_scr.shape
    H = Hp2 - 2
    Cp = C3 // 3
    cdtype = plane_scr.dtype

    # Hoisted per-channel BN parameters (loaded once, not per tap).
    s1 = s1_ref[...]
    b1 = b1_ref[...]
    s2 = s2_ref[...]
    b2 = b2_ref[...]

    # Zero only the two halo rows (full-width, unmasked stores).  Unconditional:
    # the batch axis is "parallel", so on a 2-TensorCore chip the second core
    # never sees program_id 0 and its private scratch would stay uninitialized.
    zrow = jnp.zeros((1, Wp, C3), cdtype)
    plane_scr[0:1, :, :] = zrow
    plane_scr[Hp2 - 1:Hp2, :, :] = zrow

    zcol = jnp.zeros((H, 1, Cp), cdtype)

    def store_planes(img):
        # img: (H, Wp, Cp).  Build the three kw-shifted planes once per conv;
        # the +/-1 width shifts are value-level concats (2 relayouts total),
        # then every kh tap below is a free slice along the leading H axis.
        left = jnp.concatenate([zcol, img[:, :Wp - 1, :]], axis=1)   # col w <- img col w-1
        right = jnp.concatenate([img[:, 1:, :], zcol], axis=1)       # col w <- img col w+1
        plane_scr[1:1 + H, :, 0:Cp] = left
        plane_scr[1:1 + H, :, Cp:2 * Cp] = img
        plane_scr[1:1 + H, :, 2 * Cp:3 * Cp] = right

    def conv3x3(w_ref):
        # 3 long-K MXU matmuls (M = H*Wp, K = 3*Cp, N = Cp); kw and cin are
        # contracted together, only 2 accumulator adds (over kh) remain.
        a0 = plane_scr[0:H, :, :].reshape(H * Wp, 3 * Cp)            # free view
        acc = jnp.dot(a0, w_ref[0], preferred_element_type=jnp.float32)
        for kh in (1, 2):
            a = plane_scr[kh:kh + H, :, :].reshape(H * Wp, 3 * Cp)   # free view
            acc = acc + jnp.dot(a, w_ref[kh],
                                preferred_element_type=jnp.float32)
        return acc

    x = x_ref[...].reshape(H, Wp, Cp)                                # f32 identity

    # ---- conv1 (3x3, stride 1, pad 1) + bn1 + relu ----
    store_planes(x.astype(cdtype))
    y1 = jnp.maximum(conv3x3(w1_ref) * s1 + b1, 0.0)                 # (H*Wp, Cp) f32
    y1 = y1.reshape(H, Wp, Cp)
    if Wp > w_valid:
        # Zero the padded-width columns so they behave like the conv's own
        # zero padding for conv2 (static no-op when W % 8 == 0).
        col = lax.broadcasted_iota(jnp.int32, (1, Wp, 1), 1)
        y1 = jnp.where(col < w_valid, y1, 0.0)

    # ---- conv2 (3x3, stride 1, pad 1) + bn2 + residual + relu ----
    store_planes(y1.astype(cdtype))
    y2 = conv3x3(w2_ref) * s2 + b2
    y2 = y2 + x.reshape(H * Wp, Cp)                                  # residual in f32
    out_ref[...] = jnp.maximum(y2, 0.0).reshape(1, H, Wp, Cp).astype(out_ref.dtype)


def _fold_bn(gamma, beta, mean, var, eps, c_pad):
    scale = gamma / jnp.sqrt(var + eps)
    shift = beta - mean * scale
    c = gamma.shape[0]
    scale = jnp.pad(scale, (0, c_pad - c))   # padded channels: scale = shift = 0
    shift = jnp.pad(shift, (0, c_pad - c))
    return scale.reshape(1, c_pad), shift.reshape(1, c_pad)


def _prep_weights(w_hwio, c_pad, dtype):
    # (3,3,Cin,Cout) -> channel-pad -> (3, 3*Cp, Cp) with row layout kw*Cp + cin.
    c_in, c_out = w_hwio.shape[2], w_hwio.shape[3]
    w = jnp.pad(w_hwio, ((0, 0), (0, 0), (0, c_pad - c_in), (0, c_pad - c_out)))
    return w.reshape(3, 3 * c_pad, c_pad).astype(dtype)


@functools.partial(jax.jit, static_argnames=("eps", "use_bf16"))
def basic_block(x_nchw, w1_hwio, w2_hwio, bn1, bn2, eps=1e-5, use_bf16=False):
    """Pallas forward. x_nchw: (N, C, H, W) float32; weights HWIO (3,3,Cin,Cout)."""
    N, Cin, H, W = x_nchw.shape
    Cout = w1_hwio.shape[-1]
    assert Cin == Cout, "residual add requires in_channels == out_channels (stride=1)"
    C = Cin

    LANE, SUB = 128, 8
    Cp = -(-C // LANE) * LANE        # lane-dense channels
    Wp = -(-W // SUB) * SUB          # sublane-dense width
    cdtype = jnp.bfloat16 if use_bf16 else jnp.float32

    x = jnp.transpose(x_nchw, (0, 2, 3, 1))                          # NHWC
    x = jnp.pad(x, ((0, 0), (0, 0), (0, Wp - W), (0, Cp - C)))

    w1 = _prep_weights(w1_hwio, Cp, cdtype)
    w2 = _prep_weights(w2_hwio, Cp, cdtype)
    s1, b1 = _fold_bn(*bn1, eps, Cp)
    s2, b2 = _fold_bn(*bn2, eps, Cp)

    w_itemsize = 2 if use_bf16 else 4
    flops = 2 * (2 * 9 * H * Wp * Cp * Cp) * N                        # 2 convs
    bytes_accessed = (2 * N * H * Wp * Cp * 4          # x in + out
                      + 2 * 9 * Cp * Cp * w_itemsize   # both weight tensors
                      + 4 * Cp * 4)                     # folded BN params

    kernel = functools.partial(basic_block_kernel, w_valid=W)

    out_nhwc = pl.pallas_call(
        kernel,
        out_shape=jax.ShapeDtypeStruct((N, H, Wp, Cp), jnp.float32),
        grid=(N,),
        in_specs=[
            pl.BlockSpec((1, H, Wp, Cp), lambda n: (n, 0, 0, 0)),
            pl.BlockSpec((3, 3 * Cp, Cp), lambda n: (0, 0, 0)),
            pl.BlockSpec((3, 3 * Cp, Cp), lambda n: (0, 0, 0)),
            pl.BlockSpec((1, Cp), lambda n: (0, 0)),
            pl.BlockSpec((1, Cp), lambda n: (0, 0)),
            pl.BlockSpec((1, Cp), lambda n: (0, 0)),
            pl.BlockSpec((1, Cp), lambda n: (0, 0)),
        ],
        out_specs=pl.BlockSpec((1, H, Wp, Cp), lambda n: (n, 0, 0, 0)),
        scratch_shapes=[pltpu.VMEM((H + 2, Wp, 3 * Cp), cdtype)],
        compiler_params=pltpu.CompilerParams(
            dimension_semantics=("parallel",),        # megacore-shards batch on v7x
            vmem_limit_bytes=64 * 1024 * 1024),
        cost_estimate=pl.CostEstimate(
            flops=flops, transcendentals=0, bytes_accessed=bytes_accessed),
    )(x, w1, w2, s1, b1, s2, b2)

    return jnp.transpose(out_nhwc[:, :, :W, :C], (0, 3, 1, 2))       # back to NCHW


def basic_block_reference(x_nchw, w1_hwio, w2_hwio, bn1, bn2, eps=1e-5):
    """Pure-JAX reference (lax.conv) mirroring the PyTorch forward."""
    x = jnp.transpose(x_nchw, (0, 2, 3, 1))
    dn = lax.conv_dimension_numbers(x.shape, w1_hwio.shape, ("NHWC", "HWIO", "NHWC"))

    def bn(y, p):
        g, b, m, v = p
        return (y - m) / jnp.sqrt(v + eps) * g + b

    out = lax.conv_general_dilated(x, w1_hwio, (1, 1), ((1, 1), (1, 1)),
                                   dimension_numbers=dn)
    out = jax.nn.relu(bn(out, bn1))
    out = lax.conv_general_dilated(out, w2_hwio, (1, 1), ((1, 1), (1, 1)),
                                   dimension_numbers=dn)
    out = bn(out, bn2)
    out = jax.nn.relu(out + x)
    return jnp.transpose(out, (0, 3, 1, 2))


if __name__ == "__main__":
    key = jax.random.PRNGKey(0)
    N, C, H, W = 2, 4, 16, 16                     # in_channels == out_channels, stride=1

    ks = jax.random.split(key, 11)
    x = jax.random.normal(ks[0], (N, C, H, W), jnp.float32)

    # conv weights in HWIO layout (3, 3, Cin, Cout), bias-free as in the module
    w1 = 0.1 * jax.random.normal(ks[1], (3, 3, C, C), jnp.float32)
    w2 = 0.1 * jax.random.normal(ks[2], (3, 3, C, C), jnp.float32)

    # BatchNorm parameters (gamma, beta, running_mean, running_var)
    bn1 = (jax.random.uniform(ks[3], (C,), jnp.float32, 0.5, 1.5),
           0.1 * jax.random.normal(ks[4], (C,), jnp.float32),
           0.1 * jax.random.normal(ks[5], (C,), jnp.float32),
           jax.random.uniform(ks[6], (C,), jnp.float32, 0.5, 1.5))
    bn2 = (jax.random.uniform(ks[7], (C,), jnp.float32, 0.5, 1.5),
           0.1 * jax.random.normal(ks[8], (C,), jnp.float32),
           0.1 * jax.random.normal(ks[9], (C,), jnp.float32),
           jax.random.uniform(ks[10], (C,), jnp.float32, 0.5, 1.5))

    out = basic_block(x, w1, w2, bn1, bn2)        # exact f32 path for the self-test
    out = jax.block_until_ready(out)

    ref = basic_block_reference(x, w1, w2, bn1, bn2)
    assert out.shape == (N, C, H, W) and out.dtype == jnp.float32
    assert jnp.allclose(out, ref, atol=1e-4, rtol=1e-4), "mismatch vs reference"

    print("KERNEL_OK")
</pallas_src>

<mosaic_0001>
module attributes {stable_mosaic.version = 11 : i64} {
  func.func @basic_block_kernel(%arg0: i32, %arg1: memref<1x16x16x128xf32, #tpu.memory_space<vmem>>, %arg2: memref<3x384x128xf32, #tpu.memory_space<vmem>>, %arg3: memref<3x384x128xf32, #tpu.memory_space<vmem>>, %arg4: memref<1x128xf32, #tpu.memory_space<vmem>>, %arg5: memref<1x128xf32, #tpu.memory_space<vmem>>, %arg6: memref<1x128xf32, #tpu.memory_space<vmem>>, %arg7: memref<1x128xf32, #tpu.memory_space<vmem>>, %arg8: memref<1x16x16x128xf32, #tpu.memory_space<vmem>>, %arg9: memref<18x16x384xf32, #tpu.memory_space<vmem>>) attributes {dimension_semantics = [#tpu.dimension_semantics<parallel>], iteration_bounds = array<i64: 2>, scalar_prefetch = 0 : i64, scratch_operands = 1 : i64, tpu.core_type = #tpu.core_type<tc>, window_params = [{transform_indices = @transform_0, window_bounds = array<i64: 1, 16, 16, 128>}, {pipeline_mode = #tpu.pipeline_mode<synchronous>, transform_indices = @transform_1, window_bounds = array<i64: 3, 384, 128>}, {pipeline_mode = #tpu.pipeline_mode<synchronous>, transform_indices = @transform_2, window_bounds = array<i64: 3, 384, 128>}, {pipeline_mode = #tpu.pipeline_mode<synchronous>, transform_indices = @transform_3, window_bounds = array<i64: 1, 128>}, {pipeline_mode = #tpu.pipeline_mode<synchronous>, transform_indices = @transform_4, window_bounds = array<i64: 1, 128>}, {pipeline_mode = #tpu.pipeline_mode<synchronous>, transform_indices = @transform_5, window_bounds = array<i64: 1, 128>}, {pipeline_mode = #tpu.pipeline_mode<synchronous>, transform_indices = @transform_6, window_bounds = array<i64: 1, 128>}, {transform_indices = @transform_7, window_bounds = array<i64: 1, 16, 16, 128>}]} {
    %c0 = arith.constant 0 : index
    %c0_0 = arith.constant 0 : index
    %0 = vector.load %arg4[%c0, %c0_0] : memref<1x128xf32, #tpu.memory_space<vmem>>, vector<1x128xf32>
    %c0_1 = arith.constant 0 : index
    %c0_2 = arith.constant 0 : index
    %1 = vector.load %arg5[%c0_1, %c0_2] : memref<1x128xf32, #tpu.memory_space<vmem>>, vector<1x128xf32>
    %c0_3 = arith.constant 0 : index
    %c0_4 = arith.constant 0 : index
    %2 = vector.load %arg6[%c0_3, %c0_4] : memref<1x128xf32, #tpu.memory_space<vmem>>, vector<1x128xf32>
    %c0_5 = arith.constant 0 : index
    %c0_6 = arith.constant 0 : index
    %3 = vector.load %arg7[%c0_5, %c0_6] : memref<1x128xf32, #tpu.memory_space<vmem>>, vector<1x128xf32>
    %cst = arith.constant 0.000000e+00 : f32
    %4 = vector.broadcast %cst : f32 to vector<1x16x384xf32>
    %c0_7 = arith.constant 0 : index
    %c0_8 = arith.constant 0 : index
    %c0_9 = arith.constant 0 : index
    %5 = vector.load %arg9[%c0_7, %c0_8, %c0_9] : memref<18x16x384xf32, #tpu.memory_space<vmem>>, vector<1x16x384xf32>
    tpu.vector_store %arg9[%c0_7, %c0_8, %c0_9], %4 {strides = array<i32>} : memref<18x16x384xf32, #tpu.memory_space<vmem>>, vector<1x16x384xf32>,
    %c17 = arith.constant 17 : index
    %c0_10 = arith.constant 0 : index
    %c0_11 = arith.constant 0 : index
    %6 = vector.load %arg9[%c17, %c0_10, %c0_11] : memref<18x16x384xf32, #tpu.memory_space<vmem>>, vector<1x16x384xf32>
    tpu.vector_store %arg9[%c17, %c0_10, %c0_11], %4 {strides = array<i32>} : memref<18x16x384xf32, #tpu.memory_space<vmem>>, vector<1x16x384xf32>,
    %cst_12 = arith.constant 0.000000e+00 : f32
    %7 = vector.broadcast %cst_12 : f32 to vector<16x1x128xf32>
    %c0_13 = arith.constant 0 : index
    %c0_14 = arith.constant 0 : index
    %c0_15 = arith.constant 0 : index
    %c0_16 = arith.constant 0 : index
    %8 = vector.load %arg1[%c0_13, %c0_14, %c0_15, %c0_16] : memref<1x16x16x128xf32, #tpu.memory_space<vmem>>, vector<1x16x16x128xf32>
    %9 = vector.shape_cast %8 : vector<1x16x16x128xf32> to vector<16x16x128xf32>
    %10 = vector.extract_strided_slice %9 {offsets = [0, 0, 0], sizes = [16, 15, 128], strides = [1, 1, 1]} : vector<16x16x128xf32> to vector<16x15x128xf32>
    %11 = tpu.concatenate %7, %10 in 1 : vector<16x1x128xf32>, vector<16x15x128xf32> -> vector<16x16x128xf32>
    %12 = vector.extract_strided_slice %9 {offsets = [0, 1, 0], sizes = [16, 15, 128], strides = [1, 1, 1]} : vector<16x16x128xf32> to vector<16x15x128xf32>
    %13 = tpu.concatenate %12, %7 in 1 : vector<16x15x128xf32>, vector<16x1x128xf32> -> vector<16x16x128xf32>
    %c1 = arith.constant 1 : index
    %c0_17 = arith.constant 0 : index
    %c0_18 = arith.constant 0 : index
    %14 = vector.load %arg9[%c1, %c0_17, %c0_18] : memref<18x16x384xf32, #tpu.memory_space<vmem>>, vector<16x16x128xf32>
    tpu.vector_store %arg9[%c1, %c0_17, %c0_18], %11 {strides = array<i32>} : memref<18x16x384xf32, #tpu.memory_space<vmem>>, vector<16x16x128xf32>,
    %c1_19 = arith.constant 1 : index
    %c0_20 = arith.constant 0 : index
    %c128 = arith.constant 128 : index
    %15 = vector.load %arg9[%c1_19, %c0_20, %c128] : memref<18x16x384xf32, #tpu.memory_space<vmem>>, vector<16x16x128xf32>
    tpu.vector_store %arg9[%c1_19, %c0_20, %c128], %9 {strides = array<i32>} : memref<18x16x384xf32, #tpu.memory_space<vmem>>, vector<16x16x128xf32>,
    %c1_21 = arith.constant 1 : index
    %c0_22 = arith.constant 0 : index
    %c256 = arith.constant 256 : index
    %16 = vector.load %arg9[%c1_21, %c0_22, %c256] : memref<18x16x384xf32, #tpu.memory_space<vmem>>, vector<16x16x128xf32>
    tpu.vector_store %arg9[%c1_21, %c0_22, %c256], %13 {strides = array<i32>} : memref<18x16x384xf32, #tpu.memory_space<vmem>>, vector<16x16x128xf32>,
    %c0_23 = arith.constant 0 : index
    %c0_24 = arith.constant 0 : index
    %c0_25 = arith.constant 0 : index
    %17 = vector.load %arg9[%c0_23, %c0_24, %c0_25] : memref<18x16x384xf32, #tpu.memory_space<vmem>>, vector<16x16x384xf32>
    %18 = vector.shape_cast %17 : vector<16x16x384xf32> to vector<256x384xf32>
    %c0_26 = arith.constant 0 : index
    %c0_27 = arith.constant 0 : index
    %c0_28 = arith.constant 0 : index
    %19 = vector.load %arg2[%c0_26, %c0_27, %c0_28] : memref<3x384x128xf32, #tpu.memory_space<vmem>>, vector<1x384x128xf32>
    %20 = vector.shape_cast %19 : vector<1x384x128xf32> to vector<384x128xf32>
    %cst_29 = arith.constant dense<0.000000e+00> : vector<256x128xf32>
    %21 = tpu.matmul %18, %20, %cst_29 {dimension_numbers = #tpu.dot_dimension_numbers<[1], [0], [0], [1], [0, 0, 1, 1], [], []>} : vector<256x384xf32>, vector<384x128xf32>, vector<256x128xf32> -> vector<256x128xf32>
    %c1_30 = arith.constant 1 : index
    %c0_31 = arith.constant 0 : index
    %c0_32 = arith.constant 0 : index
    %22 = vector.load %arg9[%c1_30, %c0_31, %c0_32] : memref<18x16x384xf32, #tpu.memory_space<vmem>>, vector<16x16x384xf32>
    %23 = vector.shape_cast %22 : vector<16x16x384xf32> to vector<256x384xf32>
    %c1_33 = arith.constant 1 : index
    %c0_34 = arith.constant 0 : index
    %c0_35 = arith.constant 0 : index
    %24 = vector.load %arg2[%c1_33, %c0_34, %c0_35] : memref<3x384x128xf32, #tpu.memory_space<vmem>>, vector<1x384x128xf32>
    %25 = vector.shape_cast %24 : vector<1x384x128xf32> to vector<384x128xf32>
    %cst_36 = arith.constant dense<0.000000e+00> : vector<256x128xf32>
    %26 = tpu.matmul %23, %25, %cst_36 {dimension_numbers = #tpu.dot_dimension_numbers<[1], [0], [0], [1], [0, 0, 1, 1], [], []>} : vector<256x384xf32>, vector<384x128xf32>, vector<256x128xf32> -> vector<256x128xf32>
    %27 = arith.addf %21, %26 : vector<256x128xf32>
    %c2 = arith.constant 2 : index
    %c0_37 = arith.constant 0 : index
    %c0_38 = arith.constant 0 : index
    %28 = vector.load %arg9[%c2, %c0_37, %c0_38] : memref<18x16x384xf32, #tpu.memory_space<vmem>>, vector<16x16x384xf32>
    %29 = vector.shape_cast %28 : vector<16x16x384xf32> to vector<256x384xf32>
    %c2_39 = arith.constant 2 : index
    %c0_40 = arith.constant 0 : index
    %c0_41 = arith.constant 0 : index
    %30 = vector.load %arg2[%c2_39, %c0_40, %c0_41] : memref<3x384x128xf32, #tpu.memory_space<vmem>>, vector<1x384x128xf32>
    %31 = vector.shape_cast %30 : vector<1x384x128xf32> to vector<384x128xf32>
    %cst_42 = arith.constant dense<0.000000e+00> : vector<256x128xf32>
    %32 = tpu.matmul %29, %31, %cst_42 {dimension_numbers = #tpu.dot_dimension_numbers<[1], [0], [0], [1], [0, 0, 1, 1], [], []>} : vector<256x384xf32>, vector<384x128xf32>, vector<256x128xf32> -> vector<256x128xf32>
    %33 = arith.addf %27, %32 : vector<256x128xf32>
    %34 = vector.broadcast %0 : vector<1x128xf32> to vector<256x128xf32>
    %35 = arith.mulf %33, %34 : vector<256x128xf32>
    %36 = vector.broadcast %1 : vector<1x128xf32> to vector<256x128xf32>
    %37 = arith.addf %35, %36 : vector<256x128xf32>
    %cst_43 = arith.constant 0.000000e+00 : f32
    %38 = vector.broadcast %cst_43 : f32 to vector<256x128xf32>
    %39 = arith.maximumf %37, %38 : vector<256x128xf32>
    %40 = vector.shape_cast %39 : vector<256x128xf32> to vector<16x16x128xf32>
    %41 = vector.extract_strided_slice %40 {offsets = [0, 0, 0], sizes = [16, 15, 128], strides = [1, 1, 1]} : vector<16x16x128xf32> to vector<16x15x128xf32>
    %42 = tpu.concatenate %7, %41 in 1 : vector<16x1x128xf32>, vector<16x15x128xf32> -> vector<16x16x128xf32>
    %43 = vector.extract_strided_slice %40 {offsets = [0, 1, 0], sizes = [16, 15, 128], strides = [1, 1, 1]} : vector<16x16x128xf32> to vector<16x15x128xf32>
    %44 = tpu.concatenate %43, %7 in 1 : vector<16x15x128xf32>, vector<16x1x128xf32> -> vector<16x16x128xf32>
    %c1_44 = arith.constant 1 : index
    %c0_45 = arith.constant 0 : index
    %c0_46 = arith.constant 0 : index
    %45 = vector.load %arg9[%c1_44, %c0_45, %c0_46] : memref<18x16x384xf32, #tpu.memory_space<vmem>>, vector<16x16x128xf32>
    tpu.vector_store %arg9[%c1_44, %c0_45, %c0_46], %42 {strides = array<i32>} : memref<18x16x384xf32, #tpu.memory_space<vmem>>, vector<16x16x128xf32>,
    %c1_47 = arith.constant 1 : index
    %c0_48 = arith.constant 0 : index
    %c128_49 = arith.constant 128 : index
    %46 = vector.load %arg9[%c1_47, %c0_48, %c128_49] : memref<18x16x384xf32, #tpu.memory_space<vmem>>, vector<16x16x128xf32>
    tpu.vector_store %arg9[%c1_47, %c0_48, %c128_49], %40 {strides = array<i32>} : memref<18x16x384xf32, #tpu.memory_space<vmem>>, vector<16x16x128xf32>,
    %c1_50 = arith.constant 1 : index
    %c0_51 = arith.constant 0 : index
    %c256_52 = arith.constant 256 : index
    %47 = vector.load %arg9[%c1_50, %c0_51, %c256_52] : memref<18x16x384xf32, #tpu.memory_space<vmem>>, vector<16x16x128xf32>
    tpu.vector_store %arg9[%c1_50, %c0_51, %c256_52], %44 {strides = array<i32>} : memref<18x16x384xf32, #tpu.memory_space<vmem>>, vector<16x16x128xf32>,
    %c0_53 = arith.constant 0 : index
    %c0_54 = arith.constant 0 : index
    %c0_55 = arith.constant 0 : index
    %48 = vector.load %arg9[%c0_53, %c0_54, %c0_55] : memref<18x16x384xf32, #tpu.memory_space<vmem>>, vector<16x16x384xf32>
    %49 = vector.shape_cast %48 : vector<16x16x384xf32> to vector<256x384xf32>
    %c0_56 = arith.constant 0 : index
    %c0_57 = arith.constant 0 : index
    %c0_58 = arith.constant 0 : index
    %50 = vector.load %arg3[%c0_56, %c0_57, %c0_58] : memref<3x384x128xf32, #tpu.memory_space<vmem>>, vector<1x384x128xf32>
    %51 = vector.shape_cast %50 : vector<1x384x128xf32> to vector<384x128xf32>
    %cst_59 = arith.constant dense<0.000000e+00> : vector<256x128xf32>
    %52 = tpu.matmul %49, %51, %cst_59 {dimension_numbers = #tpu.dot_dimension_numbers<[1], [0], [0], [1], [0, 0, 1, 1], [], []>} : vector<256x384xf32>, vector<384x128xf32>, vector<256x128xf32> -> vector<256x128xf32>
    %c1_60 = arith.constant 1 : index
    %c0_61 = arith.constant 0 : index
    %c0_62 = arith.constant 0 : index
    %53 = vector.load %arg9[%c1_60, %c0_61, %c0_62] : memref<18x16x384xf32, #tpu.memory_space<vmem>>, vector<16x16x384xf32>
    %54 = vector.shape_cast %53 : vector<16x16x384xf32> to vector<256x384xf32>
    %c1_63 = arith.constant 1 : index
    %c0_64 = arith.constant 0 : index
    %c0_65 = arith.constant 0 : index
    %55 = vector.load %arg3[%c1_63, %c0_64, %c0_65] : memref<3x384x128xf32, #tpu.memory_space<vmem>>, vector<1x384x128xf32>
    %56 = vector.shape_cast %55 : vector<1x384x128xf32> to vector<384x128xf32>
    %cst_66 = arith.constant dense<0.000000e+00> : vector<256x128xf32>
    %57 = tpu.matmul %54, %56, %cst_66 {dimension_numbers = #tpu.dot_dimension_numbers<[1], [0], [0], [1], [0, 0, 1, 1], [], []>} : vector<256x384xf32>, vector<384x128xf32>, vector<256x128xf32> -> vector<256x128xf32>
    %58 = arith.addf %52, %57 : vector<256x128xf32>
    %c2_67 = arith.constant 2 : index
    %c0_68 = arith.constant 0 : index
    %c0_69 = arith.constant 0 : index
    %59 = vector.load %arg9[%c2_67, %c0_68, %c0_69] : memref<18x16x384xf32, #tpu.memory_space<vmem>>, vector<16x16x384xf32>
    %60 = vector.shape_cast %59 : vector<16x16x384xf32> to vector<256x384xf32>
    %c2_70 = arith.constant 2 : index
    %c0_71 = arith.constant 0 : index
    %c0_72 = arith.constant 0 : index
    %61 = vector.load %arg3[%c2_70, %c0_71, %c0_72] : memref<3x384x128xf32, #tpu.memory_space<vmem>>, vector<1x384x128xf32>
    %62 = vector.shape_cast %61 : vector<1x384x128xf32> to vector<384x128xf32>
    %cst_73 = arith.constant dense<0.000000e+00> : vector<256x128xf32>
    %63 = tpu.matmul %60, %62, %cst_73 {dimension_numbers = #tpu.dot_dimension_numbers<[1], [0], [0], [1], [0, 0, 1, 1], [], []>} : vector<256x384xf32>, vector<384x128xf32>, vector<256x128xf32> -> vector<256x128xf32>
    %64 = arith.addf %58, %63 : vector<256x128xf32>
    %65 = vector.broadcast %2 : vector<1x128xf32> to vector<256x128xf32>
    %66 = arith.mulf %64, %65 : vector<256x128xf32>
    %67 = vector.broadcast %3 : vector<1x128xf32> to vector<256x128xf32>
    %68 = arith.addf %66, %67 : vector<256x128xf32>
    %69 = vector.shape_cast %9 : vector<16x16x128xf32> to vector<256x128xf32>
    %70 = arith.addf %68, %69 : vector<256x128xf32>
    %cst_74 = arith.constant 0.000000e+00 : f32
    %71 = vector.broadcast %cst_74 : f32 to vector<256x128xf32>
    %72 = arith.maximumf %70, %71 : vector<256x128xf32>
    %73 = vector.shape_cast %72 : vector<256x128xf32> to vector<1x16x16x128xf32>
    %c0_75 = arith.constant 0 : index
    %c0_76 = arith.constant 0 : index
    %c0_77 = arith.constant 0 : index
    %c0_78 = arith.constant 0 : index
    %74 = vector.load %arg8[%c0_75, %c0_76, %c0_77, %c0_78] : memref<1x16x16x128xf32, #tpu.memory_space<vmem>>, vector<1x16x16x128xf32>
    tpu.vector_store %arg8[%c0_75, %c0_76, %c0_77, %c0_78], %73 {strides = array<i32>} : memref<1x16x16x128xf32, #tpu.memory_space<vmem>>, vector<1x16x16x128xf32>,
    return
  }
  func.func @transform_0(%arg0: i32) -> (i32, i32, i32, i32) {
    %c0_i32 = arith.constant 0 : i32
    %c0_i32_0 = arith.constant 0 : i32
    %c0_i32_1 = arith.constant 0 : i32
    %c0_i32_2 = arith.constant 0 : i32
    return %arg0, %c0_i32, %c0_i32_0, %c0_i32_1 : i32, i32, i32, i32
  }
  func.func @transform_1(%arg0: i32) -> (i32, i32, i32) {
    %c0_i32 = arith.constant 0 : i32
    %c0_i32_0 = arith.constant 0 : i32
    %c0_i32_1 = arith.constant 0 : i32
    %c0_i32_2 = arith.constant 0 : i32
    return %c0_i32, %c0_i32_0, %c0_i32_1 : i32, i32, i32
  }
  func.func @transform_2(%arg0: i32) -> (i32, i32, i32) {
    %c0_i32 = arith.constant 0 : i32
    %c0_i32_0 = arith.constant 0 : i32
    %c0_i32_1 = arith.constant 0 : i32
    %c0_i32_2 = arith.constant 0 : i32
    return %c0_i32, %c0_i32_0, %c0_i32_1 : i32, i32, i32
  }
  func.func @transform_3(%arg0: i32) -> (i32, i32) {
    %c0_i32 = arith.constant 0 : i32
    %c0_i32_0 = arith.constant 0 : i32
    %c0_i32_1 = arith.constant 0 : i32
    return %c0_i32, %c0_i32_0 : i32, i32
  }
  func.func @transform_4(%arg0: i32) -> (i32, i32) {
    %c0_i32 = arith.constant 0 : i32
    %c0_i32_0 = arith.constant 0 : i32
    %c0_i32_1 = arith.constant 0 : i32
    return %c0_i32, %c0_i32_0 : i32, i32
  }
  func.func @transform_5(%arg0: i32) -> (i32, i32) {
    %c0_i32 = arith.constant 0 : i32
    %c0_i32_0 = arith.constant 0 : i32
    %c0_i32_1 = arith.constant 0 : i32
    return %c0_i32, %c0_i32_0 : i32, i32
  }
  func.func @transform_6(%arg0: i32) -> (i32, i32) {
    %c0_i32 = arith.constant 0 : i32
    %c0_i32_0 = arith.constant 0 : i32
    %c0_i32_1 = arith.constant 0 : i32
    return %c0_i32, %c0_i32_0 : i32, i32
  }
  func.func @transform_7(%arg0: i32) -> (i32, i32, i32, i32) {
    %c0_i32 = arith.constant 0 : i32
    %c0_i32_0 = arith.constant 0 : i32
    %c0_i32_1 = arith.constant 0 : i32
    %c0_i32_2 = arith.constant 0 : i32
    return %arg0, %c0_i32, %c0_i32_0, %c0_i32_1 : i32, i32, i32, i32
  }
}

</mosaic_0001>

<llo_original>
// kernel: basic_block.1
$region0: #{basic_block.1}
  #allocation0 [shape = 'u32[]', space=smem, size = 0x4, offset = 0x4, fixed_abs, tag = 'smem constant byte address 0x4 - core index']
  #allocation1 [shape = 'u32[144,128]{1,0:T(1,128)}', space=vmem, size = 0x12000, scoped, tag = 'internal scratch']
  #allocation2 [shape = 'f32[18,16,384]{2,1,0:T(8,128)}', space=vmem, size = 0x6c000, scoped, tag = 'scratch operand']
  %s0 = inlined_call_operand.hbm [shape: f32[2,16,16,128], index: 0, kind: input, shape index: {}]
  %s1 = inlined_call_operand.hbm [shape: f32[3,384,128], index: 1, kind: input, shape index: {}]
  %s2 = inlined_call_operand.hbm [shape: f32[3,384,128], index: 2, kind: input, shape index: {}]
  %s3 = inlined_call_operand.hbm [shape: f32[1,128], index: 3, kind: input, shape index: {}]
  %s4 = inlined_call_operand.hbm [shape: f32[1,128], index: 4, kind: input, shape index: {}]
  %s5 = inlined_call_operand.hbm [shape: f32[1,128], index: 5, kind: input, shape index: {}]
  %s6 = inlined_call_operand.hbm [shape: f32[1,128], index: 6, kind: input, shape index: {}]
  %s7 = inlined_call_operand.hbm [shape: f32[2,16,16,128], index: 7, kind: output, shape index: {}]
  %s8 = sld [smem:[#allocation0]]
  $region89: #{basic_block.1} parent=0
    _
  %s10 = ssub.s32 1, %s8
  %s11 = scalar_select 0, %s10, %s8
  $region1: #{basic_block.1} parent=0
    #allocation3 [shape = 'u8[262144]{0}', space=vmem, size = 0x40000, scoped, tag = 'input window, operand 0']
    #allocation4 [shape = 's32[2]{0}', space=sflag, size = 0x8, scoped, tag = 'scoped memory for basic_block.1']
    #allocation5 [shape = 's32[2]{0}', space=sflag, size = 0x8, scoped, tag = 'scoped memory for basic_block.1']
    #allocation6 [shape = 'u8[589824]{0}', space=vmem, size = 0x90000, scoped, tag = 'input window, operand 1, single buffered']
    #allocation7 [shape = 's32[1]{0}', space=sflag, size = 0x4, scoped, tag = 'scoped memory for basic_block.1']
    #allocation8 [shape = 'u8[589824]{0}', space=vmem, size = 0x90000, scoped, tag = 'input window, operand 2, single buffered']
    #allocation9 [shape = 'u8[512]{0}', space=vmem, size = 0x400, scoped, tag = 'input window, operand 3, single buffered']
    #allocation10 [shape = 's32[1]{0}', space=sflag, size = 0x4, scoped, tag = 'scoped memory for basic_block.1']
    #allocation11 [shape = 'u8[512]{0}', space=vmem, size = 0x400, scoped, tag = 'input window, operand 4, single buffered']
    #allocation12 [shape = 'u8[512]{0}', space=vmem, size = 0x400, scoped, tag = 'input window, operand 5, single buffered']
    #allocation13 [shape = 's32[1]{0}', space=sflag, size = 0x4, scoped, tag = 'scoped memory for basic_block.1']
    #allocation14 [shape = 'u8[512]{0}', space=vmem, size = 0x400, scoped, tag = 'input window, operand 6, single buffered']
    #allocation15 [shape = 'u8[262144]{0}', space=vmem, size = 0x40000, scoped, tag = 'output window, operand 0']
    %12 = vsyncpa [#allocation4], 0
    %s13 = scalar_lea.sflag [#allocation4], 1
    %14 = vsyncpa %s13, 0
    %15 = vsyncpa [#allocation7], 0
    %16 = vsyncpa [#allocation10], 0
    %17 = vsyncpa [#allocation13], 0
    %18 = vsyncpa [#allocation5], 0
    %s19 = scalar_lea.sflag [#allocation5], 1
    %20 = vsyncpa %s19, 0
    loop: start=0, step=1, limit=4
    $region2: #{basic_block.1} parent=1 // loop_pre_header
      _
    $region3: #{basic_block.1} parent=1 // loop_header
      %s22 = sphi 0, %s26
      %p23 = scmp.ge.s32.totalorder %s22, 4
      %s32 = sphi 0, %s34
      %s35 = sphi 0, %s32
      %s36 = sphi 0, %s35
      %s52 = sphi 0, %s36
      %s56 = sphi 0, %s56
      %s58 = sphi 0, %s56
      %s59 = sphi 0, %s58
      %s73 = sphi 0, %s59
      %s77 = sphi 0, %s77
      %s79 = sphi 0, %s77
      %s80 = sphi 0, %s79
      %s94 = sphi 0, %s80
      %s98 = sphi 0, %s98
      %s100 = sphi 0, %s98
      %s101 = sphi 0, %s100
      %s115 = sphi 0, %s101
      %s119 = sphi 0, %s119
      %s121 = sphi 0, %s119
      %s122 = sphi 0, %s121
      %s136 = sphi 0, %s122
      %s140 = sphi 0, %s140
      %s142 = sphi 0, %s140
      %s143 = sphi 0, %s142
      %s157 = sphi 0, %s143
      %s161 = sphi 0, %s161
      %s163 = sphi 0, %s161
      %s164 = sphi 0, %s163
      %s178 = sphi 0, %s164
      %s184 = sphi 0, %s186
      %s187 = sphi 0, %s184
      %s188 = sphi 0, %s187
      %s204 = sphi 0, %s188
    $region4: #{basic_block.1} parent=1 // loop_header_branch
      %25 = sbr.rel (%p23) target = $region8
    $region5: #{basic_block.1} parent=1 // loop_body
      %s27 = ssub.s32 %s22, 1
      %s28 = ssub.s32 %s22, 2
      %s29 = sadd.s32 %s22, 1
      %s30 = ssub.s32 %s22, %s29
      %p31 = scmp.eq.s32.totalorder %s30, 0
      %s33 = sadd.s32 %s32, 1
      %s34 = scalar_select %p31, %s32, %s33
      %p37 = pneg %p31
      %p38 = scmp.eq.s32.totalorder %s22, 1
      %p39 = por %p37, %p38
      %p40 = scmp.ne.s32.totalorder %s32, %s35
      %p41 = scmp.eq.s32.totalorder %s22, 0
      %p42 = por %p40, %p41
      %p43 = scmp.ne.s32.totalorder %s32, %s35
      %p44 = scmp.eq.s32.totalorder %s27, 1
      %p45 = por %p43, %p44
      %p46 = scmp.ne.s32.totalorder %s35, %s36
      %p47 = scmp.eq.s32.totalorder %s27, 0
      %p48 = por %p46, %p47
      %p49 = scmp.ne.s32.totalorder %s35, %s36
      %p50 = scmp.eq.s32.totalorder %s28, 1
      %p51 = por %p49, %p50
      %p53 = scmp.ne.s32.totalorder %s36, %s52
      %p54 = scmp.eq.s32.totalorder %s28, 0
      %p55 = por %p53, %p54
      %s57 = sadd.s32 %s56, 1
      %p60 = scmp.eq.s32.totalorder %s22, 1
      %p61 = scmp.ne.s32.totalorder %s56, %s58
      %p62 = scmp.eq.s32.totalorder %s22, 0
      %p63 = por %p61, %p62
      %p64 = scmp.ne.s32.totalorder %s56, %s58
      %p65 = scmp.eq.s32.totalorder %s27, 1
      %p66 = por %p64, %p65
      %p67 = scmp.ne.s32.totalorder %s58, %s59
      %p68 = scmp.eq.s32.totalorder %s27, 0
      %p69 = por %p67, %p68
      %p70 = scmp.ne.s32.totalorder %s58, %s59
      %p71 = scmp.eq.s32.totalorder %s28, 1
      %p72 = por %p70, %p71
      %p74 = scmp.ne.s32.totalorder %s59, %s73
      %p75 = scmp.eq.s32.totalorder %s28, 0
      %p76 = por %p74, %p75
      %s78 = sadd.s32 %s77, 1
      %p81 = scmp.eq.s32.totalorder %s22, 1
      %p82 = scmp.ne.s32.totalorder %s77, %s79
      %p83 = scmp.eq.s32.totalorder %s22, 0
      %p84 = por %p82, %p83
      %p85 = scmp.ne.s32.totalorder %s77, %s79
      %p86 = scmp.eq.s32.totalorder %s27, 1
      %p87 = por %p85, %p86
      %p88 = scmp.ne.s32.totalorder %s79, %s80
      %p89 = scmp.eq.s32.totalorder %s27, 0
      %p90 = por %p88, %p89
      %p91 = scmp.ne.s32.totalorder %s79, %s80
      %p92 = scmp.eq.s32.totalorder %s28, 1
      %p93 = por %p91, %p92
      %p95 = scmp.ne.s32.totalorder %s80, %s94
      %p96 = scmp.eq.s32.totalorder %s28, 0
      %p97 = por %p95, %p96
      %s99 = sadd.s32 %s98, 1
      %p102 = scmp.eq.s32.totalorder %s22, 1
      %p103 = scmp.ne.s32.totalorder %s98, %s100
      %p104 = scmp.eq.s32.totalorder %s22, 0
      %p105 = por %p103, %p104
      %p106 = scmp.ne.s32.totalorder %s98, %s100
      %p107 = scmp.eq.s32.totalorder %s27, 1
      %p108 = por %p106, %p107
      %p109 = scmp.ne.s32.totalorder %s100, %s101
      %p110 = scmp.eq.s32.totalorder %s27, 0
      %p111 = por %p109, %p110
      %p112 = scmp.ne.s32.totalorder %s100, %s101
      %p113 = scmp.eq.s32.totalorder %s28, 1
      %p114 = por %p112, %p113
      %p116 = scmp.ne.s32.totalorder %s101, %s115
      %p117 = scmp.eq.s32.totalorder %s28, 0
      %p118 = por %p116, %p117
      %s120 = sadd.s32 %s119, 1
      %p123 = scmp.eq.s32.totalorder %s22, 1
      %p124 = scmp.ne.s32.totalorder %s119, %s121
      %p125 = scmp.eq.s32.totalorder %s22, 0
      %p126 = por %p124, %p125
      %p127 = scmp.ne.s32.totalorder %s119, %s121
      %p128 = scmp.eq.s32.totalorder %s27, 1
      %p129 = por %p127, %p128
      %p130 = scmp.ne.s32.totalorder %s121, %s122
      %p131 = scmp.eq.s32.totalorder %s27, 0
      %p132 = por %p130, %p131
      %p133 = scmp.ne.s32.totalorder %s121, %s122
      %p134 = scmp.eq.s32.totalorder %s28, 1
      %p135 = por %p133, %p134
      %p137 = scmp.ne.s32.totalorder %s122, %s136
      %p138 = scmp.eq.s32.totalorder %s28, 0
      %p139 = por %p137, %p138
      %s141 = sadd.s32 %s140, 1
      %p144 = scmp.eq.s32.totalorder %s22, 1
      %p145 = scmp.ne.s32.totalorder %s140, %s142
      %p146 = scmp.eq.s32.totalorder %s22, 0
      %p147 = por %p145, %p146
      %p148 = scmp.ne.s32.totalorder %s140, %s142
      %p149 = scmp.eq.s32.totalorder %s27, 1
      %p150 = por %p148, %p149
      %p151 = scmp.ne.s32.totalorder %s142, %s143
      %p152 = scmp.eq.s32.totalorder %s27, 0
      %p153 = por %p151, %p152
      %p154 = scmp.ne.s32.totalorder %s142, %s143
      %p155 = scmp.eq.s32.totalorder %s28, 1
      %p156 = por %p154, %p155
      %p158 = scmp.ne.s32.totalorder %s143, %s157
      %p159 = scmp.eq.s32.totalorder %s28, 0
      %p160 = por %p158, %p159
      %s162 = sadd.s32 %s161, 1
      %p165 = scmp.eq.s32.totalorder %s22, 1
      %p166 = scmp.ne.s32.totalorder %s161, %s163
      %p167 = scmp.eq.s32.totalorder %s22, 0
      %p168 = por %p166, %p167
      %p169 = scmp.ne.s32.totalorder %s161, %s163
      %p170 = scmp.eq.s32.totalorder %s27, 1
      %p171 = por %p169, %p170
      %p172 = scmp.ne.s32.totalorder %s163, %s164
      %p173 = scmp.eq.s32.totalorder %s27, 0
      %p174 = por %p172, %p173
      %p175 = scmp.ne.s32.totalorder %s163, %s164
      %p176 = scmp.eq.s32.totalorder %s28, 1
      %p177 = por %p175, %p176
      %p179 = scmp.ne.s32.totalorder %s164, %s178
      %p180 = scmp.eq.s32.totalorder %s28, 0
      %p181 = por %p179, %p180
      %s182 = ssub.s32 %s22, %s29
      %p183 = scmp.eq.s32.totalorder %s182, 0
      %s185 = sadd.s32 %s184, 1
      %s186 = scalar_select %p183, %s184, %s185
      %p189 = pneg %p183
      %p190 = scmp.eq.s32.totalorder %s22, 1
      %p191 = por %p189, %p190
      %p192 = scmp.ne.s32.totalorder %s184, %s187
      %p193 = scmp.eq.s32.totalorder %s22, 0
      %p194 = por %p192, %p193
      %p195 = scmp.ne.s32.totalorder %s184, %s187
      %p196 = scmp.eq.s32.totalorder %s27, 1
      %p197 = por %p195, %p196
      %p198 = scmp.ne.s32.totalorder %s187, %s188
      %p199 = scmp.eq.s32.totalorder %s27, 0
      %p200 = por %p198, %p199
      %p201 = scmp.ne.s32.totalorder %s187, %s188
      %p202 = scmp.eq.s32.totalorder %s28, 1
      %p203 = por %p201, %p202
      %p205 = scmp.ne.s32.totalorder %s188, %s204
      %p206 = scmp.eq.s32.totalorder %s28, 0
      %p207 = por %p205, %p206
      %p208 = scmp.le.s32.totalorder 1, %s22
      %p209 = scmp.lt.s32.totalorder %s22, 3
      %p210 = pnand %p208, %p209
      %p211 = pneg %p210
      // Predicated region
      $region9: #{basic_block.1} parent=5 // pred_check
        _
      $region10: #{basic_block.1} parent=5 // pred_check_branch
        %213 = sbr.rel (%p210) target = $region12
      $region11: #{basic_block.1} parent=5 // pred_region
        %s214 = ssub.s32 %s22, 1
        // Predicated region
        $region13: #{basic_block.1} parent=11 // pred_check
          %p215 = pneg %p69
        $region14: #{basic_block.1} parent=11 // pred_check_branch
          %217 = sbr.rel (%p215) target = $region16
        $region15: #{basic_block.1} parent=11 // pred_region
          %s219 = ssub.s32 18432, 18432
          %220 = vsyncadd [#allocation7], %s219
          %s221 = sshll.u32 [#allocation6], 4
          %s222 = int_to_ptr.vmem [resolvable:$true] %s221
          %227 = dma.hbm_to_vmem [thread:$0]  %s1, 18432, %s222, [#allocation7], 128, 128, 8
        $region16: #{basic_block.1} parent=11 // pred_fallthru
          _
        // Predicated region
        $region17: #{basic_block.1} parent=11 // pred_check
          %p228 = pneg %p90
        $region18: #{basic_block.1} parent=11 // pred_check_branch
          %230 = sbr.rel (%p228) target = $region20
        $region19: #{basic_block.1} parent=11 // pred_region
          %s232 = ssub.s32 18432, 18432
          %233 = vsyncadd [#allocation7], %s232
          %s234 = sshll.u32 [#allocation8], 4
          %s235 = int_to_ptr.vmem [resolvable:$true] %s234
          %240 = dma.hbm_to_vmem [thread:$0]  %s2, 18432, %s235, [#allocation7], 128, 128, 8
        $region20: #{basic_block.1} parent=11 // pred_fallthru
          _
        // Predicated region
        $region21: #{basic_block.1} parent=11 // pred_check
          %p241 = pneg %p111
        $region22: #{basic_block.1} parent=11 // pred_check_branch
          %243 = sbr.rel (%p241) target = $region24
        $region23: #{basic_block.1} parent=11 // pred_region
          %s245 = ssub.s32 16, 16
          %246 = vsyncadd [#allocation10], %s245
          %s248 = sshll.u32 [#allocation9], 4
          %s249 = int_to_ptr.vmem [resolvable:$true] %s248
          %251 = dma.hbm_to_vmem [thread:$0]  %s3, 16, %s249, [#allocation10]
        $region24: #{basic_block.1} parent=11 // pred_fallthru
          _
        // Predicated region
        $region25: #{basic_block.1} parent=11 // pred_check
          %p252 = pneg %p132
        $region26: #{basic_block.1} parent=11 // pred_check_branch
          %254 = sbr.rel (%p252) target = $region28
        $region27: #{basic_block.1} parent=11 // pred_region
          %s256 = ssub.s32 16, 16
          %257 = vsyncadd [#allocation10], %s256
          %s259 = sshll.u32 [#allocation11], 4
          %s260 = int_to_ptr.vmem [resolvable:$true] %s259
          %262 = dma.hbm_to_vmem [thread:$0]  %s4, 16, %s260, [#allocation10]
        $region28: #{basic_block.1} parent=11 // pred_fallthru
          _
        // Predicated region
        $region29: #{basic_block.1} parent=11 // pred_check
          %p263 = pneg %p153
        $region30: #{basic_block.1} parent=11 // pred_check_branch
          %265 = sbr.rel (%p263) target = $region32
        $region31: #{basic_block.1} parent=11 // pred_region
          %s267 = ssub.s32 16, 16
          %268 = vsyncadd [#allocation13], %s267
          %s270 = sshll.u32 [#allocation12], 4
          %s271 = int_to_ptr.vmem [resolvable:$true] %s270
          %273 = dma.hbm_to_vmem [thread:$0]  %s5, 16, %s271, [#allocation13]
        $region32: #{basic_block.1} parent=11 // pred_fallthru
          _
        // Predicated region
        $region33: #{basic_block.1} parent=11 // pred_check
          %p274 = pneg %p174
        $region34: #{basic_block.1} parent=11 // pred_check_branch
          %276 = sbr.rel (%p274) target = $region36
        $region35: #{basic_block.1} parent=11 // pred_region
          %s278 = ssub.s32 16, 16
          %279 = vsyncadd [#allocation13], %s278
          %s281 = sshll.u32 [#allocation14], 4
          %s282 = int_to_ptr.vmem [resolvable:$true] %s281
          %284 = dma.hbm_to_vmem [thread:$0]  %s6, 16, %s282, [#allocation13]
        $region36: #{basic_block.1} parent=11 // pred_fallthru
          _
      $region12: #{basic_block.1} parent=5 // pred_fallthru
        _
      %p285 = scmp.lt.s32.totalorder %s22, 2
      // Predicated region
      $region37: #{basic_block.1} parent=5 // pred_check
        %p286 = pneg %p285
      $region38: #{basic_block.1} parent=5 // pred_check_branch
        %288 = sbr.rel (%p286) target = $region40
      $region39: #{basic_block.1} parent=5 // pred_region
        // Predicated region
        $region41: #{basic_block.1} parent=39 // pred_check
          %p289 = pneg %p42
        $region42: #{basic_block.1} parent=39 // pred_check_branch
          %291 = sbr.rel (%p289) target = $region44
        $region43: #{basic_block.1} parent=39 // pred_region
          %s292 = sand.u32 %s32, 1
          %s293 = scalar_lea.sflag [#allocation4], %s292
          %s294 = sand.u32 %s32, 1
          %s295 = smul.addr %s294, 256
          %s296 = scalar_lea.vmem [#allocation3], %s295
          %s298 = ssub.s32 4096, 4096
          %299 = vsyncadd %s293, %s298
          %s300 = smul.addr %s22, 32
          %s301 = smul.addr %s300, 128
          %s302 = scalar_lea.hbm %s0, %s301
          %s303 = sshll.u32 %s296, 4
          %s304 = int_to_ptr.vmem [resolvable:$true] %s303
          %309 = dma.hbm_to_vmem [thread:$0]  %s302, 4096, %s304, %s293, 128, 128, 8
        $region44: #{basic_block.1} parent=39 // pred_fallthru
          _
      $region40: #{basic_block.1} parent=5 // pred_fallthru
        _
      %p310 = scmp.le.s32.totalorder 1, %s22
      %p311 = scmp.lt.s32.totalorder %s22, 3
      %p312 = pnand %p310, %p311
      %p313 = pneg %p312
      // Predicated region
      $region45: #{basic_block.1} parent=5 // pred_check
        _
      $region46: #{basic_block.1} parent=5 // pred_check_branch
        %315 = sbr.rel (%p312) target = $region48
      $region47: #{basic_block.1} parent=5 // pred_region
        %s316 = ssub.s32 %s22, 1
        %s317 = sand.u32 %s35, 1
        %s318 = scalar_lea.sflag [#allocation4], %s317
        %s319 = sand.u32 %s35, 1
        %s320 = smul.addr %s319, 256
        %s321 = scalar_lea.vmem [#allocation3], %s320
        // Predicated region
        $region49: #{basic_block.1} parent=47 // pred_check
          %p322 = pneg %p48
        $region50: #{basic_block.1} parent=47 // pred_check_branch
          %324 = sbr.rel (%p322) target = $region52
        $region51: #{basic_block.1} parent=47 // pred_region
          %325 = dma.done %s318, 4096
        $region52: #{basic_block.1} parent=47 // pred_fallthru
          _
        // Predicated region
        $region53: #{basic_block.1} parent=47 // pred_check
          %p326 = pneg %p69
        $region54: #{basic_block.1} parent=47 // pred_check_branch
          %328 = sbr.rel (%p326) target = $region56
        $region55: #{basic_block.1} parent=47 // pred_region
          %329 = dma.done [#allocation7], 18432
        $region56: #{basic_block.1} parent=47 // pred_fallthru
          _
        // Predicated region
        $region57: #{basic_block.1} parent=47 // pred_check
          %p330 = pneg %p90
        $region58: #{basic_block.1} parent=47 // pred_check_branch
          %332 = sbr.rel (%p330) target = $region60
        $region59: #{basic_block.1} parent=47 // pred_region
          %333 = dma.done [#allocation7], 18432
        $region60: #{basic_block.1} parent=47 // pred_fallthru
          _
        // Predicated region
        $region61: #{basic_block.1} parent=47 // pred_check
          %p334 = pneg %p111
        $region62: #{basic_block.1} parent=47 // pred_check_branch
          %336 = sbr.rel (%p334) target = $region64
        $region63: #{basic_block.1} parent=47 // pred_region
          %337 = dma.done [#allocation10], 16
        $region64: #{basic_block.1} parent=47 // pred_fallthru
          _
        // Predicated region
        $region65: #{basic_block.1} parent=47 // pred_check
          %p338 = pneg %p132
        $region66: #{basic_block.1} parent=47 // pred_check_branch
          %340 = sbr.rel (%p338) target = $region68
        $region67: #{basic_block.1} parent=47 // pred_region
          %341 = dma.done [#allocation10], 16
        $region68: #{basic_block.1} parent=47 // pred_fallthru
          _
        // Predicated region
        $region69: #{basic_block.1} parent=47 // pred_check
          %p342 = pneg %p153
        $region70: #{basic_block.1} parent=47 // pred_check_branch
          %344 = sbr.rel (%p342) target = $region72
        $region71: #{basic_block.1} parent=47 // pred_region
          %345 = dma.done [#allocation13], 16
        $region72: #{basic_block.1} parent=47 // pred_fallthru
          _
        // Predicated region
        $region73: #{basic_block.1} parent=47 // pred_check
          %p346 = pneg %p174
        $region74: #{basic_block.1} parent=47 // pred_check_branch
          %348 = sbr.rel (%p346) target = $region76
        $region75: #{basic_block.1} parent=47 // pred_region
          %349 = dma.done [#allocation13], 16
        $region76: #{basic_block.1} parent=47 // pred_fallthru
          _
        %s350 = sand.u32 %s35, 1
        %s351 = scalar_lea.sflag [#allocation4], %s350
        %s352 = sand.u32 %s35, 1
        %s353 = smul.addr %s352, 256
        %s354 = scalar_lea.vmem [#allocation3], %s353
        %p355 = pneg %p48
        %p356 = pneg %p45
        %p357 = pneg %p69
        %p358 = pneg %p66
        %p359 = pneg %p90
        %p360 = pneg %p87
        %p361 = pneg %p111
        %p362 = pneg %p108
        %p363 = pneg %p132
        %p364 = pneg %p129
        %p365 = pneg %p153
        %p366 = pneg %p150
        %p367 = pneg %p174
        %p368 = pneg %p171
        %p369 = pneg %p200
        %p370 = pneg %p197
        %s371 = sand.u32 %s187, 1
        %s372 = scalar_lea.sflag [#allocation5], %s371
        %s373 = sand.u32 %s187, 1
        %s374 = smul.addr %s373, 256
        %s375 = scalar_lea.vmem [#allocation15], %s374
        %v376 = vld [vmem:[#allocation9] sm:$0x1]
        %v377 = vld [vmem:[#allocation11] sm:$0x1]
        %v378 = vld [vmem:[#allocation12] sm:$0x1]
        %v379 = vld [vmem:[#allocation14] sm:$0x1]
        %380 = vst [vmem:[#allocation2] sm:$0xff] 0.0
        %381 = vst [vmem:[#allocation2 + $0x8] sm:$0xff] 0.0
        %382 = vst [vmem:[#allocation2 + $0x10] sm:$0xff] 0.0
        %383 = vst [vmem:[#allocation2 + $0x18] sm:$0xff] 0.0
        %384 = vst [vmem:[#allocation2 + $0x20] sm:$0xff] 0.0
        %385 = vst [vmem:[#allocation2 + $0x28] sm:$0xff] 0.0
        %s386 = scalar_lea.vmem [#allocation2], 816
        %387 = vst [vmem:[%s386] sm:$0xff] 0.0
        %388 = vst [vmem:[%s386 + $0x8] sm:$0xff] 0.0
        %389 = vst [vmem:[%s386 + $0x10] sm:$0xff] 0.0
        %390 = vst [vmem:[%s386 + $0x18] sm:$0xff] 0.0
        %391 = vst [vmem:[%s386 + $0x20] sm:$0xff] 0.0
        %392 = vst [vmem:[%s386 + $0x28] sm:$0xff] 0.0
        %v393 = vld [vmem:[%s321] sm:$0xff]
        %v394 = vld [vmem:[%s321 + $0x8] sm:$0xff]
        %v395 = vld [vmem:[%s321 + $0x10] sm:$0xff]
        %v396 = vld [vmem:[%s321 + $0x18] sm:$0xff]
        %v397 = vld [vmem:[%s321 + $0x20] sm:$0xff]
        %v398 = vld [vmem:[%s321 + $0x28] sm:$0xff]
        %v399 = vld [vmem:[%s321 + $0x30] sm:$0xff]
        %v400 = vld [vmem:[%s321 + $0x38] sm:$0xff]
        %v401 = vld [vmem:[%s321 + $0x40] sm:$0xff]
        %v402 = vld [vmem:[%s321 + $0x48] sm:$0xff]
        %v403 = vld [vmem:[%s321 + $0x50] sm:$0xff]
        %v404 = vld [vmem:[%s321 + $0x58] sm:$0xff]
        %v405 = vld [vmem:[%s321 + $0x60] sm:$0xff]
        %v406 = vld [vmem:[%s321 + $0x68] sm:$0xff]
        %v407 = vld [vmem:[%s321 + $0x70] sm:$0xff]
        %v408 = vld [vmem:[%s321 + $0x78] sm:$0xff]
        %v409 = vld [vmem:[%s321 + $0x80] sm:$0xff]
        %v410 = vld [vmem:[%s321 + $0x88] sm:$0xff]
        %v411 = vld [vmem:[%s321 + $0x90] sm:$0xff]
        %v412 = vld [vmem:[%s321 + $0x98] sm:$0xff]
        %v413 = vld [vmem:[%s321 + $0xa0] sm:$0xff]
        %v414 = vld [vmem:[%s321 + $0xa8] sm:$0xff]
        %v415 = vld [vmem:[%s321 + $0xb0] sm:$0xff]
        %v416 = vld [vmem:[%s321 + $0xb8] sm:$0xff]
        %v417 = vld [vmem:[%s321 + $0xc0] sm:$0xff]
        %v418 = vld [vmem:[%s321 + $0xc8] sm:$0xff]
        %v419 = vld [vmem:[%s321 + $0xd0] sm:$0xff]
        %v420 = vld [vmem:[%s321 + $0xd8] sm:$0xff]
        %v421 = vld [vmem:[%s321 + $0xe0] sm:$0xff]
        %v422 = vld [vmem:[%s321 + $0xe8] sm:$0xff]
        %v423 = vld [vmem:[%s321 + $0xf0] sm:$0xff]
        %v424 = vld [vmem:[%s321 + $0xf8] sm:$0xff]
        %vm457 = vcmask 1040384
        %v458 = vrot.slane %v393, 7
        %v459 = vrot.slane %v394, 7
        %v460 = vsel %vm457, %v458, %v459
        %v461 = vrot.slane %v395, 7
        %v462 = vrot.slane %v396, 7
        %v463 = vsel %vm457, %v461, %v462
        %v464 = vrot.slane %v397, 7
        %v465 = vrot.slane %v398, 7
        %v466 = vsel %vm457, %v464, %v465
        %v467 = vrot.slane %v399, 7
        %v468 = vrot.slane %v400, 7
        %v469 = vsel %vm457, %v467, %v468
        %v470 = vrot.slane %v401, 7
        %v471 = vrot.slane %v402, 7
        %v472 = vsel %vm457, %v470, %v471
        %v473 = vrot.slane %v403, 7
        %v474 = vrot.slane %v404, 7
        %v475 = vsel %vm457, %v473, %v474
        %v476 = vrot.slane %v405, 7
        %v477 = vrot.slane %v406, 7
        %v478 = vsel %vm457, %v476, %v477
        %v479 = vrot.slane %v407, 7
        %v480 = vrot.slane %v408, 7
        %v481 = vsel %vm457, %v479, %v480
        %v482 = vrot.slane %v409, 7
        %v483 = vrot.slane %v410, 7
        %v484 = vsel %vm457, %v482, %v483
        %v485 = vrot.slane %v411, 7
        %v486 = vrot.slane %v412, 7
        %v487 = vsel %vm457, %v485, %v486
        %v488 = vrot.slane %v413, 7
        %v489 = vrot.slane %v414, 7
        %v490 = vsel %vm457, %v488, %v489
        %v491 = vrot.slane %v415, 7
        %v492 = vrot.slane %v416, 7
        %v493 = vsel %vm457, %v491, %v492
        %v494 = vrot.slane %v417, 7
        %v495 = vrot.slane %v418, 7
        %v496 = vsel %vm457, %v494, %v495
        %v497 = vrot.slane %v419, 7
        %v498 = vrot.slane %v420, 7
        %v499 = vsel %vm457, %v497, %v498
        %v500 = vrot.slane %v421, 7
        %v501 = vrot.slane %v422, 7
        %v502 = vsel %vm457, %v500, %v501
        %v503 = vrot.slane %v423, 7
        %v504 = vrot.slane %v424, 7
        %v505 = vsel %vm457, %v503, %v504
        %v538 = vsel %vm457, 0.0, %v458
        %v539 = vsel %vm457, 0.0, %v461
        %v540 = vsel %vm457, 0.0, %v464
        %v541 = vsel %vm457, 0.0, %v467
        %v542 = vsel %vm457, 0.0, %v470
        %v543 = vsel %vm457, 0.0, %v473
        %v544 = vsel %vm457, 0.0, %v476
        %v545 = vsel %vm457, 0.0, %v479
        %v546 = vsel %vm457, 0.0, %v482
        %v547 = vsel %vm457, 0.0, %v485
        %v548 = vsel %vm457, 0.0, %v488
        %v549 = vsel %vm457, 0.0, %v491
        %v550 = vsel %vm457, 0.0, %v494
        %v551 = vsel %vm457, 0.0, %v497
        %v552 = vsel %vm457, 0.0, %v500
        %v553 = vsel %vm457, 0.0, %v503
        %vm554 = vcmask 1046528
        %v555 = vrot.slane %v393, 1
        %v556 = vrot.slane %v394, 1
        %v557 = vsel %vm554, %v555, %v556
        %v558 = vrot.slane %v395, 1
        %v559 = vrot.slane %v396, 1
        %v560 = vsel %vm554, %v558, %v559
        %v561 = vrot.slane %v397, 1
        %v562 = vrot.slane %v398, 1
        %v563 = vsel %vm554, %v561, %v562
        %v564 = vrot.slane %v399, 1
        %v565 = vrot.slane %v400, 1
        %v566 = vsel %vm554, %v564, %v565
        %v567 = vrot.slane %v401, 1
        %v568 = vrot.slane %v402, 1
        %v569 = vsel %vm554, %v567, %v568
        %v570 = vrot.slane %v403, 1
        %v571 = vrot.slane %v404, 1
        %v572 = vsel %vm554, %v570, %v571
        %v573 = vrot.slane %v405, 1
        %v574 = vrot.slane %v406, 1
        %v575 = vsel %vm554, %v573, %v574
        %v576 = vrot.slane %v407, 1
        %v577 = vrot.slane %v408, 1
        %v578 = vsel %vm554, %v576, %v577
        %v579 = vrot.slane %v409, 1
        %v580 = vrot.slane %v410, 1
        %v581 = vsel %vm554, %v579, %v580
        %v582 = vrot.slane %v411, 1
        %v583 = vrot.slane %v412, 1
        %v584 = vsel %vm554, %v582, %v583
        %v585 = vrot.slane %v413, 1
        %v586 = vrot.slane %v414, 1
        %v587 = vsel %vm554, %v585, %v586
        %v588 = vrot.slane %v415, 1
        %v589 = vrot.slane %v416, 1
        %v590 = vsel %vm554, %v588, %v589
        %v591 = vrot.slane %v417, 1
        %v592 = vrot.slane %v418, 1
        %v593 = vsel %vm554, %v591, %v592
        %v594 = vrot.slane %v419, 1
        %v595 = vrot.slane %v420, 1
        %v596 = vsel %vm554, %v594, %v595
        %v597 = vrot.slane %v421, 1
        %v598 = vrot.slane %v422, 1
        %v599 = vsel %vm554, %v597, %v598
        %v600 = vrot.slane %v423, 1
        %v601 = vrot.slane %v424, 1
        %v602 = vsel %vm554, %v600, %v601
        %v635 = vsel %vm554, %v556, 0.0
        %v636 = vsel %vm554, %v559, 0.0
        %v637 = vsel %vm554, %v562, 0.0
        %v638 = vsel %vm554, %v565, 0.0
        %v639 = vsel %vm554, %v568, 0.0
        %v640 = vsel %vm554, %v571, 0.0
        %v641 = vsel %vm554, %v574, 0.0
        %v642 = vsel %vm554, %v577, 0.0
        %v643 = vsel %vm554, %v580, 0.0
        %v644 = vsel %vm554, %v583, 0.0
        %v645 = vsel %vm554, %v586, 0.0
        %v646 = vsel %vm554, %v589, 0.0
        %v647 = vsel %vm554, %v592, 0.0
        %v648 = vsel %vm554, %v595, 0.0
        %v649 = vsel %vm554, %v598, 0.0
        %v650 = vsel %vm554, %v601, 0.0
        %s651 = scalar_lea.vmem [#allocation2], 48
        %652 = vst [vmem:[%s651] sm:$0xff] %v538
        %653 = vst [vmem:[%s651 + $0x18] sm:$0xff] %v460
        %654 = vst [vmem:[%s651 + $0x30] sm:$0xff] %v539
        %655 = vst [vmem:[%s651 + $0x48] sm:$0xff] %v463
        %656 = vst [vmem:[%s651 + $0x60] sm:$0xff] %v540
        %657 = vst [vmem:[%s651 + $0x78] sm:$0xff] %v466
        %658 = vst [vmem:[%s651 + $0x90] sm:$0xff] %v541
        %659 = vst [vmem:[%s651 + $0xa8] sm:$0xff] %v469
        %660 = vst [vmem:[%s651 + $0xc0] sm:$0xff] %v542
        %661 = vst [vmem:[%s651 + $0xd8] sm:$0xff] %v472
        %662 = vst [vmem:[%s651 + $0xf0] sm:$0xff] %v543
        %663 = vst [vmem:[%s651 + $0x108] sm:$0xff] %v475
        %664 = vst [vmem:[%s651 + $0x120] sm:$0xff] %v544
        %665 = vst [vmem:[%s651 + $0x138] sm:$0xff] %v478
        %666 = vst [vmem:[%s651 + $0x150] sm:$0xff] %v545
        %667 = vst [vmem:[%s651 + $0x168] sm:$0xff] %v481
        %668 = vst [vmem:[%s651 + $0x180] sm:$0xff] %v546
        %669 = vst [vmem:[%s651 + $0x198] sm:$0xff] %v484
        %670 = vst [vmem:[%s651 + $0x1b0] sm:$0xff] %v547
        %671 = vst [vmem:[%s651 + $0x1c8] sm:$0xff] %v487
        %672 = vst [vmem:[%s651 + $0x1e0] sm:$0xff] %v548
        %673 = vst [vmem:[%s651 + $0x1f8] sm:$0xff] %v490
        %674 = vst [vmem:[%s651 + $0x210] sm:$0xff] %v549
        %675 = vst [vmem:[%s651 + $0x228] sm:$0xff] %v493
        %676 = vst [vmem:[%s651 + $0x240] sm:$0xff] %v550
        %677 = vst [vmem:[%s651 + $0x258] sm:$0xff] %v496
        %678 = vst [vmem:[%s651 + $0x270] sm:$0xff] %v551
        %679 = vst [vmem:[%s651 + $0x288] sm:$0xff] %v499
        %680 = vst [vmem:[%s651 + $0x2a0] sm:$0xff] %v552
        %681 = vst [vmem:[%s651 + $0x2b8] sm:$0xff] %v502
        %682 = vst [vmem:[%s651 + $0x2d0] sm:$0xff] %v553
        %683 = vst [vmem:[%s651 + $0x2e8] sm:$0xff] %v505
        %684 = vst [vmem:[%s651 + $0x8] sm:$0xff] %v393
        %685 = vst [vmem:[%s651 + $0x20] sm:$0xff] %v394
        %686 = vst [vmem:[%s651 + $0x38] sm:$0xff] %v395
        %687 = vst [vmem:[%s651 + $0x50] sm:$0xff] %v396
        %688 = vst [vmem:[%s651 + $0x68] sm:$0xff] %v397
        %689 = vst [vmem:[%s651 + $0x80] sm:$0xff] %v398
        %690 = vst [vmem:[%s651 + $0x98] sm:$0xff] %v399
        %691 = vst [vmem:[%s651 + $0xb0] sm:$0xff] %v400
        %692 = vst [vmem:[%s651 + $0xc8] sm:$0xff] %v401
        %693 = vst [vmem:[%s651 + $0xe0] sm:$0xff] %v402
        %694 = vst [vmem:[%s651 + $0xf8] sm:$0xff] %v403
        %695 = vst [vmem:[%s651 + $0x110] sm:$0xff] %v404
        %696 = vst [vmem:[%s651 + $0x128] sm:$0xff] %v405
        %697 = vst [vmem:[%s651 + $0x140] sm:$0xff] %v406
        %698 = vst [vmem:[%s651 + $0x158] sm:$0xff] %v407
        %699 = vst [vmem:[%s651 + $0x170] sm:$0xff] %v408
        %700 = vst [vmem:[%s651 + $0x188] sm:$0xff] %v409
        %701 = vst [vmem:[%s651 + $0x1a0] sm:$0xff] %v410
        %702 = vst [vmem:[%s651 + $0x1b8] sm:$0xff] %v411
        %703 = vst [vmem:[%s651 + $0x1d0] sm:$0xff] %v412
        %704 = vst [vmem:[%s651 + $0x1e8] sm:$0xff] %v413
        %705 = vst [vmem:[%s651 + $0x200] sm:$0xff] %v414
        %706 = vst [vmem:[%s651 + $0x218] sm:$0xff] %v415
        %707 = vst [vmem:[%s651 + $0x230] sm:$0xff] %v416
        %708 = vst [vmem:[%s651 + $0x248] sm:$0xff] %v417
        %709 = vst [vmem:[%s651 + $0x260] sm:$0xff] %v418
        %710 = vst [vmem:[%s651 + $0x278] sm:$0xff] %v419
        %711 = vst [vmem:[%s651 + $0x290] sm:$0xff] %v420
        %712 = vst [vmem:[%s651 + $0x2a8] sm:$0xff] %v421
        %713 = vst [vmem:[%s651 + $0x2c0] sm:$0xff] %v422
        %714 = vst [vmem:[%s651 + $0x2d8] sm:$0xff] %v423
        %715 = vst [vmem:[%s651 + $0x2f0] sm:$0xff] %v424
        %716 = vst [vmem:[%s651 + $0x10] sm:$0xff] %v557
        %717 = vst [vmem:[%s651 + $0x28] sm:$0xff] %v635
        %718 = vst [vmem:[%s651 + $0x40] sm:$0xff] %v560
        %719 = vst [vmem:[%s651 + $0x58] sm:$0xff] %v636
        %720 = vst [vmem:[%s651 + $0x70] sm:$0xff] %v563
        %721 = vst [vmem:[%s651 + $0x88] sm:$0xff] %v637
        %722 = vst [vmem:[%s651 + $0xa0] sm:$0xff] %v566
        %723 = vst [vmem:[%s651 + $0xb8] sm:$0xff] %v638
        %724 = vst [vmem:[%s651 + $0xd0] sm:$0xff] %v569
        %725 = vst [vmem:[%s651 + $0xe8] sm:$0xff] %v639
        %726 = vst [vmem:[%s651 + $0x100] sm:$0xff] %v572
        %727 = vst [vmem:[%s651 + $0x118] sm:$0xff] %v640
        %728 = vst [vmem:[%s651 + $0x130] sm:$0xff] %v575
        %729 = vst [vmem:[%s651 + $0x148] sm:$0xff] %v641
        %730 = vst [vmem:[%s651 + $0x160] sm:$0xff] %v578
        %731 = vst [vmem:[%s651 + $0x178] sm:$0xff] %v642
        %732 = vst [vmem:[%s651 + $0x190] sm:$0xff] %v581
        %733 = vst [vmem:[%s651 + $0x1a8] sm:$0xff] %v643
        %734 = vst [vmem:[%s651 + $0x1c0] sm:$0xff] %v584
        %735 = vst [vmem:[%s651 + $0x1d8] sm:$0xff] %v644
        %736 = vst [vmem:[%s651 + $0x1f0] sm:$0xff] %v587
        %737 = vst [vmem:[%s651 + $0x208] sm:$0xff] %v645
        %738 = vst [vmem:[%s651 + $0x220] sm:$0xff] %v590
        %739 = vst [vmem:[%s651 + $0x238] sm:$0xff] %v646
        %740 = vst [vmem:[%s651 + $0x250] sm:$0xff] %v593
        %741 = vst [vmem:[%s651 + $0x268] sm:$0xff] %v647
        %742 = vst [vmem:[%s651 + $0x280] sm:$0xff] %v596
        %743 = vst [vmem:[%s651 + $0x298] sm:$0xff] %v648
        %744 = vst [vmem:[%s651 + $0x2b0] sm:$0xff] %v599
        %745 = vst [vmem:[%s651 + $0x2c8] sm:$0xff] %v649
        %746 = vst [vmem:[%s651 + $0x2e0] sm:$0xff] %v602
        %747 = vst [vmem:[%s651 + $0x2f8] sm:$0xff] %v650
        %v748 = vld [vmem:[#allocation2] sm:$0xff]
        %v749 = vld [vmem:[#allocation2 + $0x8] sm:$0xff]
        %v750 = vld [vmem:[#allocation2 + $0x10] sm:$0xff]
        %v751 = vld [vmem:[#allocation2 + $0x18] sm:$0xff]
        %v752 = vld [vmem:[#allocation2 + $0x20] sm:$0xff]
        %v753 = vld [vmem:[#allocation2 + $0x28] sm:$0xff]
        %v754 = vld [vmem:[#allocation2 + $0x30] sm:$0xff]
        %v755 = vld [vmem:[#allocation2 + $0x38] sm:$0xff]
        %v756 = vld [vmem:[#allocation2 + $0x40] sm:$0xff]
        %v757 = vld [vmem:[#allocation2 + $0x48] sm:$0xff]
        %v758 = vld [vmem:[#allocation2 + $0x50] sm:$0xff]
        %v759 = vld [vmem:[#allocation2 + $0x58] sm:$0xff]
        %v760 = vld [vmem:[#allocation2 + $0x60] sm:$0xff]
        %v761 = vld [vmem:[#allocation2 + $0x68] sm:$0xff]
        %v762 = vld [vmem:[#allocation2 + $0x70] sm:$0xff]
        %v763 = vld [vmem:[#allocation2 + $0x78] sm:$0xff]
        %v764 = vld [vmem:[#allocation2 + $0x80] sm:$0xff]
        %v765 = vld [vmem:[#allocation2 + $0x88] sm:$0xff]
        %v766 = vld [vmem:[#allocation2 + $0x90] sm:$0xff]
        %v767 = vld [vmem:[#allocation2 + $0x98] sm:$0xff]
        %v768 = vld [vmem:[#allocation2 + $0xa0] sm:$0xff]
        %v769 = vld [vmem:[#allocation2 + $0xa8] sm:$0xff]
        %v770 = vld [vmem:[#allocation2 + $0xb0] sm:$0xff]
        %v771 = vld [vmem:[#allocation2 + $0xb8] sm:$0xff]
        %v772 = vld [vmem:[#allocation2 + $0xc0] sm:$0xff]
        %v773 = vld [vmem:[#allocation2 + $0xc8] sm:$0xff]
        %v774 = vld [vmem:[#allocation2 + $0xd0] sm:$0xff]
        %v775 = vld [vmem:[#allocation2 + $0xd8] sm:$0xff]
        %v776 = vld [vmem:[#allocation2 + $0xe0] sm:$0xff]
        %v777 = vld [vmem:[#allocation2 + $0xe8] sm:$0xff]
        %v778 = vld [vmem:[#allocation2 + $0xf0] sm:$0xff]
        %v779 = vld [vmem:[#allocation2 + $0xf8] sm:$0xff]
        %v780 = vld [vmem:[#allocation2 + $0x100] sm:$0xff]
        %v781 = vld [vmem:[#allocation2 + $0x108] sm:$0xff]
        %v782 = vld [vmem:[#allocation2 + $0x110] sm:$0xff]
        %v783 = vld [vmem:[#allocation2 + $0x118] sm:$0xff]
        %v784 = vld [vmem:[#allocation2 + $0x120] sm:$0xff]
        %v785 = vld [vmem:[#allocation2 + $0x128] sm:$0xff]
        %v786 = vld [vmem:[#allocation2 + $0x130] sm:$0xff]
        %v787 = vld [vmem:[#allocation2 + $0x138] sm:$0xff]
        %v788 = vld [vmem:[#allocation2 + $0x140] sm:$0xff]
        %v789 = vld [vmem:[#allocation2 + $0x148] sm:$0xff]
        %v790 = vld [vmem:[#allocation2 + $0x150] sm:$0xff]
        %v791 = vld [vmem:[#allocation2 + $0x158] sm:$0xff]
        %v792 = vld [vmem:[#allocation2 + $0x160] sm:$0xff]
        %v793 = vld [vmem:[#allocation2 + $0x168] sm:$0xff]
        %v794 = vld [vmem:[#allocation2 + $0x170] sm:$0xff]
        %v795 = vld [vmem:[#allocation2 + $0x178] sm:$0xff]
        %v796 = vld [vmem:[#allocation2 + $0x180] sm:$0xff]
        %v797 = vld [vmem:[#allocation2 + $0x188] sm:$0xff]
        %v798 = vld [vmem:[#allocation2 + $0x190] sm:$0xff]
        %v799 = vld [vmem:[#allocation2 + $0x198] sm:$0xff]
        %v800 = vld [vmem:[#allocation2 + $0x1a0] sm:$0xff]
        %v801 = vld [vmem:[#allocation2 + $0x1a8] sm:$0xff]
        %v802 = vld [vmem:[#allocation2 + $0x1b0] sm:$0xff]
        %v803 = vld [vmem:[#allocation2 + $0x1b8] sm:$0xff]
        %v804 = vld [vmem:[#allocation2 + $0x1c0] sm:$0xff]
        %v805 = vld [vmem:[#allocation2 + $0x1c8] sm:$0xff]
        %v806 = vld [vmem:[#allocation2 + $0x1d0] sm:$0xff]
        %v807 = vld [vmem:[#allocation2 + $0x1d8] sm:$0xff]
        %v808 = vld [vmem:[#allocation2 + $0x1e0] sm:$0xff]
        %v809 = vld [vmem:[#allocation2 + $0x1e8] sm:$0xff]
        %v810 = vld [vmem:[#allocation2 + $0x1f0] sm:$0xff]
        %v811 = vld [vmem:[#allocation2 + $0x1f8] sm:$0xff]
        %v812 = vld [vmem:[#allocation2 + $0x200] sm:$0xff]
        %v813 = vld [vmem:[#allocation2 + $0x208] sm:$0xff]
        %v814 = vld [vmem:[#allocation2 + $0x210] sm:$0xff]
        %v815 = vld [vmem:[#allocation2 + $0x218] sm:$0xff]
        %v816 = vld [vmem:[#allocation2 + $0x220] sm:$0xff]
        %v817 = vld [vmem:[#allocation2 + $0x228] sm:$0xff]
        %v818 = vld [vmem:[#allocation2 + $0x230] sm:$0xff]
        %v819 = vld [vmem:[#allocation2 + $0x238] sm:$0xff]
        %v820 = vld [vmem:[#allocation2 + $0x240] sm:$0xff]
        %v821 = vld [vmem:[#allocation2 + $0x248] sm:$0xff]
        %v822 = vld [vmem:[#allocation2 + $0x250] sm:$0xff]
        %v823 = vld [vmem:[#allocation2 + $0x258] sm:$0xff]
        %v824 = vld [vmem:[#allocation2 + $0x260] sm:$0xff]
        %v825 = vld [vmem:[#allocation2 + $0x268] sm:$0xff]
        %v826 = vld [vmem:[#allocation2 + $0x270] sm:$0xff]
        %v827 = vld [vmem:[#allocation2 + $0x278] sm:$0xff]
        %v828 = vld [vmem:[#allocation2 + $0x280] sm:$0xff]
        %v829 = vld [vmem:[#allocation2 + $0x288] sm:$0xff]
        %v830 = vld [vmem:[#allocation2 + $0x290] sm:$0xff]
        %v831 = vld [vmem:[#allocation2 + $0x298] sm:$0xff]
        %v832 = vld [vmem:[#allocation2 + $0x2a0] sm:$0xff]
        %v833 = vld [vmem:[#allocation2 + $0x2a8] sm:$0xff]
        %v834 = vld [vmem:[#allocation2 + $0x2b0] sm:$0xff]
        %v835 = vld [vmem:[#allocation2 + $0x2b8] sm:$0xff]
        %v836 = vld [vmem:[#allocation2 + $0x2c0] sm:$0xff]
        %v837 = vld [vmem:[#allocation2 + $0x2c8] sm:$0xff]
        %v838 = vld [vmem:[#allocation2 + $0x2d0] sm:$0xff]
        %v839 = vld [vmem:[#allocation2 + $0x2d8] sm:$0xff]
        %v840 = vld [vmem:[#allocation2 + $0x2e0] sm:$0xff]
        %v841 = vld [vmem:[#allocation2 + $0x2e8] sm:$0xff]
        %v842 = vld [vmem:[#allocation2 + $0x2f0] sm:$0xff]
        %v843 = vld [vmem:[#allocation2 + $0x2f8] sm:$0xff]
        %v844 = vld [vmem:[#allocation6] sm:$0xff]
        %v845 = vld [vmem:[#allocation6 + $0x8] sm:$0xff]
        %v846 = vld [vmem:[#allocation6 + $0x10] sm:$0xff]
        %v847 = vld [vmem:[#allocation6 + $0x18] sm:$0xff]
        %v848 = vld [vmem:[#allocation6 + $0x20] sm:$0xff]
        %v849 = vld [vmem:[#allocation6 + $0x28] sm:$0xff]
        %v850 = vld [vmem:[#allocation6 + $0x30] sm:$0xff]
        %v851 = vld [vmem:[#allocation6 + $0x38] sm:$0xff]
        %v852 = vld [vmem:[#allocation6 + $0x40] sm:$0xff]
        %v853 = vld [vmem:[#allocation6 + $0x48] sm:$0xff]
        %v854 = vld [vmem:[#allocation6 + $0x50] sm:$0xff]
        %v855 = vld [vmem:[#allocation6 + $0x58] sm:$0xff]
        %v856 = vld [vmem:[#allocation6 + $0x60] sm:$0xff]
        %v857 = vld [vmem:[#allocation6 + $0x68] sm:$0xff]
        %v858 = vld [vmem:[#allocation6 + $0x70] sm:$0xff]
        %v859 = vld [vmem:[#allocation6 + $0x78] sm:$0xff]
        %v860 = vld [vmem:[#allocation6 + $0x80] sm:$0xff]
        %v861 = vld [vmem:[#allocation6 + $0x88] sm:$0xff]
        %v862 = vld [vmem:[#allocation6 + $0x90] sm:$0xff]
        %v863 = vld [vmem:[#allocation6 + $0x98] sm:$0xff]
        %v864 = vld [vmem:[#allocation6 + $0xa0] sm:$0xff]
        %v865 = vld [vmem:[#allocation6 + $0xa8] sm:$0xff]
        %v866 = vld [vmem:[#allocation6 + $0xb0] sm:$0xff]
        %v867 = vld [vmem:[#allocation6 + $0xb8] sm:$0xff]
        %v868 = vld [vmem:[#allocation6 + $0xc0] sm:$0xff]
        %v869 = vld [vmem:[#allocation6 + $0xc8] sm:$0xff]
        %v870 = vld [vmem:[#allocation6 + $0xd0] sm:$0xff]
        %v871 = vld [vmem:[#allocation6 + $0xd8] sm:$0xff]
        %v872 = vld [vmem:[#allocation6 + $0xe0] sm:$0xff]
        %v873 = vld [vmem:[#allocation6 + $0xe8] sm:$0xff]
        %v874 = vld [vmem:[#allocation6 + $0xf0] sm:$0xff]
        %v875 = vld [vmem:[#allocation6 + $0xf8] sm:$0xff]
        %v876 = vld [vmem:[#allocation6 + $0x100] sm:$0xff]
        %v877 = vld [vmem:[#allocation6 + $0x108] sm:$0xff]
        %v878 = vld [vmem:[#allocation6 + $0x110] sm:$0xff]
        %v879 = vld [vmem:[#allocation6 + $0x118] sm:$0xff]
        %v880 = vld [vmem:[#allocation6 + $0x120] sm:$0xff]
        %v881 = vld [vmem:[#allocation6 + $0x128] sm:$0xff]
        %v882 = vld [vmem:[#allocation6 + $0x130] sm:$0xff]
        %v883 = vld [vmem:[#allocation6 + $0x138] sm:$0xff]
        %v884 = vld [vmem:[#allocation6 + $0x140] sm:$0xff]
        %v885 = vld [vmem:[#allocation6 + $0x148] sm:$0xff]
        %v886 = vld [vmem:[#allocation6 + $0x150] sm:$0xff]
        %v887 = vld [vmem:[#allocation6 + $0x158] sm:$0xff]
        %v888 = vld [vmem:[#allocation6 + $0x160] sm:$0xff]
        %v889 = vld [vmem:[#allocation6 + $0x168] sm:$0xff]
        %v890 = vld [vmem:[#allocation6 + $0x170] sm:$0xff]
        %v891 = vld [vmem:[#allocation6 + $0x178] sm:$0xff]
        %v892 = vld [vmem:[%s651] sm:$0xff]
        %v893 = vld [vmem:[%s651 + $0x8] sm:$0xff]
        %v894 = vld [vmem:[%s651 + $0x10] sm:$0xff]
        %v895 = vld [vmem:[%s651 + $0x18] sm:$0xff]
        %v896 = vld [vmem:[%s651 + $0x20] sm:$0xff]
        %v897 = vld [vmem:[%s651 + $0x28] sm:$0xff]
        %v898 = vld [vmem:[%s651 + $0x30] sm:$0xff]
        %v899 = vld [vmem:[%s651 + $0x38] sm:$0xff]
        %v900 = vld [vmem:[%s651 + $0x40] sm:$0xff]
        %v901 = vld [vmem:[%s651 + $0x48] sm:$0xff]
        %v902 = vld [vmem:[%s651 + $0x50] sm:$0xff]
        %v903 = vld [vmem:[%s651 + $0x58] sm:$0xff]
        %v904 = vld [vmem:[%s651 + $0x60] sm:$0xff]
        %v905 = vld [vmem:[%s651 + $0x68] sm:$0xff]
        %v906 = vld [vmem:[%s651 + $0x70] sm:$0xff]
        %v907 = vld [vmem:[%s651 + $0x78] sm:$0xff]
        %v908 = vld [vmem:[%s651 + $0x80] sm:$0xff]
        %v909 = vld [vmem:[%s651 + $0x88] sm:$0xff]
        %v910 = vld [vmem:[%s651 + $0x90] sm:$0xff]
        %v911 = vld [vmem:[%s651 + $0x98] sm:$0xff]
        %v912 = vld [vmem:[%s651 + $0xa0] sm:$0xff]
        %v913 = vld [vmem:[%s651 + $0xa8] sm:$0xff]
        %v914 = vld [vmem:[%s651 + $0xb0] sm:$0xff]
        %v915 = vld [vmem:[%s651 + $0xb8] sm:$0xff]
        %v916 = vld [vmem:[%s651 + $0xc0] sm:$0xff]
        %v917 = vld [vmem:[%s651 + $0xc8] sm:$0xff]
        %v918 = vld [vmem:[%s651 + $0xd0] sm:$0xff]
        %v919 = vld [vmem:[%s651 + $0xd8] sm:$0xff]
        %v920 = vld [vmem:[%s651 + $0xe0] sm:$0xff]
        %v921 = vld [vmem:[%s651 + $0xe8] sm:$0xff]
        %v922 = vld [vmem:[%s651 + $0xf0] sm:$0xff]
        %v923 = vld [vmem:[%s651 + $0xf8] sm:$0xff]
        %v924 = vld [vmem:[%s651 + $0x100] sm:$0xff]
        %v925 = vld [vmem:[%s651 + $0x108] sm:$0xff]
        %v926 = vld [vmem:[%s651 + $0x110] sm:$0xff]
        %v927 = vld [vmem:[%s651 + $0x118] sm:$0xff]
        %v928 = vld [vmem:[%s651 + $0x120] sm:$0xff]
        %v929 = vld [vmem:[%s651 + $0x128] sm:$0xff]
        %v930 = vld [vmem:[%s651 + $0x130] sm:$0xff]
        %v931 = vld [vmem:[%s651 + $0x138] sm:$0xff]
        %v932 = vld [vmem:[%s651 + $0x140] sm:$0xff]
        %v933 = vld [vmem:[%s651 + $0x148] sm:$0xff]
        %v934 = vld [vmem:[%s651 + $0x150] sm:$0xff]
        %v935 = vld [vmem:[%s651 + $0x158] sm:$0xff]
        %v936 = vld [vmem:[%s651 + $0x160] sm:$0xff]
        %v937 = vld [vmem:[%s651 + $0x168] sm:$0xff]
        %v938 = vld [vmem:[%s651 + $0x170] sm:$0xff]
        %v939 = vld [vmem:[%s651 + $0x178] sm:$0xff]
        %v940 = vld [vmem:[%s651 + $0x180] sm:$0xff]
        %v941 = vld [vmem:[%s651 + $0x188] sm:$0xff]
        %v942 = vld [vmem:[%s651 + $0x190] sm:$0xff]
        %v943 = vld [vmem:[%s651 + $0x198] sm:$0xff]
        %v944 = vld [vmem:[%s651 + $0x1a0] sm:$0xff]
        %v945 = vld [vmem:[%s651 + $0x1a8] sm:$0xff]
        %v946 = vld [vmem:[%s651 + $0x1b0] sm:$0xff]
        %v947 = vld [vmem:[%s651 + $0x1b8] sm:$0xff]
        %v948 = vld [vmem:[%s651 + $0x1c0] sm:$0xff]
        %v949 = vld [vmem:[%s651 + $0x1c8] sm:$0xff]
        %v950 = vld [vmem:[%s651 + $0x1d0] sm:$0xff]
        %v951 = vld [vmem:[%s651 + $0x1d8] sm:$0xff]
        %v952 = vld [vmem:[%s651 + $0x1e0] sm:$0xff]
        %v953 = vld [vmem:[%s651 + $0x1e8] sm:$0xff]
        %v954 = vld [vmem:[%s651 + $0x1f0] sm:$0xff]
        %v955 = vld [vmem:[%s651 + $0x1f8] sm:$0xff]
        %v956 = vld [vmem:[%s651 + $0x200] sm:$0xff]
        %v957 = vld [vmem:[%s651 + $0x208] sm:$0xff]
        %v958 = vld [vmem:[%s651 + $0x210] sm:$0xff]
        %v959 = vld [vmem:[%s651 + $0x218] sm:$0xff]
        %v960 = vld [vmem:[%s651 + $0x220] sm:$0xff]
        %v961 = vld [vmem:[%s651 + $0x228] sm:$0xff]
        %v962 = vld [vmem:[%s651 + $0x230] sm:$0xff]
        %v963 = vld [vmem:[%s651 + $0x238] sm:$0xff]
        %v964 = vld [vmem:[%s651 + $0x240] sm:$0xff]
        %v965 = vld [vmem:[%s651 + $0x248] sm:$0xff]
        %v966 = vld [vmem:[%s651 + $0x250] sm:$0xff]
        %v967 = vld [vmem:[%s651 + $0x258] sm:$0xff]
        %v968 = vld [vmem:[%s651 + $0x260] sm:$0xff]
        %v969 = vld [vmem:[%s651 + $0x268] sm:$0xff]
        %v970 = vld [vmem:[%s651 + $0x270] sm:$0xff]
        %v971 = vld [vmem:[%s651 + $0x278] sm:$0xff]
        %v972 = vld [vmem:[%s651 + $0x280] sm:$0xff]
        %v973 = vld [vmem:[%s651 + $0x288] sm:$0xff]
        %v974 = vld [vmem:[%s651 + $0x290] sm:$0xff]
        %v975 = vld [vmem:[%s651 + $0x298] sm:$0xff]
        %v976 = vld [vmem:[%s651 + $0x2a0] sm:$0xff]
        %v977 = vld [vmem:[%s651 + $0x2a8] sm:$0xff]
        %v978 = vld [vmem:[%s651 + $0x2b0] sm:$0xff]
        %v979 = vld [vmem:[%s651 + $0x2b8] sm:$0xff]
        %v980 = vld [vmem:[%s651 + $0x2c0] sm:$0xff]
        %v981 = vld [vmem:[%s651 + $0x2c8] sm:$0xff]
        %v982 = vld [vmem:[%s651 + $0x2d0] sm:$0xff]
        %v983 = vld [vmem:[%s651 + $0x2d8] sm:$0xff]
        %v984 = vld [vmem:[%s651 + $0x2e0] sm:$0xff]
        %v985 = vld [vmem:[%s651 + $0x2e8] sm:$0xff]
        %v986 = vld [vmem:[%s651 + $0x2f0] sm:$0xff]
        %v987 = vld [vmem:[%s651 + $0x2f8] sm:$0xff]
        %s988 = scalar_lea.vmem [#allocation6], 384
        %v989 = vld [vmem:[%s988] sm:$0xff]
        %v990 = vld [vmem:[%s988 + $0x8] sm:$0xff]
        %v991 = vld [vmem:[%s988 + $0x10] sm:$0xff]
        %v992 = vld [vmem:[%s988 + $0x18] sm:$0xff]
        %v993 = vld [vmem:[%s988 + $0x20] sm:$0xff]
        %v994 = vld [vmem:[%s988 + $0x28] sm:$0xff]
        %v995 = vld [vmem:[%s988 + $0x30] sm:$0xff]
        %v996 = vld [vmem:[%s988 + $0x38] sm:$0xff]
        %v997 = vld [vmem:[%s988 + $0x40] sm:$0xff]
        %v998 = vld [vmem:[%s988 + $0x48] sm:$0xff]
        %v999 = vld [vmem:[%s988 + $0x50] sm:$0xff]
        %v1000 = vld [vmem:[%s988 + $0x58] sm:$0xff]
        %v1001 = vld [vmem:[%s988 + $0x60] sm:$0xff]
        %v1002 = vld [vmem:[%s988 + $0x68] sm:$0xff]
        %v1003 = vld [vmem:[%s988 + $0x70] sm:$0xff]
        %v1004 = vld [vmem:[%s988 + $0x78] sm:$0xff]
        %v1005 = vld [vmem:[%s988 + $0x80] sm:$0xff]
        %v1006 = vld [vmem:[%s988 + $0x88] sm:$0xff]
        %v1007 = vld [vmem:[%s988 + $0x90] sm:$0xff]
        %v1008 = vld [vmem:[%s988 + $0x98] sm:$0xff]
        %v1009 = vld [vmem:[%s988 + $0xa0] sm:$0xff]
        %v1010 = vld [vmem:[%s988 + $0xa8] sm:$0xff]
        %v1011 = vld [vmem:[%s988 + $0xb0] sm:$0xff]
        %v1012 = vld [vmem:[%s988 + $0xb8] sm:$0xff]
        %v1013 = vld [vmem:[%s988 + $0xc0] sm:$0xff]
        %v1014 = vld [vmem:[%s988 + $0xc8] sm:$0xff]
        %v1015 = vld [vmem:[%s988 + $0xd0] sm:$0xff]
        %v1016 = vld [vmem:[%s988 + $0xd8] sm:$0xff]
        %v1017 = vld [vmem:[%s988 + $0xe0] sm:$0xff]
        %v1018 = vld [vmem:[%s988 + $0xe8] sm:$0xff]
        %v1019 = vld [vmem:[%s988 + $0xf0] sm:$0xff]
        %v1020 = vld [vmem:[%s988 + $0xf8] sm:$0xff]
        %v1021 = vld [vmem:[%s988 + $0x100] sm:$0xff]
        %v1022 = vld [vmem:[%s988 + $0x108] sm:$0xff]
        %v1023 = vld [vmem:[%s988 + $0x110] sm:$0xff]
        %v1024 = vld [vmem:[%s988 + $0x118] sm:$0xff]
        %v1025 = vld [vmem:[%s988 + $0x120] sm:$0xff]
        %v1026 = vld [vmem:[%s988 + $0x128] sm:$0xff]
        %v1027 = vld [vmem:[%s988 + $0x130] sm:$0xff]
        %v1028 = vld [vmem:[%s988 + $0x138] sm:$0xff]
        %v1029 = vld [vmem:[%s988 + $0x140] sm:$0xff]
        %v1030 = vld [vmem:[%s988 + $0x148] sm:$0xff]
        %v1031 = vld [vmem:[%s988 + $0x150] sm:$0xff]
        %v1032 = vld [vmem:[%s988 + $0x158] sm:$0xff]
        %v1033 = vld [vmem:[%s988 + $0x160] sm:$0xff]
        %v1034 = vld [vmem:[%s988 + $0x168] sm:$0xff]
        %v1035 = vld [vmem:[%s988 + $0x170] sm:$0xff]
        %v1036 = vld [vmem:[%s988 + $0x178] sm:$0xff]
        %1037 = vmatprep.subr.mxu0 0.0
        %1038 = vmatpush1.msra.mxu0 %v989
        %1039 = vmatprep.subr.mxu0 0.0
        %1040 = vmatpush1.msra.mxu0 %v990
        %1041 = vmatprep.subr.mxu0 0.0
        %1042 = vmatpush1.msra.mxu0 %v991
        %1043 = vmatprep.subr.mxu0 0.0
        %1044 = vmatpush1.msra.mxu0 %v992
        %1045 = vmatprep.subr.mxu0 0.0
        %1046 = vmatpush1.msra.mxu0 %v993
        %1047 = vmatprep.subr.mxu0 0.0
        %1048 = vmatpush1.msra.mxu0 %v994
        %1049 = vmatprep.subr.mxu0 0.0
        %1050 = vmatpush1.msra.mxu0 %v995
        %1051 = vmatprep.subr.mxu0 0.0
        %1052 = vmatpush1.msra.mxu0 %v996
        %1053 = vmatprep.subr.mxu0 0.0
        %1054 = vmatpush1.msra.mxu0 %v997
        %1055 = vmatprep.subr.mxu0 0.0
        %1056 = vmatpush1.msra.mxu0 %v998
        %1057 = vmatprep.subr.mxu0 0.0
        %1058 = vmatpush1.msra.mxu0 %v999
        %1059 = vmatprep.subr.mxu0 0.0
        %1060 = vmatpush1.msra.mxu0 %v1000
        %1061 = vmatprep.subr.mxu0 0.0
        %1062 = vmatpush1.msra.mxu0 %v1001
        %1063 = vmatprep.subr.mxu0 0.0
        %1064 = vmatpush1.msra.mxu0 %v1002
        %1065 = vmatprep.subr.mxu0 0.0
        %1066 = vmatpush1.msra.mxu0 %v1003
        %1067 = vmatprep.subr.mxu0 0.0
        %1068 = vmatpush1.msra.mxu0 %v1004
        %1069 = vmatprep.subr.mxu0 0.0
        %1070 = vmatpush1.msra.mxu0 %v1005
        %1071 = vmatprep.subr.mxu0 0.0
        %1072 = vmatpush1.msra.mxu0 %v1006
        %1073 = vmatprep.subr.mxu0 0.0
        %1074 = vmatpush1.msra.mxu0 %v1007
        %1075 = vmatprep.subr.mxu0 0.0
        %1076 = vmatpush1.msra.mxu0 %v1008
        %1077 = vmatprep.subr.mxu0 0.0
        %1078 = vmatpush1.msra.mxu0 %v1009
        %1079 = vmatprep.subr.mxu0 0.0
        %1080 = vmatpush1.msra.mxu0 %v1010
        %1081 = vmatprep.subr.mxu0 0.0
        %1082 = vmatpush1.msra.mxu0 %v1011
        %1083 = vmatprep.subr.mxu0 0.0
        %1084 = vmatpush1.msra.mxu0 %v1012
        %1085 = vmatprep.subr.mxu0 0.0
        %1086 = vmatpush1.msra.mxu0 %v1013
        %1087 = vmatprep.subr.mxu0 0.0
        %1088 = vmatpush1.msra.mxu0 %v1014
        %1089 = vmatprep.subr.mxu0 0.0
        %1090 = vmatpush1.msra.mxu0 %v1015
        %1091 = vmatprep.subr.mxu0 0.0
        %1092 = vmatpush1.msra.mxu0 %v1016
        %1093 = vmatprep.subr.mxu0 0.0
        %1094 = vmatpush1.msra.mxu0 %v1017
        %1095 = vmatprep.subr.mxu0 0.0
        %1096 = vmatpush1.msra.mxu0 %v1018
        %1097 = vmatprep.subr.mxu0 0.0
        %1098 = vmatpush1.msra.mxu0 %v1019
        %1099 = vmatprep.subr.mxu0 0.0
        %1100 = vmatpush1.msra.mxu0 %v1020
        %1101 = vmatprep.mubr.f32.mxu0 %v893
        %1102 = vmatmul.mubr.f32.gmra.mrb[0].mxu0 %v892
        %v1103 = vpop.f32.mrb[0].mxu0
        %v1104 = vadd.f32 0.0, %v1103
        %v1105 = vpop.f32.mrb[0].mxu0
        %1106 = vmatprep.mubr.f32.mxu0 %v896
        %1107 = vmatmul.mubr.f32.gmra.mrb[0].mxu0 %v895
        %v1108 = vpop.f32.mrb[0].mxu0
        %v1109 = vadd.f32 0.0, %v1108
        %v1110 = vpop.f32.mrb[0].mxu0
        %1111 = vmatprep.mubr.f32.mxu0 %v899
        %1112 = vmatmul.mubr.f32.gmra.mrb[0].mxu0 %v898
        %v1113 = vpop.f32.mrb[0].mxu0
        %v1114 = vadd.f32 0.0, %v1113
        %v1115 = vpop.f32.mrb[0].mxu0
        %1116 = vmatprep.mubr.f32.mxu0 %v902
        %1117 = vmatmul.mubr.f32.gmra.mrb[0].mxu0 %v901
        %v1118 = vpop.f32.mrb[0].mxu0
        %v1119 = vadd.f32 0.0, %v1118
        %v1120 = vpop.f32.mrb[0].mxu0
        %1121 = vmatprep.mubr.f32.mxu0 %v905
        %1122 = vmatmul.mubr.f32.gmra.mrb[0].mxu0 %v904
        %v1123 = vpop.f32.mrb[0].mxu0
        %v1124 = vadd.f32 0.0, %v1123
        %v1125 = vpop.f32.mrb[0].mxu0
        %1126 = vmatprep.mubr.f32.mxu0 %v908
        %1127 = vmatmul.mubr.f32.gmra.mrb[0].mxu0 %v907
        %v1128 = vpop.f32.mrb[0].mxu0
        %v1129 = vadd.f32 0.0, %v1128
        %v1130 = vpop.f32.mrb[0].mxu0
        %1131 = vmatprep.mubr.f32.mxu0 %v911
        %1132 = vmatmul.mubr.f32.gmra.mrb[0].mxu0 %v910
        %v1133 = vpop.f32.mrb[0].mxu0
        %v1134 = vadd.f32 0.0, %v1133
        %v1135 = vpop.f32.mrb[0].mxu0
        %1136 = vmatprep.mubr.f32.mxu0 %v914
        %1137 = vmatmul.mubr.f32.gmra.mrb[0].mxu0 %v913
        %v1138 = vpop.f32.mrb[0].mxu0
        %v1139 = vadd.f32 0.0, %v1138
        %v1140 = vpop.f32.mrb[0].mxu0
        %1141 = vmatprep.mubr.f32.mxu0 %v917
        %1142 = vmatmul.mubr.f32.gmra.mrb[0].mxu0 %v916
        %v1143 = vpop.f32.mrb[0].mxu0
        %v1144 = vadd.f32 0.0, %v1143
        %v1145 = vpop.f32.mrb[0].mxu0
        %1146 = vmatprep.mubr.f32.mxu0 %v920
        %1147 = vmatmul.mubr.f32.gmra.mrb[0].mxu0 %v919
        %v1148 = vpop.f32.mrb[0].mxu0
        %v1149 = vadd.f32 0.0, %v1148
        %v1150 = vpop.f32.mrb[0].mxu0
        %1151 = vmatprep.mubr.f32.mxu0 %v923
        %1152 = vmatmul.mubr.f32.gmra.mrb[0].mxu0 %v922
        %v1153 = vpop.f32.mrb[0].mxu0
        %v1154 = vadd.f32 0.0, %v1153
        %v1155 = vpop.f32.mrb[0].mxu0
        %1156 = vmatprep.mubr.f32.mxu0 %v926
        %1157 = vmatmul.mubr.f32.gmra.mrb[0].mxu0 %v925
        %v1158 = vpop.f32.mrb[0].mxu0
        %v1159 = vadd.f32 0.0, %v1158
        %v1160 = vpop.f32.mrb[0].mxu0
        %1161 = vmatprep.mubr.f32.mxu0 %v929
        %1162 = vmatmul.mubr.f32.gmra.mrb[0].mxu0 %v928
        %v1163 = vpop.f32.mrb[0].mxu0
        %v1164 = vadd.f32 0.0, %v1163
        %v1165 = vpop.f32.mrb[0].mxu0
        %1166 = vmatprep.mubr.f32.mxu0 %v932
        %1167 = vmatmul.mubr.f32.gmra.mrb[0].mxu0 %v931
        %v1168 = vpop.f32.mrb[0].mxu0
        %v1169 = vadd.f32 0.0, %v1168
        %v1170 = vpop.f32.mrb[0].mxu0
        %1171 = vmatprep.mubr.f32.mxu0 %v935
        %1172 = vmatmul.mubr.f32.gmra.mrb[0].mxu0 %v934
        %v1173 = vpop.f32.mrb[0].mxu0
        %v1174 = vadd.f32 0.0, %v1173
        %v1175 = vpop.f32.mrb[0].mxu0
        %1176 = vmatprep.mubr.f32.mxu0 %v938
        %1177 = vmatmul.mubr.f32.gmra.mrb[0].mxu0 %v937
        %v1178 = vpop.f32.mrb[0].mxu0
        %v1179 = vadd.f32 0.0, %v1178
        %v1180 = vpop.f32.mrb[0].mxu0
        %1181 = vmatprep.mubr.f32.mxu0 %v941
        %1182 = vmatmul.mubr.f32.gmra.mrb[0].mxu0 %v940
        %v1183 = vpop.f32.mrb[0].mxu0
        %v1184 = vadd.f32 0.0, %v1183
        %v1185 = vpop.f32.mrb[0].mxu0
        %1186 = vmatprep.mubr.f32.mxu0 %v944
        %1187 = vmatmul.mubr.f32.gmra.mrb[0].mxu0 %v943
        %v1188 = vpop.f32.mrb[0].mxu0
        %v1189 = vadd.f32 0.0, %v1188
        %v1190 = vpop.f32.mrb[0].mxu0
        %1191 = vmatprep.mubr.f32.mxu0 %v947
        %1192 = vmatmul.mubr.f32.gmra.mrb[0].mxu0 %v946
        %v1193 = vpop.f32.mrb[0].mxu0
        %v1194 = vadd.f32 0.0, %v1193
        %v1195 = vpop.f32.mrb[0].mxu0
        %1196 = vmatprep.mubr.f32.mxu0 %v950
        %1197 = vmatmul.mubr.f32.gmra.mrb[0].mxu0 %v949
        %v1198 = vpop.f32.mrb[0].mxu0
        %v1199 = vadd.f32 0.0, %v1198
        %v1200 = vpop.f32.mrb[0].mxu0
        %1201 = vmatprep.mubr.f32.mxu0 %v953
        %1202 = vmatmul.mubr.f32.gmra.mrb[0].mxu0 %v952
        %v1203 = vpop.f32.mrb[0].mxu0
        %v1204 = vadd.f32 0.0, %v1203
        %v1205 = vpop.f32.mrb[0].mxu0
        %1206 = vmatprep.mubr.f32.mxu0 %v956
        %1207 = vmatmul.mubr.f32.gmra.mrb[0].mxu0 %v955
        %v1208 = vpop.f32.mrb[0].mxu0
        %v1209 = vadd.f32 0.0, %v1208
        %v1210 = vpop.f32.mrb[0].mxu0
        %1211 = vmatprep.mubr.f32.mxu0 %v959
        %1212 = vmatmul.mubr.f32.gmra.mrb[0].mxu0 %v958
        %v1213 = vpop.f32.mrb[0].mxu0
        %v1214 = vadd.f32 0.0, %v1213
        %v1215 = vpop.f32.mrb[0].mxu0
        %1216 = vmatprep.mubr.f32.mxu0 %v962
        %1217 = vmatmul.mubr.f32.gmra.mrb[0].mxu0 %v961
        %v1218 = vpop.f32.mrb[0].mxu0
        %v1219 = vadd.f32 0.0, %v1218
        %v1220 = vpop.f32.mrb[0].mxu0
        %1221 = vmatprep.mubr.f32.mxu0 %v965
        %1222 = vmatmul.mubr.f32.gmra.mrb[0].mxu0 %v964
        %v1223 = vpop.f32.mrb[0].mxu0
        %v1224 = vadd.f32 0.0, %v1223
        %v1225 = vpop.f32.mrb[0].mxu0
        %1226 = vmatprep.mubr.f32.mxu0 %v968
        %1227 = vmatmul.mubr.f32.gmra.mrb[0].mxu0 %v967
        %v1228 = vpop.f32.mrb[0].mxu0
        %v1229 = vadd.f32 0.0, %v1228
        %v1230 = vpop.f32.mrb[0].mxu0
        %1231 = vmatprep.mubr.f32.mxu0 %v971
        %1232 = vmatmul.mubr.f32.gmra.mrb[0].mxu0 %v970
        %v1233 = vpop.f32.mrb[0].mxu0
        %v1234 = vadd.f32 0.0, %v1233
        %v1235 = vpop.f32.mrb[0].mxu0
        %1236 = vmatprep.mubr.f32.mxu0 %v974
        %1237 = vmatmul.mubr.f32.gmra.mrb[0].mxu0 %v973
        %v1238 = vpop.f32.mrb[0].mxu0
        %v1239 = vadd.f32 0.0, %v1238
        %v1240 = vpop.f32.mrb[0].mxu0
        %1241 = vmatprep.mubr.f32.mxu0 %v977
        %1242 = vmatmul.mubr.f32.gmra.mrb[0].mxu0 %v976
        %v1243 = vpop.f32.mrb[0].mxu0
        %v1244 = vadd.f32 0.0, %v1243
        %v1245 = vpop.f32.mrb[0].mxu0
        %1246 = vmatprep.mubr.f32.mxu0 %v980
        %1247 = vmatmul.mubr.f32.gmra.mrb[0].mxu0 %v979
        %v1248 = vpop.f32.mrb[0].mxu0
        %v1249 = vadd.f32 0.0, %v1248
        %v1250 = vpop.f32.mrb[0].mxu0
        %1251 = vmatprep.mubr.f32.mxu0 %v983
        %1252 = vmatmul.mubr.f32.gmra.mrb[0].mxu0 %v982
        %v1253 = vpop.f32.mrb[0].mxu0
        %v1254 = vadd.f32 0.0, %v1253
        %v1255 = vpop.f32.mrb[0].mxu0
        %1256 = vmatprep.mubr.f32.mxu0 %v986
        %1257 = vmatmul.mubr.f32.gmra.mrb[0].mxu0 %v985
        %v1258 = vpop.f32.mrb[0].mxu0
        %v1259 = vadd.f32 0.0, %v1258
        %v1260 = vpop.f32.mrb[0].mxu0
        %1261 = vdwg.mxu0
        %1262 = vmatprep.subr.mxu0 0.0
        %1263 = vmatpush1.msra.mxu0 %v1021
        %1264 = vmatprep.subr.mxu0 0.0
        %1265 = vmatpush1.msra.mxu0 %v1022
        %1266 = vmatprep.subr.mxu0 0.0
        %1267 = vmatpush1.msra.mxu0 %v1023
        %1268 = vmatprep.subr.mxu0 0.0
        %1269 = vmatpush1.msra.mxu0 %v1024
        %1270 = vmatprep.subr.mxu0 0.0
        %1271 = vmatpush1.msra.mxu0 %v1025
        %1272 = vmatprep.subr.mxu0 0.0
        %1273 = vmatpush1.msra.mxu0 %v1026
        %1274 = vmatprep.subr.mxu0 0.0
        %1275 = vmatpush1.msra.mxu0 %v1027
        %1276 = vmatprep.subr.mxu0 0.0
        %1277 = vmatpush1.msra.mxu0 %v1028
        %1278 = vmatprep.subr.mxu0 0.0
        %1279 = vmatpush1.msra.mxu0 %v1029
        %1280 = vmatprep.subr.mxu0 0.0
        %1281 = vmatpush1.msra.mxu0 %v1030
        %1282 = vmatprep.subr.mxu0 0.0
        %1283 = vmatpush1.msra.mxu0 %v1031
        %1284 = vmatprep.subr.mxu0 0.0
        %1285 = vmatpush1.msra.mxu0 %v1032
        %1286 = vmatprep.subr.mxu0 0.0
        %1287 = vmatpush1.msra.mxu0 %v1033
        %1288 = vmatprep.subr.mxu0 0.0
        %1289 = vmatpush1.msra.mxu0 %v1034
        %1290 = vmatprep.subr.mxu0 0.0
        %1291 = vmatpush1.msra.mxu0 %v1035
        %1292 = vmatprep.subr.mxu0 0.0
        %1293 = vmatpush1.msra.mxu0 %v1036
        %1294 = vmatprep.subr.mxu0 0.0
        %1295 = vmatpush1.msra.mxu0 0.0
        %1296 = vmatprep.subr.mxu0 0.0
        %1297 = vmatpush1.msra.mxu0 0.0
        %1298 = vmatprep.subr.mxu0 0.0
        %1299 = vmatpush1.msra.mxu0 0.0
        %1300 = vmatprep.subr.mxu0 0.0
        %1301 = vmatpush1.msra.mxu0 0.0
        %1302 = vmatprep.subr.mxu0 0.0
        %1303 = vmatpush1.msra.mxu0 0.0
        %1304 = vmatprep.subr.mxu0 0.0
        %1305 = vmatpush1.msra.mxu0 0.0
        %1306 = vmatprep.subr.mxu0 0.0
        %1307 = vmatpush1.msra.mxu0 0.0
        %1308 = vmatprep.subr.mxu0 0.0
        %1309 = vmatpush1.msra.mxu0 0.0
        %1310 = vmatprep.subr.mxu0 0.0
        %1311 = vmatpush1.msra.mxu0 0.0
        %1312 = vmatprep.subr.mxu0 0.0
        %1313 = vmatpush1.msra.mxu0 0.0
        %1314 = vmatprep.subr.mxu0 0.0
        %1315 = vmatpush1.msra.mxu0 0.0
        %1316 = vmatprep.subr.mxu0 0.0
        %1317 = vmatpush1.msra.mxu0 0.0
        %1318 = vmatprep.subr.mxu0 0.0
        %1319 = vmatpush1.msra.mxu0 0.0
        %1320 = vmatprep.subr.mxu0 0.0
        %1321 = vmatpush1.msra.mxu0 0.0
        %1322 = vmatprep.subr.mxu0 0.0
        %1323 = vmatpush1.msra.mxu0 0.0
        %1324 = vmatprep.subr.mxu0 0.0
        %1325 = vmatpush1.msra.mxu0 0.0
        %1326 = vmatprep.mubr.f32.mxu0 0.0
        %1327 = vmatmul.mubr.f32.gmra.mrb[0].mxu0 %v894
        %v1328 = vpop.f32.mrb[0].mxu0
        %v1329 = vadd.f32 %v1104, %v1328
        %v1330 = vpop.f32.mrb[0].mxu0
        %1331 = vmatprep.mubr.f32.mxu0 0.0
        %1332 = vmatmul.mubr.f32.gmra.mrb[0].mxu0 %v897
        %v1333 = vpop.f32.mrb[0].mxu0
        %v1334 = vadd.f32 %v1109, %v1333
        %v1335 = vpop.f32.mrb[0].mxu0
        %1336 = vmatprep.mubr.f32.mxu0 0.0
        %1337 = vmatmul.mubr.f32.gmra.mrb[0].mxu0 %v900
        %v1338 = vpop.f32.mrb[0].mxu0
        %v1339 = vadd.f32 %v1114, %v1338
        %v1340 = vpop.f32.mrb[0].mxu0
        %1341 = vmatprep.mubr.f32.mxu0 0.0
        %1342 = vmatmul.mubr.f32.gmra.mrb[0].mxu0 %v903
        %v1343 = vpop.f32.mrb[0].mxu0
        %v1344 = vadd.f32 %v1119, %v1343
        %v1345 = vpop.f32.mrb[0].mxu0
        %1346 = vmatprep.mubr.f32.mxu0 0.0
        %1347 = vmatmul.mubr.f32.gmra.mrb[0].mxu0 %v906
        %v1348 = vpop.f32.mrb[0].mxu0
        %v1349 = vadd.f32 %v1124, %v1348
        %v1350 = vpop.f32.mrb[0].mxu0
        %1351 = vmatprep.mubr.f32.mxu0 0.0
        %1352 = vmatmul.mubr.f32.gmra.mrb[0].mxu0 %v909
        %v1353 = vpop.f32.mrb[0].mxu0
        %v1354 = vadd.f32 %v1129, %v1353
        %v1355 = vpop.f32.mrb[0].mxu0
        %1356 = vmatprep.mubr.f32.mxu0 0.0
        %1357 = vmatmul.mubr.f32.gmra.mrb[0].mxu0 %v912
        %v1358 = vpop.f32.mrb[0].mxu0
        %v1359 = vadd.f32 %v1134, %v1358
        %v1360 = vpop.f32.mrb[0].mxu0
        %1361 = vmatprep.mubr.f32.mxu0 0.0
        %1362 = vmatmul.mubr.f32.gmra.mrb[0].mxu0 %v915
        %v1363 = vpop.f32.mrb[0].mxu0
        %v1364 = vadd.f32 %v1139, %v1363
        %v1365 = vpop.f32.mrb[0].mxu0
        %1366 = vmatprep.mubr.f32.mxu0 0.0
        %1367 = vmatmul.mubr.f32.gmra.mrb[0].mxu0 %v918
        %v1368 = vpop.f32.mrb[0].mxu0
        %v1369 = vadd.f32 %v1144, %v1368
        %v1370 = vpop.f32.mrb[0].mxu0
        %1371 = vmatprep.mubr.f32.mxu0 0.0
        %1372 = vmatmul.mubr.f32.gmra.mrb[0].mxu0 %v921
        %v1373 = vpop.f32.mrb[0].mxu0
        %v1374 = vadd.f32 %v1149, %v1373
        %v1375 = vpop.f32.mrb[0].mxu0
        %1376 = vmatprep.mubr.f32.mxu0 0.0
        %1377 = vmatmul.mubr.f32.gmra.mrb[0].mxu0 %v924
        %v1378 = vpop.f32.mrb[0].mxu0
        %v1379 = vadd.f32 %v1154, %v1378
        %v1380 = vpop.f32.mrb[0].mxu0
        %1381 = vmatprep.mubr.f32.mxu0 0.0
        %1382 = vmatmul.mubr.f32.gmra.mrb[0].mxu0 %v927
        %v1383 = vpop.f32.mrb[0].mxu0
        %v1384 = vadd.f32 %v1159, %v1383
        %v1385 = vpop.f32.mrb[0].mxu0
        %1386 = vmatprep.mubr.f32.mxu0 0.0
        %1387 = vmatmul.mubr.f32.gmra.mrb[0].mxu0 %v930
        %v1388 = vpop.f32.mrb[0].mxu0
        %v1389 = vadd.f32 %v1164, %v1388
        %v1390 = vpop.f32.mrb[0].mxu0
        %1391 = vmatprep.mubr.f32.mxu0 0.0
        %1392 = vmatmul.mubr.f32.gmra.mrb[0].mxu0 %v933
        %v1393 = vpop.f32.mrb[0].mxu0
        %v1394 = vadd.f32 %v1169, %v1393
        %v1395 = vpop.f32.mrb[0].mxu0
        %1396 = vmatprep.mubr.f32.mxu0 0.0
        %1397 = vmatmul.mubr.f32.gmra.mrb[0].mxu0 %v936
        %v1398 = vpop.f32.mrb[0].mxu0
        %v1399 = vadd.f32 %v1174, %v1398
        %v1400 = vpop.f32.mrb[0].mxu0
        %1401 = vmatprep.mubr.f32.mxu0 0.0
        %1402 = vmatmul.mubr.f32.gmra.mrb[0].mxu0 %v939
        %v1403 = vpop.f32.mrb[0].mxu0
        %v1404 = vadd.f32 %v1179, %v1403
        %v1405 = vpop.f32.mrb[0].mxu0
        %1406 = vmatprep.mubr.f32.mxu0 0.0
        %1407 = vmatmul.mubr.f32.gmra.mrb[0].mxu0 %v942
        %v1408 = vpop.f32.mrb[0].mxu0
        %v1409 = vadd.f32 %v1184, %v1408
        %v1410 = vpop.f32.mrb[0].mxu0
        %1411 = vmatprep.mubr.f32.mxu0 0.0
        %1412 = vmatmul.mubr.f32.gmra.mrb[0].mxu0 %v945
        %v1413 = vpop.f32.mrb[0].mxu0
        %v1414 = vadd.f32 %v1189, %v1413
        %v1415 = vpop.f32.mrb[0].mxu0
        %1416 = vmatprep.mubr.f32.mxu0 0.0
        %1417 = vmatmul.mubr.f32.gmra.mrb[0].mxu0 %v948
        %v1418 = vpop.f32.mrb[0].mxu0
        %v1419 = vadd.f32 %v1194, %v1418
        %v1420 = vpop.f32.mrb[0].mxu0
        %1421 = vmatprep.mubr.f32.mxu0 0.0
        %1422 = vmatmul.mubr.f32.gmra.mrb[0].mxu0 %v951
        %v1423 = vpop.f32.mrb[0].mxu0
        %v1424 = vadd.f32 %v1199, %v1423
        %v1425 = vpop.f32.mrb[0].mxu0
        %1426 = vmatprep.mubr.f32.mxu0 0.0
        %1427 = vmatmul.mubr.f32.gmra.mrb[0].mxu0 %v954
        %v1428 = vpop.f32.mrb[0].mxu0
        %v1429 = vadd.f32 %v1204, %v1428
        %v1430 = vpop.f32.mrb[0].mxu0
        %1431 = vmatprep.mubr.f32.mxu0 0.0
        %1432 = vmatmul.mubr.f32.gmra.mrb[0].mxu0 %v957
        %v1433 = vpop.f32.mrb[0].mxu0
        %v1434 = vadd.f32 %v1209, %v1433
        %v1435 = vpop.f32.mrb[0].mxu0
        %1436 = vmatprep.mubr.f32.mxu0 0.0
        %1437 = vmatmul.mubr.f32.gmra.mrb[0].mxu0 %v960
        %v1438 = vpop.f32.mrb[0].mxu0
        %v1439 = vadd.f32 %v1214, %v1438
        %v1440 = vpop.f32.mrb[0].mxu0
        %1441 = vmatprep.mubr.f32.mxu0 0.0
        %1442 = vmatmul.mubr.f32.gmra.mrb[0].mxu0 %v963
        %v1443 = vpop.f32.mrb[0].mxu0
        %v1444 = vadd.f32 %v1219, %v1443
        %v1445 = vpop.f32.mrb[0].mxu0
        %1446 = vmatprep.mubr.f32.mxu0 0.0
        %1447 = vmatmul.mubr.f32.gmra.mrb[0].mxu0 %v966
        %v1448 = vpop.f32.mrb[0].mxu0
        %v1449 = vadd.f32 %v1224, %v1448
        %v1450 = vpop.f32.mrb[0].mxu0
        %1451 = vmatprep.mubr.f32.mxu0 0.0
        %1452 = vmatmul.mubr.f32.gmra.mrb[0].mxu0 %v969
        %v1453 = vpop.f32.mrb[0].mxu0
        %v1454 = vadd.f32 %v1229, %v1453
        %v1455 = vpop.f32.mrb[0].mxu0
        %1456 = vmatprep.mubr.f32.mxu0 0.0
        %1457 = vmatmul.mubr.f32.gmra.mrb[0].mxu0 %v972
        %v1458 = vpop.f32.mrb[0].mxu0
        %v1459 = vadd.f32 %v1234, %v1458
        %v1460 = vpop.f32.mrb[0].mxu0
        %1461 = vmatprep.mubr.f32.mxu0 0.0
        %1462 = vmatmul.mubr.f32.gmra.mrb[0].mxu0 %v975
        %v1463 = vpop.f32.mrb[0].mxu0
        %v1464 = vadd.f32 %v1239, %v1463
        %v1465 = vpop.f32.mrb[0].mxu0
        %1466 = vmatprep.mubr.f32.mxu0 0.0
        %1467 = vmatmul.mubr.f32.gmra.mrb[0].mxu0 %v978
        %v1468 = vpop.f32.mrb[0].mxu0
        %v1469 = vadd.f32 %v1244, %v1468
        %v1470 = vpop.f32.mrb[0].mxu0
        %1471 = vmatprep.mubr.f32.mxu0 0.0
        %1472 = vmatmul.mubr.f32.gmra.mrb[0].mxu0 %v981
        %v1473 = vpop.f32.mrb[0].mxu0
        %v1474 = vadd.f32 %v1249, %v1473
        %v1475 = vpop.f32.mrb[0].mxu0
        %1476 = vmatprep.mubr.f32.mxu0 0.0
        %1477 = vmatmul.mubr.f32.gmra.mrb[0].mxu0 %v984
        %v1478 = vpop.f32.mrb[0].mxu0
        %v1479 = vadd.f32 %v1254, %v1478
        %v1480 = vpop.f32.mrb[0].mxu0
        %1481 = vmatprep.mubr.f32.mxu0 0.0
        %1482 = vmatmul.mubr.f32.gmra.mrb[0].mxu0 %v987
        %v1483 = vpop.f32.mrb[0].mxu0
        %v1484 = vadd.f32 %v1259, %v1483
        %v1485 = vpop.f32.mrb[0].mxu0
        %1486 = vdwg.mxu0
        %1487 = vmatprep.subr.mxu0 0.0
        %1488 = vmatpush1.msra.mxu0 %v844
        %1489 = vmatprep.subr.mxu0 0.0
        %1490 = vmatpush1.msra.mxu0 %v845
        %1491 = vmatprep.subr.mxu0 0.0
        %1492 = vmatpush1.msra.mxu0 %v846
        %1493 = vmatprep.subr.mxu0 0.0
        %1494 = vmatpush1.msra.mxu0 %v847
        %1495 = vmatprep.subr.mxu0 0.0
        %1496 = vmatpush1.msra.mxu0 %v848
        %1497 = vmatprep.subr.mxu0 0.0
        %1498 = vmatpush1.msra.mxu0 %v849
        %1499 = vmatprep.subr.mxu0 0.0
        %1500 = vmatpush1.msra.mxu0 %v850
        %1501 = vmatprep.subr.mxu0 0.0
        %1502 = vmatpush1.msra.mxu0 %v851
        %1503 = vmatprep.subr.mxu0 0.0
        %1504 = vmatpush1.msra.mxu0 %v852
        %1505 = vmatprep.subr.mxu0 0.0
        %1506 = vmatpush1.msra.mxu0 %v853
        %1507 = vmatprep.subr.mxu0 0.0
        %1508 = vmatpush1.msra.mxu0 %v854
        %1509 = vmatprep.subr.mxu0 0.0
        %1510 = vmatpush1.msra.mxu0 %v855
        %1511 = vmatprep.subr.mxu0 0.0
        %1512 = vmatpush1.msra.mxu0 %v856
        %1513 = vmatprep.subr.mxu0 0.0
        %1514 = vmatpush1.msra.mxu0 %v857
        %1515 = vmatprep.subr.mxu0 0.0
        %1516 = vmatpush1.msra.mxu0 %v858
        %1517 = vmatprep.subr.mxu0 0.0
        %1518 = vmatpush1.msra.mxu0 %v859
        %1519 = vmatprep.subr.mxu0 0.0
        %1520 = vmatpush1.msra.mxu0 %v860
        %1521 = vmatprep.subr.mxu0 0.0
        %1522 = vmatpush1.msra.mxu0 %v861
        %1523 = vmatprep.subr.mxu0 0.0
        %1524 = vmatpush1.msra.mxu0 %v862
        %1525 = vmatprep.subr.mxu0 0.0
        %1526 = vmatpush1.msra.mxu0 %v863
        %1527 = vmatprep.subr.mxu0 0.0
        %1528 = vmatpush1.msra.mxu0 %v864
        %1529 = vmatprep.subr.mxu0 0.0
        %1530 = vmatpush1.msra.mxu0 %v865
        %1531 = vmatprep.subr.mxu0 0.0
        %1532 = vmatpush1.msra.mxu0 %v866
        %1533 = vmatprep.subr.mxu0 0.0
        %1534 = vmatpush1.msra.mxu0 %v867
        %1535 = vmatprep.subr.mxu0 0.0
        %1536 = vmatpush1.msra.mxu0 %v868
        %1537 = vmatprep.subr.mxu0 0.0
        %1538 = vmatpush1.msra.mxu0 %v869
        %1539 = vmatprep.subr.mxu0 0.0
        %1540 = vmatpush1.msra.mxu0 %v870
        %1541 = vmatprep.subr.mxu0 0.0
        %1542 = vmatpush1.msra.mxu0 %v871
        %1543 = vmatprep.subr.mxu0 0.0
        %1544 = vmatpush1.msra.mxu0 %v872
        %1545 = vmatprep.subr.mxu0 0.0
        %1546 = vmatpush1.msra.mxu0 %v873
        %1547 = vmatprep.subr.mxu0 0.0
        %1548 = vmatpush1.msra.mxu0 %v874
        %1549 = vmatprep.subr.mxu0 0.0
        %1550 = vmatpush1.msra.mxu0 %v875
        %1551 = vmatprep.mubr.f32.mxu0 %v749
        %1552 = vmatmul.mubr.f32.gmra.mrb[0].mxu0 %v748
        %v1553 = vpop.f32.mrb[0].mxu0
        %v1554 = vadd.f32 %v1329, %v1553
        %v1555 = vpop.f32.mrb[0].mxu0
        %1556 = vmatprep.mubr.f32.mxu0 %v752
        %1557 = vmatmul.mubr.f32.gmra.mrb[0].mxu0 %v751
        %v1558 = vpop.f32.mrb[0].mxu0
        %v1559 = vadd.f32 %v1334, %v1558
        %v1560 = vpop.f32.mrb[0].mxu0
        %1561 = vmatprep.mubr.f32.mxu0 %v755
        %1562 = vmatmul.mubr.f32.gmra.mrb[0].mxu0 %v754
        %v1563 = vpop.f32.mrb[0].mxu0
        %v1564 = vadd.f32 %v1339, %v1563
        %v1565 = vpop.f32.mrb[0].mxu0
        %1566 = vmatprep.mubr.f32.mxu0 %v758
        %1567 = vmatmul.mubr.f32.gmra.mrb[0].mxu0 %v757
        %v1568 = vpop.f32.mrb[0].mxu0
        %v1569 = vadd.f32 %v1344, %v1568
        %v1570 = vpop.f32.mrb[0].mxu0
        %1571 = vmatprep.mubr.f32.mxu0 %v761
        %1572 = vmatmul.mubr.f32.gmra.mrb[0].mxu0 %v760
        %v1573 = vpop.f32.mrb[0].mxu0
        %v1574 = vadd.f32 %v1349, %v1573
        %v1575 = vpop.f32.mrb[0].mxu0
        %1576 = vmatprep.mubr.f32.mxu0 %v764
        %1577 = vmatmul.mubr.f32.gmra.mrb[0].mxu0 %v763
        %v1578 = vpop.f32.mrb[0].mxu0
        %v1579 = vadd.f32 %v1354, %v1578
        %v1580 = vpop.f32.mrb[0].mxu0
        %1581 = vmatprep.mubr.f32.mxu0 %v767
        %1582 = vmatmul.mubr.f32.gmra.mrb[0].mxu0 %v766
        %v1583 = vpop.f32.mrb[0].mxu0
        %v1584 = vadd.f32 %v1359, %v1583
        %v1585 = vpop.f32.mrb[0].mxu0
        %1586 = vmatprep.mubr.f32.mxu0 %v770
        %1587 = vmatmul.mubr.f32.gmra.mrb[0].mxu0 %v769
        %v1588 = vpop.f32.mrb[0].mxu0
        %v1589 = vadd.f32 %v1364, %v1588
        %v1590 = vpop.f32.mrb[0].mxu0
        %1591 = vmatprep.mubr.f32.mxu0 %v773
        %1592 = vmatmul.mubr.f32.gmra.mrb[0].mxu0 %v772
        %v1593 = vpop.f32.mrb[0].mxu0
        %v1594 = vadd.f32 %v1369, %v1593
        %v1595 = vpop.f32.mrb[0].mxu0
        %1596 = vmatprep.mubr.f32.mxu0 %v776
        %1597 = vmatmul.mubr.f32.gmra.mrb[0].mxu0 %v775
        %v1598 = vpop.f32.mrb[0].mxu0
        %v1599 = vadd.f32 %v1374, %v1598
        %v1600 = vpop.f32.mrb[0].mxu0
        %1601 = vmatprep.mubr.f32.mxu0 %v779
        %1602 = vmatmul.mubr.f32.gmra.mrb[0].mxu0 %v778
        %v1603 = vpop.f32.mrb[0].mxu0
        %v1604 = vadd.f32 %v1379, %v1603
        %v1605 = vpop.f32.mrb[0].mxu0
        %1606 = vmatprep.mubr.f32.mxu0 %v782
        %1607 = vmatmul.mubr.f32.gmra.mrb[0].mxu0 %v781
        %v1608 = vpop.f32.mrb[0].mxu0
        %v1609 = vadd.f32 %v1384, %v1608
        %v1610 = vpop.f32.mrb[0].mxu0
        %1611 = vmatprep.mubr.f32.mxu0 %v785
        %1612 = vmatmul.mubr.f32.gmra.mrb[0].mxu0 %v784
        %v1613 = vpop.f32.mrb[0].mxu0
        %v1614 = vadd.f32 %v1389, %v1613
        %v1615 = vpop.f32.mrb[0].mxu0
        %1616 = vmatprep.mubr.f32.mxu0 %v788
        %1617 = vmatmul.mubr.f32.gmra.mrb[0].mxu0 %v787
        %v1618 = vpop.f32.mrb[0].mxu0
        %v1619 = vadd.f32 %v1394, %v1618
        %v1620 = vpop.f32.mrb[0].mxu0
        %1621 = vmatprep.mubr.f32.mxu0 %v791
        %1622 = vmatmul.mubr.f32.gmra.mrb[0].mxu0 %v790
        %v1623 = vpop.f32.mrb[0].mxu0
        %v1624 = vadd.f32 %v1399, %v1623
        %v1625 = vpop.f32.mrb[0].mxu0
        %1626 = vmatprep.mubr.f32.mxu0 %v794
        %1627 = vmatmul.mubr.f32.gmra.mrb[0].mxu0 %v793
        %v1628 = vpop.f32.mrb[0].mxu0
        %v1629 = vadd.f32 %v1404, %v1628
        %v1630 = vpop.f32.mrb[0].mxu0
        %1631 = vmatprep.mubr.f32.mxu0 %v797
        %1632 = vmatmul.mubr.f32.gmra.mrb[0].mxu0 %v796
        %v1633 = vpop.f32.mrb[0].mxu0
        %v1634 = vadd.f32 %v1409, %v1633
        %v1635 = vpop.f32.mrb[0].mxu0
        %1636 = vmatprep.mubr.f32.mxu0 %v800
        %1637 = vmatmul.mubr.f32.gmra.mrb[0].mxu0 %v799
        %v1638 = vpop.f32.mrb[0].mxu0
        %v1639 = vadd.f32 %v1414, %v1638
        %v1640 = vpop.f32.mrb[0].mxu0
        %1641 = vmatprep.mubr.f32.mxu0 %v803
        %1642 = vmatmul.mubr.f32.gmra.mrb[0].mxu0 %v802
        %v1643 = vpop.f32.mrb[0].mxu0
        %v1644 = vadd.f32 %v1419, %v1643
        %v1645 = vpop.f32.mrb[0].mxu0
        %1646 = vmatprep.mubr.f32.mxu0 %v806
        %1647 = vmatmul.mubr.f32.gmra.mrb[0].mxu0 %v805
        %v1648 = vpop.f32.mrb[0].mxu0
        %v1649 = vadd.f32 %v1424, %v1648
        %v1650 = vpop.f32.mrb[0].mxu0
        %1651 = vmatprep.mubr.f32.mxu0 %v809
        %1652 = vmatmul.mubr.f32.gmra.mrb[0].mxu0 %v808
        %v1653 = vpop.f32.mrb[0].mxu0
        %v1654 = vadd.f32 %v1429, %v1653
        %v1655 = vpop.f32.mrb[0].mxu0
        %1656 = vmatprep.mubr.f32.mxu0 %v812
        %1657 = vmatmul.mubr.f32.gmra.mrb[0].mxu0 %v811
        %v1658 = vpop.f32.mrb[0].mxu0
        %v1659 = vadd.f32 %v1434, %v1658
        %v1660 = vpop.f32.mrb[0].mxu0
        %1661 = vmatprep.mubr.f32.mxu0 %v815
        %1662 = vmatmul.mubr.f32.gmra.mrb[0].mxu0 %v814
        %v1663 = vpop.f32.mrb[0].mxu0
        %v1664 = vadd.f32 %v1439, %v1663
        %v1665 = vpop.f32.mrb[0].mxu0
        %1666 = vmatprep.mubr.f32.mxu0 %v818
        %1667 = vmatmul.mubr.f32.gmra.mrb[0].mxu0 %v817
        %v1668 = vpop.f32.mrb[0].mxu0
        %v1669 = vadd.f32 %v1444, %v1668
        %v1670 = vpop.f32.mrb[0].mxu0
        %1671 = vmatprep.mubr.f32.mxu0 %v821
        %1672 = vmatmul.mubr.f32.gmra.mrb[0].mxu0 %v820
        %v1673 = vpop.f32.mrb[0].mxu0
        %v1674 = vadd.f32 %v1449, %v1673
        %v1675 = vpop.f32.mrb[0].mxu0
        %1676 = vmatprep.mubr.f32.mxu0 %v824
        %1677 = vmatmul.mubr.f32.gmra.mrb[0].mxu0 %v823
        %v1678 = vpop.f32.mrb[0].mxu0
        %v1679 = vadd.f32 %v1454, %v1678
        %v1680 = vpop.f32.mrb[0].mxu0
        %1681 = vmatprep.mubr.f32.mxu0 %v827
        %1682 = vmatmul.mubr.f32.gmra.mrb[0].mxu0 %v826
        %v1683 = vpop.f32.mrb[0].mxu0
        %v1684 = vadd.f32 %v1459, %v1683
        %v1685 = vpop.f32.mrb[0].mxu0
        %1686 = vmatprep.mubr.f32.mxu0 %v830
        %1687 = vmatmul.mubr.f32.gmra.mrb[0].mxu0 %v829
        %v1688 = vpop.f32.mrb[0].mxu0
        %v1689 = vadd.f32 %v1464, %v1688
        %v1690 = vpop.f32.mrb[0].mxu0
        %1691 = vmatprep.mubr.f32.mxu0 %v833
        %1692 = vmatmul.mubr.f32.gmra.mrb[0].mxu0 %v832
        %v1693 = vpop.f32.mrb[0].mxu0
        %v1694 = vadd.f32 %v1469, %v1693
        %v1695 = vpop.f32.mrb[0].mxu0
        %1696 = vmatprep.mubr.f32.mxu0 %v836
        %1697 = vmatmul.mubr.f32.gmra.mrb[0].mxu0 %v835
        %v1698 = vpop.f32.mrb[0].mxu0
        %v1699 = vadd.f32 %v1474, %v1698
        %v1700 = vpop.f32.mrb[0].mxu0
        %1701 = vmatprep.mubr.f32.mxu0 %v839
        %1702 = vmatmul.mubr.f32.gmra.mrb[0].mxu0 %v838
        %v1703 = vpop.f32.mrb[0].mxu0
        %v1704 = vadd.f32 %v1479, %v1703
        %v1705 = vpop.f32.mrb[0].mxu0
        %1706 = vmatprep.mubr.f32.mxu0 %v842
        %1707 = vmatmul.mubr.f32.gmra.mrb[0].mxu0 %v841
        %v1708 = vpop.f32.mrb[0].mxu0
        %v1709 = vadd.f32 %v1484, %v1708
        %v1710 = vpop.f32.mrb[0].mxu0
        %1711 = vdwg.mxu0
        %1712 = vmatprep.subr.mxu0 0.0
        %1713 = vmatpush1.msra.mxu0 %v876
        %1714 = vmatprep.subr.mxu0 0.0
        %1715 = vmatpush1.msra.mxu0 %v877
        %1716 = vmatprep.subr.mxu0 0.0
        %1717 = vmatpush1.msra.mxu0 %v878
        %1718 = vmatprep.subr.mxu0 0.0
        %1719 = vmatpush1.msra.mxu0 %v879
        %1720 = vmatprep.subr.mxu0 0.0
        %1721 = vmatpush1.msra.mxu0 %v880
        %1722 = vmatprep.subr.mxu0 0.0
        %1723 = vmatpush1.msra.mxu0 %v881
        %1724 = vmatprep.subr.mxu0 0.0
        %1725 = vmatpush1.msra.mxu0 %v882
        %1726 = vmatprep.subr.mxu0 0.0
        %1727 = vmatpush1.msra.mxu0 %v883
        %1728 = vmatprep.subr.mxu0 0.0
        %1729 = vmatpush1.msra.mxu0 %v884
        %1730 = vmatprep.subr.mxu0 0.0
        %1731 = vmatpush1.msra.mxu0 %v885
        %1732 = vmatprep.subr.mxu0 0.0
        %1733 = vmatpush1.msra.mxu0 %v886
        %1734 = vmatprep.subr.mxu0 0.0
        %1735 = vmatpush1.msra.mxu0 %v887
        %1736 = vmatprep.subr.mxu0 0.0
        %1737 = vmatpush1.msra.mxu0 %v888
        %1738 = vmatprep.subr.mxu0 0.0
        %1739 = vmatpush1.msra.mxu0 %v889
        %1740 = vmatprep.subr.mxu0 0.0
        %1741 = vmatpush1.msra.mxu0 %v890
        %1742 = vmatprep.subr.mxu0 0.0
        %1743 = vmatpush1.msra.mxu0 %v891
        %1744 = vmatprep.subr.mxu0 0.0
        %1745 = vmatpush1.msra.mxu0 0.0
        %1746 = vmatprep.subr.mxu0 0.0
        %1747 = vmatpush1.msra.mxu0 0.0
        %1748 = vmatprep.subr.mxu0 0.0
        %1749 = vmatpush1.msra.mxu0 0.0
        %1750 = vmatprep.subr.mxu0 0.0
        %1751 = vmatpush1.msra.mxu0 0.0
        %1752 = vmatprep.subr.mxu0 0.0
        %1753 = vmatpush1.msra.mxu0 0.0
        %1754 = vmatprep.subr.mxu0 0.0
        %1755 = vmatpush1.msra.mxu0 0.0
        %1756 = vmatprep.subr.mxu0 0.0
        %1757 = vmatpush1.msra.mxu0 0.0
        %1758 = vmatprep.subr.mxu0 0.0
        %1759 = vmatpush1.msra.mxu0 0.0
        %1760 = vmatprep.subr.mxu0 0.0
        %1761 = vmatpush1.msra.mxu0 0.0
        %1762 = vmatprep.subr.mxu0 0.0
        %1763 = vmatpush1.msra.mxu0 0.0
        %1764 = vmatprep.subr.mxu0 0.0
        %1765 = vmatpush1.msra.mxu0 0.0
        %1766 = vmatprep.subr.mxu0 0.0
        %1767 = vmatpush1.msra.mxu0 0.0
        %1768 = vmatprep.subr.mxu0 0.0
        %1769 = vmatpush1.msra.mxu0 0.0
        %1770 = vmatprep.subr.mxu0 0.0
        %1771 = vmatpush1.msra.mxu0 0.0
        %1772 = vmatprep.subr.mxu0 0.0
        %1773 = vmatpush1.msra.mxu0 0.0
        %1774 = vmatprep.subr.mxu0 0.0
        %1775 = vmatpush1.msra.mxu0 0.0
        %1776 = vmatprep.mubr.f32.mxu0 0.0
        %1777 = vmatmul.mubr.f32.gmra.mrb[0].mxu0 %v750
        %v1778 = vpop.f32.mrb[0].mxu0
        %v1779 = vadd.f32 %v1554, %v1778
        %v1780 = vpop.f32.mrb[0].mxu0
        %1781 = vmatprep.mubr.f32.mxu0 0.0
        %1782 = vmatmul.mubr.f32.gmra.mrb[0].mxu0 %v753
        %v1783 = vpop.f32.mrb[0].mxu0
        %v1784 = vadd.f32 %v1559, %v1783
        %v1785 = vpop.f32.mrb[0].mxu0
        %1786 = vmatprep.mubr.f32.mxu0 0.0
        %1787 = vmatmul.mubr.f32.gmra.mrb[0].mxu0 %v756
        %v1788 = vpop.f32.mrb[0].mxu0
        %v1789 = vadd.f32 %v1564, %v1788
        %v1790 = vpop.f32.mrb[0].mxu0
        %1791 = vmatprep.mubr.f32.mxu0 0.0
        %1792 = vmatmul.mubr.f32.gmra.mrb[0].mxu0 %v759
        %v1793 = vpop.f32.mrb[0].mxu0
        %v1794 = vadd.f32 %v1569, %v1793
        %v1795 = vpop.f32.mrb[0].mxu0
        %1796 = vmatprep.mubr.f32.mxu0 0.0
        %1797 = vmatmul.mubr.f32.gmra.mrb[0].mxu0 %v762
        %v1798 = vpop.f32.mrb[0].mxu0
        %v1799 = vadd.f32 %v1574, %v1798
        %v1800 = vpop.f32.mrb[0].mxu0
        %1801 = vmatprep.mubr.f32.mxu0 0.0
        %1802 = vmatmul.mubr.f32.gmra.mrb[0].mxu0 %v765
        %v1803 = vpop.f32.mrb[0].mxu0
        %v1804 = vadd.f32 %v1579, %v1803
        %v1805 = vpop.f32.mrb[0].mxu0
        %1806 = vmatprep.mubr.f32.mxu0 0.0
        %1807 = vmatmul.mubr.f32.gmra.mrb[0].mxu0 %v768
        %v1808 = vpop.f32.mrb[0].mxu0
        %v1809 = vadd.f32 %v1584, %v1808
        %v1810 = vpop.f32.mrb[0].mxu0
        %1811 = vmatprep.mubr.f32.mxu0 0.0
        %1812 = vmatmul.mubr.f32.gmra.mrb[0].mxu0 %v771
        %v1813 = vpop.f32.mrb[0].mxu0
        %v1814 = vadd.f32 %v1589, %v1813
        %v1815 = vpop.f32.mrb[0].mxu0
        %1816 = vmatprep.mubr.f32.mxu0 0.0
        %1817 = vmatmul.mubr.f32.gmra.mrb[0].mxu0 %v774
        %v1818 = vpop.f32.mrb[0].mxu0
        %v1819 = vadd.f32 %v1594, %v1818
        %v1820 = vpop.f32.mrb[0].mxu0
        %1821 = vmatprep.mubr.f32.mxu0 0.0
        %1822 = vmatmul.mubr.f32.gmra.mrb[0].mxu0 %v777
        %v1823 = vpop.f32.mrb[0].mxu0
        %v1824 = vadd.f32 %v1599, %v1823
        %v1825 = vpop.f32.mrb[0].mxu0
        %1826 = vmatprep.mubr.f32.mxu0 0.0
        %1827 = vmatmul.mubr.f32.gmra.mrb[0].mxu0 %v780
        %v1828 = vpop.f32.mrb[0].mxu0
        %v1829 = vadd.f32 %v1604, %v1828
        %v1830 = vpop.f32.mrb[0].mxu0
        %1831 = vmatprep.mubr.f32.mxu0 0.0
        %1832 = vmatmul.mubr.f32.gmra.mrb[0].mxu0 %v783
        %v1833 = vpop.f32.mrb[0].mxu0
        %v1834 = vadd.f32 %v1609, %v1833
        %v1835 = vpop.f32.mrb[0].mxu0
        %1836 = vmatprep.mubr.f32.mxu0 0.0
        %1837 = vmatmul.mubr.f32.gmra.mrb[0].mxu0 %v786
        %v1838 = vpop.f32.mrb[0].mxu0
        %v1839 = vadd.f32 %v1614, %v1838
        %v1840 = vpop.f32.mrb[0].mxu0
        %1841 = vmatprep.mubr.f32.mxu0 0.0
        %1842 = vmatmul.mubr.f32.gmra.mrb[0].mxu0 %v789
        %v1843 = vpop.f32.mrb[0].mxu0
        %v1844 = vadd.f32 %v1619, %v1843
        %v1845 = vpop.f32.mrb[0].mxu0
        %1846 = vmatprep.mubr.f32.mxu0 0.0
        %1847 = vmatmul.mubr.f32.gmra.mrb[0].mxu0 %v792
        %v1848 = vpop.f32.mrb[0].mxu0
        %v1849 = vadd.f32 %v1624, %v1848
        %v1850 = vpop.f32.mrb[0].mxu0
        %1851 = vmatprep.mubr.f32.mxu0 0.0
        %1852 = vmatmul.mubr.f32.gmra.mrb[0].mxu0 %v795
        %v1853 = vpop.f32.mrb[0].mxu0
        %v1854 = vadd.f32 %v1629, %v1853
        %v1855 = vpop.f32.mrb[0].mxu0
        %1856 = vmatprep.mubr.f32.mxu0 0.0
        %1857 = vmatmul.mubr.f32.gmra.mrb[0].mxu0 %v798
        %v1858 = vpop.f32.mrb[0].mxu0
        %v1859 = vadd.f32 %v1634, %v1858
        %v1860 = vpop.f32.mrb[0].mxu0
        %1861 = vmatprep.mubr.f32.mxu0 0.0
        %1862 = vmatmul.mubr.f32.gmra.mrb[0].mxu0 %v801
        %v1863 = vpop.f32.mrb[0].mxu0
        %v1864 = vadd.f32 %v1639, %v1863
        %v1865 = vpop.f32.mrb[0].mxu0
        %1866 = vmatprep.mubr.f32.mxu0 0.0
        %1867 = vmatmul.mubr.f32.gmra.mrb[0].mxu0 %v804
        %v1868 = vpop.f32.mrb[0].mxu0
        %v1869 = vadd.f32 %v1644, %v1868
        %v1870 = vpop.f32.mrb[0].mxu0
        %1871 = vmatprep.mubr.f32.mxu0 0.0
        %1872 = vmatmul.mubr.f32.gmra.mrb[0].mxu0 %v807
        %v1873 = vpop.f32.mrb[0].mxu0
        %v1874 = vadd.f32 %v1649, %v1873
        %v1875 = vpop.f32.mrb[0].mxu0
        %1876 = vmatprep.mubr.f32.mxu0 0.0
        %1877 = vmatmul.mubr.f32.gmra.mrb[0].mxu0 %v810
        %v1878 = vpop.f32.mrb[0].mxu0
        %v1879 = vadd.f32 %v1654, %v1878
        %v1880 = vpop.f32.mrb[0].mxu0
        %1881 = vmatprep.mubr.f32.mxu0 0.0
        %1882 = vmatmul.mubr.f32.gmra.mrb[0].mxu0 %v813
        %v1883 = vpop.f32.mrb[0].mxu0
        %v1884 = vadd.f32 %v1659, %v1883
        %v1885 = vpop.f32.mrb[0].mxu0
        %1886 = vmatprep.mubr.f32.mxu0 0.0
        %1887 = vmatmul.mubr.f32.gmra.mrb[0].mxu0 %v816
        %v1888 = vpop.f32.mrb[0].mxu0
        %v1889 = vadd.f32 %v1664, %v1888
        %v1890 = vpop.f32.mrb[0].mxu0
        %1891 = vmatprep.mubr.f32.mxu0 0.0
        %1892 = vmatmul.mubr.f32.gmra.mrb[0].mxu0 %v819
        %v1893 = vpop.f32.mrb[0].mxu0
        %v1894 = vadd.f32 %v1669, %v1893
        %v1895 = vpop.f32.mrb[0].mxu0
        %1896 = vmatprep.mubr.f32.mxu0 0.0
        %1897 = vmatmul.mubr.f32.gmra.mrb[0].mxu0 %v822
        %v1898 = vpop.f32.mrb[0].mxu0
        %v1899 = vadd.f32 %v1674, %v1898
        %v1900 = vpop.f32.mrb[0].mxu0
        %1901 = vmatprep.mubr.f32.mxu0 0.0
        %1902 = vmatmul.mubr.f32.gmra.mrb[0].mxu0 %v825
        %v1903 = vpop.f32.mrb[0].mxu0
        %v1904 = vadd.f32 %v1679, %v1903
        %v1905 = vpop.f32.mrb[0].mxu0
        %1906 = vmatprep.mubr.f32.mxu0 0.0
        %1907 = vmatmul.mubr.f32.gmra.mrb[0].mxu0 %v828
        %v1908 = vpop.f32.mrb[0].mxu0
        %v1909 = vadd.f32 %v1684, %v1908
        %v1910 = vpop.f32.mrb[0].mxu0
        %1911 = vmatprep.mubr.f32.mxu0 0.0
        %1912 = vmatmul.mubr.f32.gmra.mrb[0].mxu0 %v831
        %v1913 = vpop.f32.mrb[0].mxu0
        %v1914 = vadd.f32 %v1689, %v1913
        %v1915 = vpop.f32.mrb[0].mxu0
        %1916 = vmatprep.mubr.f32.mxu0 0.0
        %1917 = vmatmul.mubr.f32.gmra.mrb[0].mxu0 %v834
        %v1918 = vpop.f32.mrb[0].mxu0
        %v1919 = vadd.f32 %v1694, %v1918
        %v1920 = vpop.f32.mrb[0].mxu0
        %1921 = vmatprep.mubr.f32.mxu0 0.0
        %1922 = vmatmul.mubr.f32.gmra.mrb[0].mxu0 %v837
        %v1923 = vpop.f32.mrb[0].mxu0
        %v1924 = vadd.f32 %v1699, %v1923
        %v1925 = vpop.f32.mrb[0].mxu0
        %1926 = vmatprep.mubr.f32.mxu0 0.0
        %1927 = vmatmul.mubr.f32.gmra.mrb[0].mxu0 %v840
        %v1928 = vpop.f32.mrb[0].mxu0
        %v1929 = vadd.f32 %v1704, %v1928
        %v1930 = vpop.f32.mrb[0].mxu0
        %1931 = vmatprep.mubr.f32.mxu0 0.0
        %1932 = vmatmul.mubr.f32.gmra.mrb[0].mxu0 %v843
        %v1933 = vpop.f32.mrb[0].mxu0
        %v1934 = vadd.f32 %v1709, %v1933
        %v1935 = vpop.f32.mrb[0].mxu0
        %1936 = vdwg.mxu0
        %s1937 = scalar_lea.vmem [#allocation2], 96
        %v1938 = vld [vmem:[%s1937] sm:$0xff]
        %v1939 = vld [vmem:[%s1937 + $0x8] sm:$0xff]
        %v1940 = vld [vmem:[%s1937 + $0x10] sm:$0xff]
        %v1941 = vld [vmem:[%s1937 + $0x18] sm:$0xff]
        %v1942 = vld [vmem:[%s1937 + $0x20] sm:$0xff]
        %v1943 = vld [vmem:[%s1937 + $0x28] sm:$0xff]
        %v1944 = vld [vmem:[%s1937 + $0x30] sm:$0xff]
        %v1945 = vld [vmem:[%s1937 + $0x38] sm:$0xff]
        %v1946 = vld [vmem:[%s1937 + $0x40] sm:$0xff]
        %v1947 = vld [vmem:[%s1937 + $0x48] sm:$0xff]
        %v1948 = vld [vmem:[%s1937 + $0x50] sm:$0xff]
        %v1949 = vld [vmem:[%s1937 + $0x58] sm:$0xff]
        %v1950 = vld [vmem:[%s1937 + $0x60] sm:$0xff]
        %v1951 = vld [vmem:[%s1937 + $0x68] sm:$0xff]
        %v1952 = vld [vmem:[%s1937 + $0x70] sm:$0xff]
        %v1953 = vld [vmem:[%s1937 + $0x78] sm:$0xff]
        %v1954 = vld [vmem:[%s1937 + $0x80] sm:$0xff]
        %v1955 = vld [vmem:[%s1937 + $0x88] sm:$0xff]
        %v1956 = vld [vmem:[%s1937 + $0x90] sm:$0xff]
        %v1957 = vld [vmem:[%s1937 + $0x98] sm:$0xff]
        %v1958 = vld [vmem:[%s1937 + $0xa0] sm:$0xff]
        %v1959 = vld [vmem:[%s1937 + $0xa8] sm:$0xff]
        %v1960 = vld [vmem:[%s1937 + $0xb0] sm:$0xff]
        %v1961 = vld [vmem:[%s1937 + $0xb8] sm:$0xff]
        %v1962 = vld [vmem:[%s1937 + $0xc0] sm:$0xff]
        %v1963 = vld [vmem:[%s1937 + $0xc8] sm:$0xff]
        %v1964 = vld [vmem:[%s1937 + $0xd0] sm:$0xff]
        %v1965 = vld [vmem:[%s1937 + $0xd8] sm:$0xff]
        %v1966 = vld [vmem:[%s1937 + $0xe0] sm:$0xff]
        %v1967 = vld [vmem:[%s1937 + $0xe8] sm:$0xff]
        %v1968 = vld [vmem:[%s1937 + $0xf0] sm:$0xff]
        %v1969 = vld [vmem:[%s1937 + $0xf8] sm:$0xff]
        %v1970 = vld [vmem:[%s1937 + $0x100] sm:$0xff]
        %v1971 = vld [vmem:[%s1937 + $0x108] sm:$0xff]
        %v1972 = vld [vmem:[%s1937 + $0x110] sm:$0xff]
        %v1973 = vld [vmem:[%s1937 + $0x118] sm:$0xff]
        %v1974 = vld [vmem:[%s1937 + $0x120] sm:$0xff]
        %v1975 = vld [vmem:[%s1937 + $0x128] sm:$0xff]
        %v1976 = vld [vmem:[%s1937 + $0x130] sm:$0xff]
        %v1977 = vld [vmem:[%s1937 + $0x138] sm:$0xff]
        %v1978 = vld [vmem:[%s1937 + $0x140] sm:$0xff]
        %v1979 = vld [vmem:[%s1937 + $0x148] sm:$0xff]
        %v1980 = vld [vmem:[%s1937 + $0x150] sm:$0xff]
        %v1981 = vld [vmem:[%s1937 + $0x158] sm:$0xff]
        %v1982 = vld [vmem:[%s1937 + $0x160] sm:$0xff]
        %v1983 = vld [vmem:[%s1937 + $0x168] sm:$0xff]
        %v1984 = vld [vmem:[%s1937 + $0x170] sm:$0xff]
        %v1985 = vld [vmem:[%s1937 + $0x178] sm:$0xff]
        %v1986 = vld [vmem:[%s1937 + $0x180] sm:$0xff]
        %v1987 = vld [vmem:[%s1937 + $0x188] sm:$0xff]
        %v1988 = vld [vmem:[%s1937 + $0x190] sm:$0xff]
        %v1989 = vld [vmem:[%s1937 + $0x198] sm:$0xff]
        %v1990 = vld [vmem:[%s1937 + $0x1a0] sm:$0xff]
        %v1991 = vld [vmem:[%s1937 + $0x1a8] sm:$0xff]
        %v1992 = vld [vmem:[%s1937 + $0x1b0] sm:$0xff]
        %v1993 = vld [vmem:[%s1937 + $0x1b8] sm:$0xff]
        %v1994 = vld [vmem:[%s1937 + $0x1c0] sm:$0xff]
        %v1995 = vld [vmem:[%s1937 + $0x1c8] sm:$0xff]
        %v1996 = vld [vmem:[%s1937 + $0x1d0] sm:$0xff]
        %v1997 = vld [vmem:[%s1937 + $0x1d8] sm:$0xff]
        %v1998 = vld [vmem:[%s1937 + $0x1e0] sm:$0xff]
        %v1999 = vld [vmem:[%s1937 + $0x1e8] sm:$0xff]
        %v2000 = vld [vmem:[%s1937 + $0x1f0] sm:$0xff]
        %v2001 = vld [vmem:[%s1937 + $0x1f8] sm:$0xff]
        %v2002 = vld [vmem:[%s1937 + $0x200] sm:$0xff]
        %v2003 = vld [vmem:[%s1937 + $0x208] sm:$0xff]
        %v2004 = vld [vmem:[%s1937 + $0x210] sm:$0xff]
        %v2005 = vld [vmem:[%s1937 + $0x218] sm:$0xff]
        %v2006 = vld [vmem:[%s1937 + $0x220] sm:$0xff]
        %v2007 = vld [vmem:[%s1937 + $0x228] sm:$0xff]
        %v2008 = vld [vmem:[%s1937 + $0x230] sm:$0xff]
        %v2009 = vld [vmem:[%s1937 + $0x238] sm:$0xff]
        %v2010 = vld [vmem:[%s1937 + $0x240] sm:$0xff]
        %v2011 = vld [vmem:[%s1937 + $0x248] sm:$0xff]
        %v2012 = vld [vmem:[%s1937 + $0x250] sm:$0xff]
        %v2013 = vld [vmem:[%s1937 + $0x258] sm:$0xff]
        %v2014 = vld [vmem:[%s1937 + $0x260] sm:$0xff]
        %v2015 = vld [vmem:[%s1937 + $0x268] sm:$0xff]
        %v2016 = vld [vmem:[%s1937 + $0x270] sm:$0xff]
        %v2017 = vld [vmem:[%s1937 + $0x278] sm:$0xff]
        %v2018 = vld [vmem:[%s1937 + $0x280] sm:$0xff]
        %v2019 = vld [vmem:[%s1937 + $0x288] sm:$0xff]
        %v2020 = vld [vmem:[%s1937 + $0x290] sm:$0xff]
        %v2021 = vld [vmem:[%s1937 + $0x298] sm:$0xff]
        %v2022 = vld [vmem:[%s1937 + $0x2a0] sm:$0xff]
        %v2023 = vld [vmem:[%s1937 + $0x2a8] sm:$0xff]
        %v2024 = vld [vmem:[%s1937 + $0x2b0] sm:$0xff]
        %v2025 = vld [vmem:[%s1937 + $0x2b8] sm:$0xff]
        %v2026 = vld [vmem:[%s1937 + $0x2c0] sm:$0xff]
        %v2027 = vld [vmem:[%s1937 + $0x2c8] sm:$0xff]
        %v2028 = vld [vmem:[%s1937 + $0x2d0] sm:$0xff]
        %v2029 = vld [vmem:[%s1937 + $0x2d8] sm:$0xff]
        %v2030 = vld [vmem:[%s1937 + $0x2e0] sm:$0xff]
        %v2031 = vld [vmem:[%s1937 + $0x2e8] sm:$0xff]
        %v2032 = vld [vmem:[%s1937 + $0x2f0] sm:$0xff]
        %v2033 = vld [vmem:[%s1937 + $0x2f8] sm:$0xff]
        %s2034 = scalar_lea.vmem [#allocation6], 768
        %v2035 = vld [vmem:[%s2034] sm:$0xff]
        %v2036 = vld [vmem:[%s2034 + $0x8] sm:$0xff]
        %v2037 = vld [vmem:[%s2034 + $0x10] sm:$0xff]
        %v2038 = vld [vmem:[%s2034 + $0x18] sm:$0xff]
        %v2039 = vld [vmem:[%s2034 + $0x20] sm:$0xff]
        %v2040 = vld [vmem:[%s2034 + $0x28] sm:$0xff]
        %v2041 = vld [vmem:[%s2034 + $0x30] sm:$0xff]
        %v2042 = vld [vmem:[%s2034 + $0x38] sm:$0xff]
        %v2043 = vld [vmem:[%s2034 + $0x40] sm:$0xff]
        %v2044 = vld [vmem:[%s2034 + $0x48] sm:$0xff]
        %v2045 = vld [vmem:[%s2034 + $0x50] sm:$0xff]
        %v2046 = vld [vmem:[%s2034 + $0x58] sm:$0xff]
        %v2047 = vld [vmem:[%s2034 + $0x60] sm:$0xff]
        %v2048 = vld [vmem:[%s2034 + $0x68] sm:$0xff]
        %v2049 = vld [vmem:[%s2034 + $0x70] sm:$0xff]
        %v2050 = vld [vmem:[%s2034 + $0x78] sm:$0xff]
        %v2051 = vld [vmem:[%s2034 + $0x80] sm:$0xff]
        %v2052 = vld [vmem:[%s2034 + $0x88] sm:$0xff]
        %v2053 = vld [vmem:[%s2034 + $0x90] sm:$0xff]
        %v2054 = vld [vmem:[%s2034 + $0x98] sm:$0xff]
        %v2055 = vld [vmem:[%s2034 + $0xa0] sm:$0xff]
        %v2056 = vld [vmem:[%s2034 + $0xa8] sm:$0xff]
        %v2057 = vld [vmem:[%s2034 + $0xb0] sm:$0xff]
        %v2058 = vld [vmem:[%s2034 + $0xb8] sm:$0xff]
        %v2059 = vld [vmem:[%s2034 + $0xc0] sm:$0xff]
        %v2060 = vld [vmem:[%s2034 + $0xc8] sm:$0xff]
        %v2061 = vld [vmem:[%s2034 + $0xd0] sm:$0xff]
        %v2062 = vld [vmem:[%s2034 + $0xd8] sm:$0xff]
        %v2063 = vld [vmem:[%s2034 + $0xe0] sm:$0xff]
        %v2064 = vld [vmem:[%s2034 + $0xe8] sm:$0xff]
        %v2065 = vld [vmem:[%s2034 + $0xf0] sm:$0xff]
        %v2066 = vld [vmem:[%s2034 + $0xf8] sm:$0xff]
        %v2067 = vld [vmem:[%s2034 + $0x100] sm:$0xff]
        %v2068 = vld [vmem:[%s2034 + $0x108] sm:$0xff]
        %v2069 = vld [vmem:[%s2034 + $0x110] sm:$0xff]
        %v2070 = vld [vmem:[%s2034 + $0x118] sm:$0xff]
        %v2071 = vld [vmem:[%s2034 + $0x120] sm:$0xff]
        %v2072 = vld [vmem:[%s2034 + $0x128] sm:$0xff]
        %v2073 = vld [vmem:[%s2034 + $0x130] sm:$0xff]
        %v2074 = vld [vmem:[%s2034 + $0x138] sm:$0xff]
        %v2075 = vld [vmem:[%s2034 + $0x140] sm:$0xff]
        %v2076 = vld [vmem:[%s2034 + $0x148] sm:$0xff]
        %v2077 = vld [vmem:[%s2034 + $0x150] sm:$0xff]
        %v2078 = vld [vmem:[%s2034 + $0x158] sm:$0xff]
        %v2079 = vld [vmem:[%s2034 + $0x160] sm:$0xff]
        %v2080 = vld [vmem:[%s2034 + $0x168] sm:$0xff]
        %v2081 = vld [vmem:[%s2034 + $0x170] sm:$0xff]
        %v2082 = vld [vmem:[%s2034 + $0x178] sm:$0xff]
        %2083 = vmatprep.subr.mxu0 0.0
        %2084 = vmatpush1.msra.mxu0 %v2035
        %2085 = vmatprep.subr.mxu0 0.0
        %2086 = vmatpush1.msra.mxu0 %v2036
        %2087 = vmatprep.subr.mxu0 0.0
        %2088 = vmatpush1.msra.mxu0 %v2037
        %2089 = vmatprep.subr.mxu0 0.0
        %2090 = vmatpush1.msra.mxu0 %v2038
        %2091 = vmatprep.subr.mxu0 0.0
        %2092 = vmatpush1.msra.mxu0 %v2039
        %2093 = vmatprep.subr.mxu0 0.0
        %2094 = vmatpush1.msra.mxu0 %v2040
        %2095 = vmatprep.subr.mxu0 0.0
        %2096 = vmatpush1.msra.mxu0 %v2041
        %2097 = vmatprep.subr.mxu0 0.0
        %2098 = vmatpush1.msra.mxu0 %v2042
        %2099 = vmatprep.subr.mxu0 0.0
        %2100 = vmatpush1.msra.mxu0 %v2043
        %2101 = vmatprep.subr.mxu0 0.0
        %2102 = vmatpush1.msra.mxu0 %v2044
        %2103 = vmatprep.subr.mxu0 0.0
        %2104 = vmatpush1.msra.mxu0 %v2045
        %2105 = vmatprep.subr.mxu0 0.0
        %2106 = vmatpush1.msra.mxu0 %v2046
        %2107 = vmatprep.subr.mxu0 0.0
        %2108 = vmatpush1.msra.mxu0 %v2047
        %2109 = vmatprep.subr.mxu0 0.0
        %2110 = vmatpush1.msra.mxu0 %v2048
        %2111 = vmatprep.subr.mxu0 0.0
        %2112 = vmatpush1.msra.mxu0 %v2049
        %2113 = vmatprep.subr.mxu0 0.0
        %2114 = vmatpush1.msra.mxu0 %v2050
        %2115 = vmatprep.subr.mxu0 0.0
        %2116 = vmatpush1.msra.mxu0 %v2051
        %2117 = vmatprep.subr.mxu0 0.0
        %2118 = vmatpush1.msra.mxu0 %v2052
        %2119 = vmatprep.subr.mxu0 0.0
        %2120 = vmatpush1.msra.mxu0 %v2053
        %2121 = vmatprep.subr.mxu0 0.0
        %2122 = vmatpush1.msra.mxu0 %v2054
        %2123 = vmatprep.subr.mxu0 0.0
        %2124 = vmatpush1.msra.mxu0 %v2055
        %2125 = vmatprep.subr.mxu0 0.0
        %2126 = vmatpush1.msra.mxu0 %v2056
        %2127 = vmatprep.subr.mxu0 0.0
        %2128 = vmatpush1.msra.mxu0 %v2057
        %2129 = vmatprep.subr.mxu0 0.0
        %2130 = vmatpush1.msra.mxu0 %v2058
        %2131 = vmatprep.subr.mxu0 0.0
        %2132 = vmatpush1.msra.mxu0 %v2059
        %2133 = vmatprep.subr.mxu0 0.0
        %2134 = vmatpush1.msra.mxu0 %v2060
        %2135 = vmatprep.subr.mxu0 0.0
        %2136 = vmatpush1.msra.mxu0 %v2061
        %2137 = vmatprep.subr.mxu0 0.0
        %2138 = vmatpush1.msra.mxu0 %v2062
        %2139 = vmatprep.subr.mxu0 0.0
        %2140 = vmatpush1.msra.mxu0 %v2063
        %2141 = vmatprep.subr.mxu0 0.0
        %2142 = vmatpush1.msra.mxu0 %v2064
        %2143 = vmatprep.subr.mxu0 0.0
        %2144 = vmatpush1.msra.mxu0 %v2065
        %2145 = vmatprep.subr.mxu0 0.0
        %2146 = vmatpush1.msra.mxu0 %v2066
        %2147 = vmatprep.mubr.f32.mxu0 %v1939
        %2148 = vmatmul.mubr.f32.gmra.mrb[0].mxu0 %v1938
        %v2149 = vpop.f32.mrb[0].mxu0
        %v2150 = vadd.f32 0.0, %v2149
        %v2151 = vpop.f32.mrb[0].mxu0
        %2152 = vmatprep.mubr.f32.mxu0 %v1942
        %2153 = vmatmul.mubr.f32.gmra.mrb[0].mxu0 %v1941
        %v2154 = vpop.f32.mrb[0].mxu0
        %v2155 = vadd.f32 0.0, %v2154
        %v2156 = vpop.f32.mrb[0].mxu0
        %2157 = vmatprep.mubr.f32.mxu0 %v1945
        %2158 = vmatmul.mubr.f32.gmra.mrb[0].mxu0 %v1944
        %v2159 = vpop.f32.mrb[0].mxu0
        %v2160 = vadd.f32 0.0, %v2159
        %v2161 = vpop.f32.mrb[0].mxu0
        %2162 = vmatprep.mubr.f32.mxu0 %v1948
        %2163 = vmatmul.mubr.f32.gmra.mrb[0].mxu0 %v1947
        %v2164 = vpop.f32.mrb[0].mxu0
        %v2165 = vadd.f32 0.0, %v2164
        %v2166 = vpop.f32.mrb[0].mxu0
        %2167 = vmatprep.mubr.f32.mxu0 %v1951
        %2168 = vmatmul.mubr.f32.gmra.mrb[0].mxu0 %v1950
        %v2169 = vpop.f32.mrb[0].mxu0
        %v2170 = vadd.f32 0.0, %v2169
        %v2171 = vpop.f32.mrb[0].mxu0
        %2172 = vmatprep.mubr.f32.mxu0 %v1954
        %2173 = vmatmul.mubr.f32.gmra.mrb[0].mxu0 %v1953
        %v2174 = vpop.f32.mrb[0].mxu0
        %v2175 = vadd.f32 0.0, %v2174
        %v2176 = vpop.f32.mrb[0].mxu0
        %2177 = vmatprep.mubr.f32.mxu0 %v1957
        %2178 = vmatmul.mubr.f32.gmra.mrb[0].mxu0 %v1956
        %v2179 = vpop.f32.mrb[0].mxu0
        %v2180 = vadd.f32 0.0, %v2179
        %v2181 = vpop.f32.mrb[0].mxu0
        %2182 = vmatprep.mubr.f32.mxu0 %v1960
        %2183 = vmatmul.mubr.f32.gmra.mrb[0].mxu0 %v1959
        %v2184 = vpop.f32.mrb[0].mxu0
        %v2185 = vadd.f32 0.0, %v2184
        %v2186 = vpop.f32.mrb[0].mxu0
        %2187 = vmatprep.mubr.f32.mxu0 %v1963
        %2188 = vmatmul.mubr.f32.gmra.mrb[0].mxu0 %v1962
        %v2189 = vpop.f32.mrb[0].mxu0
        %v2190 = vadd.f32 0.0, %v2189
        %v2191 = vpop.f32.mrb[0].mxu0
        %2192 = vmatprep.mubr.f32.mxu0 %v1966
        %2193 = vmatmul.mubr.f32.gmra.mrb[0].mxu0 %v1965
        %v2194 = vpop.f32.mrb[0].mxu0
        %v2195 = vadd.f32 0.0, %v2194
        %v2196 = vpop.f32.mrb[0].mxu0
        %2197 = vmatprep.mubr.f32.mxu0 %v1969
        %2198 = vmatmul.mubr.f32.gmra.mrb[0].mxu0 %v1968
        %v2199 = vpop.f32.mrb[0].mxu0
        %v2200 = vadd.f32 0.0, %v2199
        %v2201 = vpop.f32.mrb[0].mxu0
        %2202 = vmatprep.mubr.f32.mxu0 %v1972
        %2203 = vmatmul.mubr.f32.gmra.mrb[0].mxu0 %v1971
        %v2204 = vpop.f32.mrb[0].mxu0
        %v2205 = vadd.f32 0.0, %v2204
        %v2206 = vpop.f32.mrb[0].mxu0
        %2207 = vmatprep.mubr.f32.mxu0 %v1975
        %2208 = vmatmul.mubr.f32.gmra.mrb[0].mxu0 %v1974
        %v2209 = vpop.f32.mrb[0].mxu0
        %v2210 = vadd.f32 0.0, %v2209
        %v2211 = vpop.f32.mrb[0].mxu0
        %2212 = vmatprep.mubr.f32.mxu0 %v1978
        %2213 = vmatmul.mubr.f32.gmra.mrb[0].mxu0 %v1977
        %v2214 = vpop.f32.mrb[0].mxu0
        %v2215 = vadd.f32 0.0, %v2214
        %v2216 = vpop.f32.mrb[0].mxu0
        %2217 = vmatprep.mubr.f32.mxu0 %v1981
        %2218 = vmatmul.mubr.f32.gmra.mrb[0].mxu0 %v1980
        %v2219 = vpop.f32.mrb[0].mxu0
        %v2220 = vadd.f32 0.0, %v2219
        %v2221 = vpop.f32.mrb[0].mxu0
        %2222 = vmatprep.mubr.f32.mxu0 %v1984
        %2223 = vmatmul.mubr.f32.gmra.mrb[0].mxu0 %v1983
        %v2224 = vpop.f32.mrb[0].mxu0
        %v2225 = vadd.f32 0.0, %v2224
        %v2226 = vpop.f32.mrb[0].mxu0
        %2227 = vmatprep.mubr.f32.mxu0 %v1987
        %2228 = vmatmul.mubr.f32.gmra.mrb[0].mxu0 %v1986
        %v2229 = vpop.f32.mrb[0].mxu0
        %v2230 = vadd.f32 0.0, %v2229
        %v2231 = vpop.f32.mrb[0].mxu0
        %2232 = vmatprep.mubr.f32.mxu0 %v1990
        %2233 = vmatmul.mubr.f32.gmra.mrb[0].mxu0 %v1989
        %v2234 = vpop.f32.mrb[0].mxu0
        %v2235 = vadd.f32 0.0, %v2234
        %v2236 = vpop.f32.mrb[0].mxu0
        %2237 = vmatprep.mubr.f32.mxu0 %v1993
        %2238 = vmatmul.mubr.f32.gmra.mrb[0].mxu0 %v1992
        %v2239 = vpop.f32.mrb[0].mxu0
        %v2240 = vadd.f32 0.0, %v2239
        %v2241 = vpop.f32.mrb[0].mxu0
        %2242 = vmatprep.mubr.f32.mxu0 %v1996
        %2243 = vmatmul.mubr.f32.gmra.mrb[0].mxu0 %v1995
        %v2244 = vpop.f32.mrb[0].mxu0
        %v2245 = vadd.f32 0.0, %v2244
        %v2246 = vpop.f32.mrb[0].mxu0
        %2247 = vmatprep.mubr.f32.mxu0 %v1999
        %2248 = vmatmul.mubr.f32.gmra.mrb[0].mxu0 %v1998
        %v2249 = vpop.f32.mrb[0].mxu0
        %v2250 = vadd.f32 0.0, %v2249
        %v2251 = vpop.f32.mrb[0].mxu0
        %2252 = vmatprep.mubr.f32.mxu0 %v2002
        %2253 = vmatmul.mubr.f32.gmra.mrb[0].mxu0 %v2001
        %v2254 = vpop.f32.mrb[0].mxu0
        %v2255 = vadd.f32 0.0, %v2254
        %v2256 = vpop.f32.mrb[0].mxu0
        %2257 = vmatprep.mubr.f32.mxu0 %v2005
        %2258 = vmatmul.mubr.f32.gmra.mrb[0].mxu0 %v2004
        %v2259 = vpop.f32.mrb[0].mxu0
        %v2260 = vadd.f32 0.0, %v2259
        %v2261 = vpop.f32.mrb[0].mxu0
        %2262 = vmatprep.mubr.f32.mxu0 %v2008
        %2263 = vmatmul.mubr.f32.gmra.mrb[0].mxu0 %v2007
        %v2264 = vpop.f32.mrb[0].mxu0
        %v2265 = vadd.f32 0.0, %v2264
        %v2266 = vpop.f32.mrb[0].mxu0
        %2267 = vmatprep.mubr.f32.mxu0 %v2011
        %2268 = vmatmul.mubr.f32.gmra.mrb[0].mxu0 %v2010
        %v2269 = vpop.f32.mrb[0].mxu0
        %v2270 = vadd.f32 0.0, %v2269
        %v2271 = vpop.f32.mrb[0].mxu0
        %2272 = vmatprep.mubr.f32.mxu0 %v2014
        %2273 = vmatmul.mubr.f32.gmra.mrb[0].mxu0 %v2013
        %v2274 = vpop.f32.mrb[0].mxu0
        %v2275 = vadd.f32 0.0, %v2274
        %v2276 = vpop.f32.mrb[0].mxu0
        %2277 = vmatprep.mubr.f32.mxu0 %v2017
        %2278 = vmatmul.mubr.f32.gmra.mrb[0].mxu0 %v2016
        %v2279 = vpop.f32.mrb[0].mxu0
        %v2280 = vadd.f32 0.0, %v2279
        %v2281 = vpop.f32.mrb[0].mxu0
        %2282 = vmatprep.mubr.f32.mxu0 %v2020
        %2283 = vmatmul.mubr.f32.gmra.mrb[0].mxu0 %v2019
        %v2284 = vpop.f32.mrb[0].mxu0
        %v2285 = vadd.f32 0.0, %v2284
        %v2286 = vpop.f32.mrb[0].mxu0
        %2287 = vmatprep.mubr.f32.mxu0 %v2023
        %2288 = vmatmul.mubr.f32.gmra.mrb[0].mxu0 %v2022
        %v2289 = vpop.f32.mrb[0].mxu0
        %v2290 = vadd.f32 0.0, %v2289
        %v2291 = vpop.f32.mrb[0].mxu0
        %2292 = vmatprep.mubr.f32.mxu0 %v2026
        %2293 = vmatmul.mubr.f32.gmra.mrb[0].mxu0 %v2025
        %v2294 = vpop.f32.mrb[0].mxu0
        %v2295 = vadd.f32 0.0, %v2294
        %v2296 = vpop.f32.mrb[0].mxu0
        %2297 = vmatprep.mubr.f32.mxu0 %v2029
        %2298 = vmatmul.mubr.f32.gmra.mrb[0].mxu0 %v2028
        %v2299 = vpop.f32.mrb[0].mxu0
        %v2300 = vadd.f32 0.0, %v2299
        %v2301 = vpop.f32.mrb[0].mxu0
        %2302 = vmatprep.mubr.f32.mxu0 %v2032
        %2303 = vmatmul.mubr.f32.gmra.mrb[0].mxu0 %v2031
        %v2304 = vpop.f32.mrb[0].mxu0
        %v2305 = vadd.f32 0.0, %v2304
        %v2306 = vpop.f32.mrb[0].mxu0
        %2307 = vdwg.mxu0
        %2308 = vmatprep.subr.mxu0 0.0
        %2309 = vmatpush1.msra.mxu0 %v2067
        %2310 = vmatprep.subr.mxu0 0.0
        %2311 = vmatpush1.msra.mxu0 %v2068
        %2312 = vmatprep.subr.mxu0 0.0
        %2313 = vmatpush1.msra.mxu0 %v2069
        %2314 = vmatprep.subr.mxu0 0.0
        %2315 = vmatpush1.msra.mxu0 %v2070
        %2316 = vmatprep.subr.mxu0 0.0
        %2317 = vmatpush1.msra.mxu0 %v2071
        %2318 = vmatprep.subr.mxu0 0.0
        %2319 = vmatpush1.msra.mxu0 %v2072
        %2320 = vmatprep.subr.mxu0 0.0
        %2321 = vmatpush1.msra.mxu0 %v2073
        %2322 = vmatprep.subr.mxu0 0.0
        %2323 = vmatpush1.msra.mxu0 %v2074
        %2324 = vmatprep.subr.mxu0 0.0
        %2325 = vmatpush1.msra.mxu0 %v2075
        %2326 = vmatprep.subr.mxu0 0.0
        %2327 = vmatpush1.msra.mxu0 %v2076
        %2328 = vmatprep.subr.mxu0 0.0
        %2329 = vmatpush1.msra.mxu0 %v2077
        %2330 = vmatprep.subr.mxu0 0.0
        %2331 = vmatpush1.msra.mxu0 %v2078
        %2332 = vmatprep.subr.mxu0 0.0
        %2333 = vmatpush1.msra.mxu0 %v2079
        %2334 = vmatprep.subr.mxu0 0.0
        %2335 = vmatpush1.msra.mxu0 %v2080
        %2336 = vmatprep.subr.mxu0 0.0
        %2337 = vmatpush1.msra.mxu0 %v2081
        %2338 = vmatprep.subr.mxu0 0.0
        %2339 = vmatpush1.msra.mxu0 %v2082
        %2340 = vmatprep.subr.mxu0 0.0
        %2341 = vmatpush1.msra.mxu0 0.0
        %2342 = vmatprep.subr.mxu0 0.0
        %2343 = vmatpush1.msra.mxu0 0.0
        %2344 = vmatprep.subr.mxu0 0.0
        %2345 = vmatpush1.msra.mxu0 0.0
        %2346 = vmatprep.subr.mxu0 0.0
        %2347 = vmatpush1.msra.mxu0 0.0
        %2348 = vmatprep.subr.mxu0 0.0
        %2349 = vmatpush1.msra.mxu0 0.0
        %2350 = vmatprep.subr.mxu0 0.0
        %2351 = vmatpush1.msra.mxu0 0.0
        %2352 = vmatprep.subr.mxu0 0.0
        %2353 = vmatpush1.msra.mxu0 0.0
        %2354 = vmatprep.subr.mxu0 0.0
        %2355 = vmatpush1.msra.mxu0 0.0
        %2356 = vmatprep.subr.mxu0 0.0
        %2357 = vmatpush1.msra.mxu0 0.0
        %2358 = vmatprep.subr.mxu0 0.0
        %2359 = vmatpush1.msra.mxu0 0.0
        %2360 = vmatprep.subr.mxu0 0.0
        %2361 = vmatpush1.msra.mxu0 0.0
        %2362 = vmatprep.subr.mxu0 0.0
        %2363 = vmatpush1.msra.mxu0 0.0
        %2364 = vmatprep.subr.mxu0 0.0
        %2365 = vmatpush1.msra.mxu0 0.0
        %2366 = vmatprep.subr.mxu0 0.0
        %2367 = vmatpush1.msra.mxu0 0.0
        %2368 = vmatprep.subr.mxu0 0.0
        %2369 = vmatpush1.msra.mxu0 0.0
        %2370 = vmatprep.subr.mxu0 0.0
        %2371 = vmatpush1.msra.mxu0 0.0
        %2372 = vmatprep.mubr.f32.mxu0 0.0
        %2373 = vmatmul.mubr.f32.gmra.mrb[0].mxu0 %v1940
        %v2374 = vpop.f32.mrb[0].mxu0
        %v2375 = vadd.f32 %v2150, %v2374
        %v2376 = vpop.f32.mrb[0].mxu0
        %2377 = vmatprep.mubr.f32.mxu0 0.0
        %2378 = vmatmul.mubr.f32.gmra.mrb[0].mxu0 %v1943
        %v2379 = vpop.f32.mrb[0].mxu0
        %v2380 = vadd.f32 %v2155, %v2379
        %v2381 = vpop.f32.mrb[0].mxu0
        %2382 = vmatprep.mubr.f32.mxu0 0.0
        %2383 = vmatmul.mubr.f32.gmra.mrb[0].mxu0 %v1946
        %v2384 = vpop.f32.mrb[0].mxu0
        %v2385 = vadd.f32 %v2160, %v2384
        %v2386 = vpop.f32.mrb[0].mxu0
        %2387 = vmatprep.mubr.f32.mxu0 0.0
        %2388 = vmatmul.mubr.f32.gmra.mrb[0].mxu0 %v1949
        %v2389 = vpop.f32.mrb[0].mxu0
        %v2390 = vadd.f32 %v2165, %v2389
        %v2391 = vpop.f32.mrb[0].mxu0
        %2392 = vmatprep.mubr.f32.mxu0 0.0
        %2393 = vmatmul.mubr.f32.gmra.mrb[0].mxu0 %v1952
        %v2394 = vpop.f32.mrb[0].mxu0
        %v2395 = vadd.f32 %v2170, %v2394
        %v2396 = vpop.f32.mrb[0].mxu0
        %2397 = vmatprep.mubr.f32.mxu0 0.0
        %2398 = vmatmul.mubr.f32.gmra.mrb[0].mxu0 %v1955
        %v2399 = vpop.f32.mrb[0].mxu0
        %v2400 = vadd.f32 %v2175, %v2399
        %v2401 = vpop.f32.mrb[0].mxu0
        %2402 = vmatprep.mubr.f32.mxu0 0.0
        %2403 = vmatmul.mubr.f32.gmra.mrb[0].mxu0 %v1958
        %v2404 = vpop.f32.mrb[0].mxu0
        %v2405 = vadd.f32 %v2180, %v2404
        %v2406 = vpop.f32.mrb[0].mxu0
        %2407 = vmatprep.mubr.f32.mxu0 0.0
        %2408 = vmatmul.mubr.f32.gmra.mrb[0].mxu0 %v1961
        %v2409 = vpop.f32.mrb[0].mxu0
        %v2410 = vadd.f32 %v2185, %v2409
        %v2411 = vpop.f32.mrb[0].mxu0
        %2412 = vmatprep.mubr.f32.mxu0 0.0
        %2413 = vmatmul.mubr.f32.gmra.mrb[0].mxu0 %v1964
        %v2414 = vpop.f32.mrb[0].mxu0
        %v2415 = vadd.f32 %v2190, %v2414
        %v2416 = vpop.f32.mrb[0].mxu0
        %2417 = vmatprep.mubr.f32.mxu0 0.0
        %2418 = vmatmul.mubr.f32.gmra.mrb[0].mxu0 %v1967
        %v2419 = vpop.f32.mrb[0].mxu0
        %v2420 = vadd.f32 %v2195, %v2419
        %v2421 = vpop.f32.mrb[0].mxu0
        %2422 = vmatprep.mubr.f32.mxu0 0.0
        %2423 = vmatmul.mubr.f32.gmra.mrb[0].mxu0 %v1970
        %v2424 = vpop.f32.mrb[0].mxu0
        %v2425 = vadd.f32 %v2200, %v2424
        %v2426 = vpop.f32.mrb[0].mxu0
        %2427 = vmatprep.mubr.f32.mxu0 0.0
        %2428 = vmatmul.mubr.f32.gmra.mrb[0].mxu0 %v1973
        %v2429 = vpop.f32.mrb[0].mxu0
        %v2430 = vadd.f32 %v2205, %v2429
        %v2431 = vpop.f32.mrb[0].mxu0
        %2432 = vmatprep.mubr.f32.mxu0 0.0
        %2433 = vmatmul.mubr.f32.gmra.mrb[0].mxu0 %v1976
        %v2434 = vpop.f32.mrb[0].mxu0
        %v2435 = vadd.f32 %v2210, %v2434
        %v2436 = vpop.f32.mrb[0].mxu0
        %2437 = vmatprep.mubr.f32.mxu0 0.0
        %2438 = vmatmul.mubr.f32.gmra.mrb[0].mxu0 %v1979
        %v2439 = vpop.f32.mrb[0].mxu0
        %v2440 = vadd.f32 %v2215, %v2439
        %v2441 = vpop.f32.mrb[0].mxu0
        %2442 = vmatprep.mubr.f32.mxu0 0.0
        %2443 = vmatmul.mubr.f32.gmra.mrb[0].mxu0 %v1982
        %v2444 = vpop.f32.mrb[0].mxu0
        %v2445 = vadd.f32 %v2220, %v2444
        %v2446 = vpop.f32.mrb[0].mxu0
        %2447 = vmatprep.mubr.f32.mxu0 0.0
        %2448 = vmatmul.mubr.f32.gmra.mrb[0].mxu0 %v1985
        %v2449 = vpop.f32.mrb[0].mxu0
        %v2450 = vadd.f32 %v2225, %v2449
        %v2451 = vpop.f32.mrb[0].mxu0
        %2452 = vmatprep.mubr.f32.mxu0 0.0
        %2453 = vmatmul.mubr.f32.gmra.mrb[0].mxu0 %v1988
        %v2454 = vpop.f32.mrb[0].mxu0
        %v2455 = vadd.f32 %v2230, %v2454
        %v2456 = vpop.f32.mrb[0].mxu0
        %2457 = vmatprep.mubr.f32.mxu0 0.0
        %2458 = vmatmul.mubr.f32.gmra.mrb[0].mxu0 %v1991
        %v2459 = vpop.f32.mrb[0].mxu0
        %v2460 = vadd.f32 %v2235, %v2459
        %v2461 = vpop.f32.mrb[0].mxu0
        %2462 = vmatprep.mubr.f32.mxu0 0.0
        %2463 = vmatmul.mubr.f32.gmra.mrb[0].mxu0 %v1994
        %v2464 = vpop.f32.mrb[0].mxu0
        %v2465 = vadd.f32 %v2240, %v2464
        %v2466 = vpop.f32.mrb[0].mxu0
        %2467 = vmatprep.mubr.f32.mxu0 0.0
        %2468 = vmatmul.mubr.f32.gmra.mrb[0].mxu0 %v1997
        %v2469 = vpop.f32.mrb[0].mxu0
        %v2470 = vadd.f32 %v2245, %v2469
        %v2471 = vpop.f32.mrb[0].mxu0
        %2472 = vmatprep.mubr.f32.mxu0 0.0
        %2473 = vmatmul.mubr.f32.gmra.mrb[0].mxu0 %v2000
        %v2474 = vpop.f32.mrb[0].mxu0
        %v2475 = vadd.f32 %v2250, %v2474
        %v2476 = vpop.f32.mrb[0].mxu0
        %2477 = vmatprep.mubr.f32.mxu0 0.0
        %2478 = vmatmul.mubr.f32.gmra.mrb[0].mxu0 %v2003
        %v2479 = vpop.f32.mrb[0].mxu0
        %v2480 = vadd.f32 %v2255, %v2479
        %v2481 = vpop.f32.mrb[0].mxu0
        %2482 = vmatprep.mubr.f32.mxu0 0.0
        %2483 = vmatmul.mubr.f32.gmra.mrb[0].mxu0 %v2006
        %v2484 = vpop.f32.mrb[0].mxu0
        %v2485 = vadd.f32 %v2260, %v2484
        %v2486 = vpop.f32.mrb[0].mxu0
        %2487 = vmatprep.mubr.f32.mxu0 0.0
        %2488 = vmatmul.mubr.f32.gmra.mrb[0].mxu0 %v2009
        %v2489 = vpop.f32.mrb[0].mxu0
        %v2490 = vadd.f32 %v2265, %v2489
        %v2491 = vpop.f32.mrb[0].mxu0
        %2492 = vmatprep.mubr.f32.mxu0 0.0
        %2493 = vmatmul.mubr.f32.gmra.mrb[0].mxu0 %v2012
        %v2494 = vpop.f32.mrb[0].mxu0
        %v2495 = vadd.f32 %v2270, %v2494
        %v2496 = vpop.f32.mrb[0].mxu0
        %2497 = vmatprep.mubr.f32.mxu0 0.0
        %2498 = vmatmul.mubr.f32.gmra.mrb[0].mxu0 %v2015
        %v2499 = vpop.f32.mrb[0].mxu0
        %v2500 = vadd.f32 %v2275, %v2499
        %v2501 = vpop.f32.mrb[0].mxu0
        %2502 = vmatprep.mubr.f32.mxu0 0.0
        %2503 = vmatmul.mubr.f32.gmra.mrb[0].mxu0 %v2018
        %v2504 = vpop.f32.mrb[0].mxu0
        %v2505 = vadd.f32 %v2280, %v2504
        %v2506 = vpop.f32.mrb[0].mxu0
        %2507 = vmatprep.mubr.f32.mxu0 0.0
        %2508 = vmatmul.mubr.f32.gmra.mrb[0].mxu0 %v2021
        %v2509 = vpop.f32.mrb[0].mxu0
        %v2510 = vadd.f32 %v2285, %v2509
        %v2511 = vpop.f32.mrb[0].mxu0
        %2512 = vmatprep.mubr.f32.mxu0 0.0
        %2513 = vmatmul.mubr.f32.gmra.mrb[0].mxu0 %v2024
        %v2514 = vpop.f32.mrb[0].mxu0
        %v2515 = vadd.f32 %v2290, %v2514
        %v2516 = vpop.f32.mrb[0].mxu0
        %2517 = vmatprep.mubr.f32.mxu0 0.0
        %2518 = vmatmul.mubr.f32.gmra.mrb[0].mxu0 %v2027
        %v2519 = vpop.f32.mrb[0].mxu0
        %v2520 = vadd.f32 %v2295, %v2519
        %v2521 = vpop.f32.mrb[0].mxu0
        %2522 = vmatprep.mubr.f32.mxu0 0.0
        %2523 = vmatmul.mubr.f32.gmra.mrb[0].mxu0 %v2030
        %v2524 = vpop.f32.mrb[0].mxu0
        %v2525 = vadd.f32 %v2300, %v2524
        %v2526 = vpop.f32.mrb[0].mxu0
        %2527 = vmatprep.mubr.f32.mxu0 0.0
        %2528 = vmatmul.mubr.f32.gmra.mrb[0].mxu0 %v2033
        %v2529 = vpop.f32.mrb[0].mxu0
        %v2530 = vadd.f32 %v2305, %v2529
        %v2531 = vpop.f32.mrb[0].mxu0
        %2532 = vdwg.mxu0
        %v2533 = vadd.f32 %v1779, %v2375
        %v2534 = vadd.f32 %v1784, %v2380
        %v2535 = vadd.f32 %v1789, %v2385
        %v2536 = vadd.f32 %v1794, %v2390
        %v2537 = vadd.f32 %v1799, %v2395
        %v2538 = vadd.f32 %v1804, %v2400
        %v2539 = vadd.f32 %v1809, %v2405
        %v2540 = vadd.f32 %v1814, %v2410
        %v2541 = vadd.f32 %v1819, %v2415
        %v2542 = vadd.f32 %v1824, %v2420
        %v2543 = vadd.f32 %v1829, %v2425
        %v2544 = vadd.f32 %v1834, %v2430
        %v2545 = vadd.f32 %v1839, %v2435
        %v2546 = vadd.f32 %v1844, %v2440
        %v2547 = vadd.f32 %v1849, %v2445
        %v2548 = vadd.f32 %v1854, %v2450
        %v2549 = vadd.f32 %v1859, %v2455
        %v2550 = vadd.f32 %v1864, %v2460
        %v2551 = vadd.f32 %v1869, %v2465
        %v2552 = vadd.f32 %v1874, %v2470
        %v2553 = vadd.f32 %v1879, %v2475
        %v2554 = vadd.f32 %v1884, %v2480
        %v2555 = vadd.f32 %v1889, %v2485
        %v2556 = vadd.f32 %v1894, %v2490
        %v2557 = vadd.f32 %v1899, %v2495
        %v2558 = vadd.f32 %v1904, %v2500
        %v2559 = vadd.f32 %v1909, %v2505
        %v2560 = vadd.f32 %v1914, %v2510
        %v2561 = vadd.f32 %v1919, %v2515
        %v2562 = vadd.f32 %v1924, %v2520
        %v2563 = vadd.f32 %v1929, %v2525
        %v2564 = vadd.f32 %v1934, %v2530
        %v2566 = vlaneseq
        %v2567 = vshrl.u32 %v2566, 7
        %v2568 = vsub.s32 0, %v2567
        %v2569 = vrot.slane %v376, %v2568
        %v2571 = vmul.f32 %v2533, %v2569
        %v2572 = vmul.f32 %v2534, %v2569
        %v2573 = vmul.f32 %v2535, %v2569
        %v2574 = vmul.f32 %v2536, %v2569
        %v2575 = vmul.f32 %v2537, %v2569
        %v2576 = vmul.f32 %v2538, %v2569
        %v2577 = vmul.f32 %v2539, %v2569
        %v2578 = vmul.f32 %v2540, %v2569
        %v2579 = vmul.f32 %v2541, %v2569
        %v2580 = vmul.f32 %v2542, %v2569
        %v2581 = vmul.f32 %v2543, %v2569
        %v2582 = vmul.f32 %v2544, %v2569
        %v2583 = vmul.f32 %v2545, %v2569
        %v2584 = vmul.f32 %v2546, %v2569
        %v2585 = vmul.f32 %v2547, %v2569
        %v2586 = vmul.f32 %v2548, %v2569
        %v2587 = vmul.f32 %v2549, %v2569
        %v2588 = vmul.f32 %v2550, %v2569
        %v2589 = vmul.f32 %v2551, %v2569
        %v2590 = vmul.f32 %v2552, %v2569
        %v2591 = vmul.f32 %v2553, %v2569
        %v2592 = vmul.f32 %v2554, %v2569
        %v2593 = vmul.f32 %v2555, %v2569
        %v2594 = vmul.f32 %v2556, %v2569
        %v2595 = vmul.f32 %v2557, %v2569
        %v2596 = vmul.f32 %v2558, %v2569
        %v2597 = vmul.f32 %v2559, %v2569
        %v2598 = vmul.f32 %v2560, %v2569
        %v2599 = vmul.f32 %v2561, %v2569
        %v2600 = vmul.f32 %v2562, %v2569
        %v2601 = vmul.f32 %v2563, %v2569
        %v2602 = vmul.f32 %v2564, %v2569
        %v2604 = vlaneseq
        %v2605 = vshrl.u32 %v2604, 7
        %v2606 = vsub.s32 0, %v2605
        %v2607 = vrot.slane %v377, %v2606
        %v2609 = vadd.f32 %v2571, %v2607
        %v2610 = vadd.f32 %v2572, %v2607
        %v2611 = vadd.f32 %v2573, %v2607
        %v2612 = vadd.f32 %v2574, %v2607
        %v2613 = vadd.f32 %v2575, %v2607
        %v2614 = vadd.f32 %v2576, %v2607
        %v2615 = vadd.f32 %v2577, %v2607
        %v2616 = vadd.f32 %v2578, %v2607
        %v2617 = vadd.f32 %v2579, %v2607
        %v2618 = vadd.f32 %v2580, %v2607
        %v2619 = vadd.f32 %v2581, %v2607
        %v2620 = vadd.f32 %v2582, %v2607
        %v2621 = vadd.f32 %v2583, %v2607
        %v2622 = vadd.f32 %v2584, %v2607
        %v2623 = vadd.f32 %v2585, %v2607
        %v2624 = vadd.f32 %v2586, %v2607
        %v2625 = vadd.f32 %v2587, %v2607
        %v2626 = vadd.f32 %v2588, %v2607
        %v2627 = vadd.f32 %v2589, %v2607
        %v2628 = vadd.f32 %v2590, %v2607
        %v2629 = vadd.f32 %v2591, %v2607
        %v2630 = vadd.f32 %v2592, %v2607
        %v2631 = vadd.f32 %v2593, %v2607
        %v2632 = vadd.f32 %v2594, %v2607
        %v2633 = vadd.f32 %v2595, %v2607
        %v2634 = vadd.f32 %v2596, %v2607
        %v2635 = vadd.f32 %v2597, %v2607
        %v2636 = vadd.f32 %v2598, %v2607
        %v2637 = vadd.f32 %v2599, %v2607
        %v2638 = vadd.f32 %v2600, %v2607
        %v2639 = vadd.f32 %v2601, %v2607
        %v2640 = vadd.f32 %v2602, %v2607
        %v2641 = vmax.f32 %v2609, 0.0
        %v2642 = vmax.f32 %v2610, 0.0
        %v2643 = vmax.f32 %v2611, 0.0
        %v2644 = vmax.f32 %v2612, 0.0
        %v2645 = vmax.f32 %v2613, 0.0
        %v2646 = vmax.f32 %v2614, 0.0
        %v2647 = vmax.f32 %v2615, 0.0
        %v2648 = vmax.f32 %v2616, 0.0
        %v2649 = vmax.f32 %v2617, 0.0
        %v2650 = vmax.f32 %v2618, 0.0
        %v2651 = vmax.f32 %v2619, 0.0
        %v2652 = vmax.f32 %v2620, 0.0
        %v2653 = vmax.f32 %v2621, 0.0
        %v2654 = vmax.f32 %v2622, 0.0
        %v2655 = vmax.f32 %v2623, 0.0
        %v2656 = vmax.f32 %v2624, 0.0
        %v2657 = vmax.f32 %v2625, 0.0
        %v2658 = vmax.f32 %v2626, 0.0
        %v2659 = vmax.f32 %v2627, 0.0
        %v2660 = vmax.f32 %v2628, 0.0
        %v2661 = vmax.f32 %v2629, 0.0
        %v2662 = vmax.f32 %v2630, 0.0
        %v2663 = vmax.f32 %v2631, 0.0
        %v2664 = vmax.f32 %v2632, 0.0
        %v2665 = vmax.f32 %v2633, 0.0
        %v2666 = vmax.f32 %v2634, 0.0
        %v2667 = vmax.f32 %v2635, 0.0
        %v2668 = vmax.f32 %v2636, 0.0
        %v2669 = vmax.f32 %v2637, 0.0
        %v2670 = vmax.f32 %v2638, 0.0
        %v2671 = vmax.f32 %v2639, 0.0
        %v2672 = vmax.f32 %v2640, 0.0
        %v2705 = vrot.slane %v2641, 7
        %v2706 = vrot.slane %v2642, 7
        %v2707 = vsel %vm457, %v2705, %v2706
        %v2708 = vrot.slane %v2643, 7
        %v2709 = vrot.slane %v2644, 7
        %v2710 = vsel %vm457, %v2708, %v2709
        %v2711 = vrot.slane %v2645, 7
        %v2712 = vrot.slane %v2646, 7
        %v2713 = vsel %vm457, %v2711, %v2712
        %v2714 = vrot.slane %v2647, 7
        %v2715 = vrot.slane %v2648, 7
        %v2716 = vsel %vm457, %v2714, %v2715
        %v2717 = vrot.slane %v2649, 7
        %v2718 = vrot.slane %v2650, 7
        %v2719 = vsel %vm457, %v2717, %v2718
        %v2720 = vrot.slane %v2651, 7
        %v2721 = vrot.slane %v2652, 7
        %v2722 = vsel %vm457, %v2720, %v2721
        %v2723 = vrot.slane %v2653, 7
        %v2724 = vrot.slane %v2654, 7
        %v2725 = vsel %vm457, %v2723, %v2724
        %v2726 = vrot.slane %v2655, 7
        %v2727 = vrot.slane %v2656, 7
        %v2728 = vsel %vm457, %v2726, %v2727
        %v2729 = vrot.slane %v2657, 7
        %v2730 = vrot.slane %v2658, 7
        %v2731 = vsel %vm457, %v2729, %v2730
        %v2732 = vrot.slane %v2659, 7
        %v2733 = vrot.slane %v2660, 7
        %v2734 = vsel %vm457, %v2732, %v2733
        %v2735 = vrot.slane %v2661, 7
        %v2736 = vrot.slane %v2662, 7
        %v2737 = vsel %vm457, %v2735, %v2736
        %v2738 = vrot.slane %v2663, 7
        %v2739 = vrot.slane %v2664, 7
        %v2740 = vsel %vm457, %v2738, %v2739
        %v2741 = vrot.slane %v2665, 7
        %v2742 = vrot.slane %v2666, 7
        %v2743 = vsel %vm457, %v2741, %v2742
        %v2744 = vrot.slane %v2667, 7
        %v2745 = vrot.slane %v2668, 7
        %v2746 = vsel %vm457, %v2744, %v2745
        %v2747 = vrot.slane %v2669, 7
        %v2748 = vrot.slane %v2670, 7
        %v2749 = vsel %vm457, %v2747, %v2748
        %v2750 = vrot.slane %v2671, 7
        %v2751 = vrot.slane %v2672, 7
        %v2752 = vsel %vm457, %v2750, %v2751
        %v2785 = vsel %vm457, 0.0, %v2705
        %v2786 = vsel %vm457, 0.0, %v2708
        %v2787 = vsel %vm457, 0.0, %v2711
        %v2788 = vsel %vm457, 0.0, %v2714
        %v2789 = vsel %vm457, 0.0, %v2717
        %v2790 = vsel %vm457, 0.0, %v2720
        %v2791 = vsel %vm457, 0.0, %v2723
        %v2792 = vsel %vm457, 0.0, %v2726
        %v2793 = vsel %vm457, 0.0, %v2729
        %v2794 = vsel %vm457, 0.0, %v2732
        %v2795 = vsel %vm457, 0.0, %v2735
        %v2796 = vsel %vm457, 0.0, %v2738
        %v2797 = vsel %vm457, 0.0, %v2741
        %v2798 = vsel %vm457, 0.0, %v2744
        %v2799 = vsel %vm457, 0.0, %v2747
        %v2800 = vsel %vm457, 0.0, %v2750
        %v2801 = vrot.slane %v2641, 1
        %v2802 = vrot.slane %v2642, 1
        %v2803 = vsel %vm554, %v2801, %v2802
        %v2804 = vrot.slane %v2643, 1
        %v2805 = vrot.slane %v2644, 1
        %v2806 = vsel %vm554, %v2804, %v2805
        %v2807 = vrot.slane %v2645, 1
        %v2808 = vrot.slane %v2646, 1
        %v2809 = vsel %vm554, %v2807, %v2808
        %v2810 = vrot.slane %v2647, 1
        %v2811 = vrot.slane %v2648, 1
        %v2812 = vsel %vm554, %v2810, %v2811
        %v2813 = vrot.slane %v2649, 1
        %v2814 = vrot.slane %v2650, 1
        %v2815 = vsel %vm554, %v2813, %v2814
        %v2816 = vrot.slane %v2651, 1
        %v2817 = vrot.slane %v2652, 1
        %v2818 = vsel %vm554, %v2816, %v2817
        %v2819 = vrot.slane %v2653, 1
        %v2820 = vrot.slane %v2654, 1
        %v2821 = vsel %vm554, %v2819, %v2820
        %v2822 = vrot.slane %v2655, 1
        %v2823 = vrot.slane %v2656, 1
        %v2824 = vsel %vm554, %v2822, %v2823
        %v2825 = vrot.slane %v2657, 1
        %v2826 = vrot.slane %v2658, 1
        %v2827 = vsel %vm554, %v2825, %v2826
        %v2828 = vrot.slane %v2659, 1
        %v2829 = vrot.slane %v2660, 1
        %v2830 = vsel %vm554, %v2828, %v2829
        %v2831 = vrot.slane %v2661, 1
        %v2832 = vrot.slane %v2662, 1
        %v2833 = vsel %vm554, %v2831, %v2832
        %v2834 = vrot.slane %v2663, 1
        %v2835 = vrot.slane %v2664, 1
        %v2836 = vsel %vm554, %v2834, %v2835
        %v2837 = vrot.slane %v2665, 1
        %v2838 = vrot.slane %v2666, 1
        %v2839 = vsel %vm554, %v2837, %v2838
        %v2840 = vrot.slane %v2667, 1
        %v2841 = vrot.slane %v2668, 1
        %v2842 = vsel %vm554, %v2840, %v2841
        %v2843 = vrot.slane %v2669, 1
        %v2844 = vrot.slane %v2670, 1
        %v2845 = vsel %vm554, %v2843, %v2844
        %v2846 = vrot.slane %v2671, 1
        %v2847 = vrot.slane %v2672, 1
        %v2848 = vsel %vm554, %v2846, %v2847
        %v2881 = vsel %vm554, %v2802, 0.0
        %v2882 = vsel %vm554, %v2805, 0.0
        %v2883 = vsel %vm554, %v2808, 0.0
        %v2884 = vsel %vm554, %v2811, 0.0
        %v2885 = vsel %vm554, %v2814, 0.0
        %v2886 = vsel %vm554, %v2817, 0.0
        %v2887 = vsel %vm554, %v2820, 0.0
        %v2888 = vsel %vm554, %v2823, 0.0
        %v2889 = vsel %vm554, %v2826, 0.0
        %v2890 = vsel %vm554, %v2829, 0.0
        %v2891 = vsel %vm554, %v2832, 0.0
        %v2892 = vsel %vm554, %v2835, 0.0
        %v2893 = vsel %vm554, %v2838, 0.0
        %v2894 = vsel %vm554, %v2841, 0.0
        %v2895 = vsel %vm554, %v2844, 0.0
        %v2896 = vsel %vm554, %v2847, 0.0
        %2897 = vst [vmem:[%s651] sm:$0xff] %v2785
        %2898 = vst [vmem:[%s651 + $0x18] sm:$0xff] %v2707
        %2899 = vst [vmem:[%s651 + $0x30] sm:$0xff] %v2786
        %2900 = vst [vmem:[%s651 + $0x48] sm:$0xff] %v2710
        %2901 = vst [vmem:[%s651 + $0x60] sm:$0xff] %v2787
        %2902 = vst [vmem:[%s651 + $0x78] sm:$0xff] %v2713
        %2903 = vst [vmem:[%s651 + $0x90] sm:$0xff] %v2788
        %2904 = vst [vmem:[%s651 + $0xa8] sm:$0xff] %v2716
        %2905 = vst [vmem:[%s651 + $0xc0] sm:$0xff] %v2789
        %2906 = vst [vmem:[%s651 + $0xd8] sm:$0xff] %v2719
        %2907 = vst [vmem:[%s651 + $0xf0] sm:$0xff] %v2790
        %2908 = vst [vmem:[%s651 + $0x108] sm:$0xff] %v2722
        %2909 = vst [vmem:[%s651 + $0x120] sm:$0xff] %v2791
        %2910 = vst [vmem:[%s651 + $0x138] sm:$0xff] %v2725
        %2911 = vst [vmem:[%s651 + $0x150] sm:$0xff] %v2792
        %2912 = vst [vmem:[%s651 + $0x168] sm:$0xff] %v2728
        %2913 = vst [vmem:[%s651 + $0x180] sm:$0xff] %v2793
        %2914 = vst [vmem:[%s651 + $0x198] sm:$0xff] %v2731
        %2915 = vst [vmem:[%s651 + $0x1b0] sm:$0xff] %v2794
        %2916 = vst [vmem:[%s651 + $0x1c8] sm:$0xff] %v2734
        %2917 = vst [vmem:[%s651 + $0x1e0] sm:$0xff] %v2795
        %2918 = vst [vmem:[%s651 + $0x1f8] sm:$0xff] %v2737
        %2919 = vst [vmem:[%s651 + $0x210] sm:$0xff] %v2796
        %2920 = vst [vmem:[%s651 + $0x228] sm:$0xff] %v2740
        %2921 = vst [vmem:[%s651 + $0x240] sm:$0xff] %v2797
        %2922 = vst [vmem:[%s651 + $0x258] sm:$0xff] %v2743
        %2923 = vst [vmem:[%s651 + $0x270] sm:$0xff] %v2798
        %2924 = vst [vmem:[%s651 + $0x288] sm:$0xff] %v2746
        %2925 = vst [vmem:[%s651 + $0x2a0] sm:$0xff] %v2799
        %2926 = vst [vmem:[%s651 + $0x2b8] sm:$0xff] %v2749
        %2927 = vst [vmem:[%s651 + $0x2d0] sm:$0xff] %v2800
        %2928 = vst [vmem:[%s651 + $0x2e8] sm:$0xff] %v2752
        %2929 = vst [vmem:[%s651 + $0x8] sm:$0xff] %v2641
        %2930 = vst [vmem:[%s651 + $0x20] sm:$0xff] %v2642
        %2931 = vst [vmem:[%s651 + $0x38] sm:$0xff] %v2643
        %2932 = vst [vmem:[%s651 + $0x50] sm:$0xff] %v2644
        %2933 = vst [vmem:[%s651 + $0x68] sm:$0xff] %v2645
        %2934 = vst [vmem:[%s651 + $0x80] sm:$0xff] %v2646
        %2935 = vst [vmem:[%s651 + $0x98] sm:$0xff] %v2647
        %2936 = vst [vmem:[%s651 + $0xb0] sm:$0xff] %v2648
        %2937 = vst [vmem:[%s651 + $0xc8] sm:$0xff] %v2649
        %2938 = vst [vmem:[%s651 + $0xe0] sm:$0xff] %v2650
        %2939 = vst [vmem:[%s651 + $0xf8] sm:$0xff] %v2651
        %2940 = vst [vmem:[%s651 + $0x110] sm:$0xff] %v2652
        %2941 = vst [vmem:[%s651 + $0x128] sm:$0xff] %v2653
        %2942 = vst [vmem:[%s651 + $0x140] sm:$0xff] %v2654
        %2943 = vst [vmem:[%s651 + $0x158] sm:$0xff] %v2655
        %2944 = vst [vmem:[%s651 + $0x170] sm:$0xff] %v2656
        %2945 = vst [vmem:[%s651 + $0x188] sm:$0xff] %v2657
        %2946 = vst [vmem:[%s651 + $0x1a0] sm:$0xff] %v2658
        %2947 = vst [vmem:[%s651 + $0x1b8] sm:$0xff] %v2659
        %2948 = vst [vmem:[%s651 + $0x1d0] sm:$0xff] %v2660
        %2949 = vst [vmem:[%s651 + $0x1e8] sm:$0xff] %v2661
        %2950 = vst [vmem:[%s651 + $0x200] sm:$0xff] %v2662
        %2951 = vst [vmem:[%s651 + $0x218] sm:$0xff] %v2663
        %2952 = vst [vmem:[%s651 + $0x230] sm:$0xff] %v2664
        %2953 = vst [vmem:[%s651 + $0x248] sm:$0xff] %v2665
        %2954 = vst [vmem:[%s651 + $0x260] sm:$0xff] %v2666
        %2955 = vst [vmem:[%s651 + $0x278] sm:$0xff] %v2667
        %2956 = vst [vmem:[%s651 + $0x290] sm:$0xff] %v2668
        %2957 = vst [vmem:[%s651 + $0x2a8] sm:$0xff] %v2669
        %2958 = vst [vmem:[%s651 + $0x2c0] sm:$0xff] %v2670
        %2959 = vst [vmem:[%s651 + $0x2d8] sm:$0xff] %v2671
        %2960 = vst [vmem:[%s651 + $0x2f0] sm:$0xff] %v2672
        %2961 = vst [vmem:[%s651 + $0x10] sm:$0xff] %v2803
        %2962 = vst [vmem:[%s651 + $0x28] sm:$0xff] %v2881
        %2963 = vst [vmem:[%s651 + $0x40] sm:$0xff] %v2806
        %2964 = vst [vmem:[%s651 + $0x58] sm:$0xff] %v2882
        %2965 = vst [vmem:[%s651 + $0x70] sm:$0xff] %v2809
        %2966 = vst [vmem:[%s651 + $0x88] sm:$0xff] %v2883
        %2967 = vst [vmem:[%s651 + $0xa0] sm:$0xff] %v2812
        %2968 = vst [vmem:[%s651 + $0xb8] sm:$0xff] %v2884
        %2969 = vst [vmem:[%s651 + $0xd0] sm:$0xff] %v2815
        %2970 = vst [vmem:[%s651 + $0xe8] sm:$0xff] %v2885
        %2971 = vst [vmem:[%s651 + $0x100] sm:$0xff] %v2818
        %2972 = vst [vmem:[%s651 + $0x118] sm:$0xff] %v2886
        %2973 = vst [vmem:[%s651 + $0x130] sm:$0xff] %v2821
        %2974 = vst [vmem:[%s651 + $0x148] sm:$0xff] %v2887
        %2975 = vst [vmem:[%s651 + $0x160] sm:$0xff] %v2824
        %2976 = vst [vmem:[%s651 + $0x178] sm:$0xff] %v2888
        %2977 = vst [vmem:[%s651 + $0x190] sm:$0xff] %v2827
        %2978 = vst [vmem:[%s651 + $0x1a8] sm:$0xff] %v2889
        %2979 = vst [vmem:[%s651 + $0x1c0] sm:$0xff] %v2830
        %2980 = vst [vmem:[%s651 + $0x1d8] sm:$0xff] %v2890
        %2981 = vst [vmem:[%s651 + $0x1f0] sm:$0xff] %v2833
        %2982 = vst [vmem:[%s651 + $0x208] sm:$0xff] %v2891
        %2983 = vst [vmem:[%s651 + $0x220] sm:$0xff] %v2836
        %2984 = vst [vmem:[%s651 + $0x238] sm:$0xff] %v2892
        %2985 = vst [vmem:[%s651 + $0x250] sm:$0xff] %v2839
        %2986 = vst [vmem:[%s651 + $0x268] sm:$0xff] %v2893
        %2987 = vst [vmem:[%s651 + $0x280] sm:$0xff] %v2842
        %2988 = vst [vmem:[%s651 + $0x298] sm:$0xff] %v2894
        %2989 = vst [vmem:[%s651 + $0x2b0] sm:$0xff] %v2845
        %2990 = vst [vmem:[%s651 + $0x2c8] sm:$0xff] %v2895
        %2991 = vst [vmem:[%s651 + $0x2e0] sm:$0xff] %v2848
        %2992 = vst [vmem:[%s651 + $0x2f8] sm:$0xff] %v2896
        %v2993 = vld [vmem:[#allocation2] sm:$0xff]
        %v2994 = vld [vmem:[#allocation2 + $0x8] sm:$0xff]
        %v2995 = vld [vmem:[#allocation2 + $0x10] sm:$0xff]
        %v2996 = vld [vmem:[#allocation2 + $0x18] sm:$0xff]
        %v2997 = vld [vmem:[#allocation2 + $0x20] sm:$0xff]
        %v2998 = vld [vmem:[#allocation2 + $0x28] sm:$0xff]
        %v2999 = vld [vmem:[#allocation2 + $0x30] sm:$0xff]
        %v3000 = vld [vmem:[#allocation2 + $0x38] sm:$0xff]
        %v3001 = vld [vmem:[#allocation2 + $0x40] sm:$0xff]
        %v3002 = vld [vmem:[#allocation2 + $0x48] sm:$0xff]
        %v3003 = vld [vmem:[#allocation2 + $0x50] sm:$0xff]
        %v3004 = vld [vmem:[#allocation2 + $0x58] sm:$0xff]
        %v3005 = vld [vmem:[#allocation2 + $0x60] sm:$0xff]
        %v3006 = vld [vmem:[#allocation2 + $0x68] sm:$0xff]
        %v3007 = vld [vmem:[#allocation2 + $0x70] sm:$0xff]
        %v3008 = vld [vmem:[#allocation2 + $0x78] sm:$0xff]
        %v3009 = vld [vmem:[#allocation2 + $0x80] sm:$0xff]
        %v3010 = vld [vmem:[#allocation2 + $0x88] sm:$0xff]
        %v3011 = vld [vmem:[#allocation2 + $0x90] sm:$0xff]
        %v3012 = vld [vmem:[#allocation2 + $0x98] sm:$0xff]
        %v3013 = vld [vmem:[#allocation2 + $0xa0] sm:$0xff]
        %v3014 = vld [vmem:[#allocation2 + $0xa8] sm:$0xff]
        %v3015 = vld [vmem:[#allocation2 + $0xb0] sm:$0xff]
        %v3016 = vld [vmem:[#allocation2 + $0xb8] sm:$0xff]
        %v3017 = vld [vmem:[#allocation2 + $0xc0] sm:$0xff]
        %v3018 = vld [vmem:[#allocation2 + $0xc8] sm:$0xff]
        %v3019 = vld [vmem:[#allocation2 + $0xd0] sm:$0xff]
        %v3020 = vld [vmem:[#allocation2 + $0xd8] sm:$0xff]
        %v3021 = vld [vmem:[#allocation2 + $0xe0] sm:$0xff]
        %v3022 = vld [vmem:[#allocation2 + $0xe8] sm:$0xff]
        %v3023 = vld [vmem:[#allocation2 + $0xf0] sm:$0xff]
        %v3024 = vld [vmem:[#allocation2 + $0xf8] sm:$0xff]
        %v3025 = vld [vmem:[#allocation2 + $0x100] sm:$0xff]
        %v3026 = vld [vmem:[#allocation2 + $0x108] sm:$0xff]
        %v3027 = vld [vmem:[#allocation2 + $0x110] sm:$0xff]
        %v3028 = vld [vmem:[#allocation2 + $0x118] sm:$0xff]
        %v3029 = vld [vmem:[#allocation2 + $0x120] sm:$0xff]
        %v3030 = vld [vmem:[#allocation2 + $0x128] sm:$0xff]
        %v3031 = vld [vmem:[#allocation2 + $0x130] sm:$0xff]
        %v3032 = vld [vmem:[#allocation2 + $0x138] sm:$0xff]
        %v3033 = vld [vmem:[#allocation2 + $0x140] sm:$0xff]
        %v3034 = vld [vmem:[#allocation2 + $0x148] sm:$0xff]
        %v3035 = vld [vmem:[#allocation2 + $0x150] sm:$0xff]
        %v3036 = vld [vmem:[#allocation2 + $0x158] sm:$0xff]
        %v3037 = vld [vmem:[#allocation2 + $0x160] sm:$0xff]
        %v3038 = vld [vmem:[#allocation2 + $0x168] sm:$0xff]
        %v3039 = vld [vmem:[#allocation2 + $0x170] sm:$0xff]
        %v3040 = vld [vmem:[#allocation2 + $0x178] sm:$0xff]
        %v3041 = vld [vmem:[#allocation2 + $0x180] sm:$0xff]
        %v3042 = vld [vmem:[#allocation2 + $0x188] sm:$0xff]
        %v3043 = vld [vmem:[#allocation2 + $0x190] sm:$0xff]
        %v3044 = vld [vmem:[#allocation2 + $0x198] sm:$0xff]
        %v3045 = vld [vmem:[#allocation2 + $0x1a0] sm:$0xff]
        %v3046 = vld [vmem:[#allocation2 + $0x1a8] sm:$0xff]
        %v3047 = vld [vmem:[#allocation2 + $0x1b0] sm:$0xff]
        %v3048 = vld [vmem:[#allocation2 + $0x1b8] sm:$0xff]
        %v3049 = vld [vmem:[#allocation2 + $0x1c0] sm:$0xff]
        %v3050 = vld [vmem:[#allocation2 + $0x1c8] sm:$0xff]
        %v3051 = vld [vmem:[#allocation2 + $0x1d0] sm:$0xff]
        %v3052 = vld [vmem:[#allocation2 + $0x1d8] sm:$0xff]
        %v3053 = vld [vmem:[#allocation2 + $0x1e0] sm:$0xff]
        %v3054 = vld [vmem:[#allocation2 + $0x1e8] sm:$0xff]
        %v3055 = vld [vmem:[#allocation2 + $0x1f0] sm:$0xff]
        %v3056 = vld [vmem:[#allocation2 + $0x1f8] sm:$0xff]
        %v3057 = vld [vmem:[#allocation2 + $0x200] sm:$0xff]
        %v3058 = vld [vmem:[#allocation2 + $0x208] sm:$0xff]
        %v3059 = vld [vmem:[#allocation2 + $0x210] sm:$0xff]
        %v3060 = vld [vmem:[#allocation2 + $0x218] sm:$0xff]
        %v3061 = vld [vmem:[#allocation2 + $0x220] sm:$0xff]
        %v3062 = vld [vmem:[#allocation2 + $0x228] sm:$0xff]
        %v3063 = vld [vmem:[#allocation2 + $0x230] sm:$0xff]
        %v3064 = vld [vmem:[#allocation2 + $0x238] sm:$0xff]
        %v3065 = vld [vmem:[#allocation2 + $0x240] sm:$0xff]
        %v3066 = vld [vmem:[#allocation2 + $0x248] sm:$0xff]
        %v3067 = vld [vmem:[#allocation2 + $0x250] sm:$0xff]
        %v3068 = vld [vmem:[#allocation2 + $0x258] sm:$0xff]
        %v3069 = vld [vmem:[#allocation2 + $0x260] sm:$0xff]
        %v3070 = vld [vmem:[#allocation2 + $0x268] sm:$0xff]
        %v3071 = vld [vmem:[#allocation2 + $0x270] sm:$0xff]
        %v3072 = vld [vmem:[#allocation2 + $0x278] sm:$0xff]
        %v3073 = vld [vmem:[#allocation2 + $0x280] sm:$0xff]
        %v3074 = vld [vmem:[#allocation2 + $0x288] sm:$0xff]
        %v3075 = vld [vmem:[#allocation2 + $0x290] sm:$0xff]
        %v3076 = vld [vmem:[#allocation2 + $0x298] sm:$0xff]
        %v3077 = vld [vmem:[#allocation2 + $0x2a0] sm:$0xff]
        %v3078 = vld [vmem:[#allocation2 + $0x2a8] sm:$0xff]
        %v3079 = vld [vmem:[#allocation2 + $0x2b0] sm:$0xff]
        %v3080 = vld [vmem:[#allocation2 + $0x2b8] sm:$0xff]
        %v3081 = vld [vmem:[#allocation2 + $0x2c0] sm:$0xff]
        %v3082 = vld [vmem:[#allocation2 + $0x2c8] sm:$0xff]
        %v3083 = vld [vmem:[#allocation2 + $0x2d0] sm:$0xff]
        %v3084 = vld [vmem:[#allocation2 + $0x2d8] sm:$0xff]
        %v3085 = vld [vmem:[#allocation2 + $0x2e0] sm:$0xff]
        %v3086 = vld [vmem:[#allocation2 + $0x2e8] sm:$0xff]
        %v3087 = vld [vmem:[#allocation2 + $0x2f0] sm:$0xff]
        %v3088 = vld [vmem:[#allocation2 + $0x2f8] sm:$0xff]
        %v3089 = vld [vmem:[#allocation8] sm:$0xff]
        %v3090 = vld [vmem:[#allocation8 + $0x8] sm:$0xff]
        %v3091 = vld [vmem:[#allocation8 + $0x10] sm:$0xff]
        %v3092 = vld [vmem:[#allocation8 + $0x18] sm:$0xff]
        %v3093 = vld [vmem:[#allocation8 + $0x20] sm:$0xff]
        %v3094 = vld [vmem:[#allocation8 + $0x28] sm:$0xff]
        %v3095 = vld [vmem:[#allocation8 + $0x30] sm:$0xff]
        %v3096 = vld [vmem:[#allocation8 + $0x38] sm:$0xff]
        %v3097 = vld [vmem:[#allocation8 + $0x40] sm:$0xff]
        %v3098 = vld [vmem:[#allocation8 + $0x48] sm:$0xff]
        %v3099 = vld [vmem:[#allocation8 + $0x50] sm:$0xff]
        %v3100 = vld [vmem:[#allocation8 + $0x58] sm:$0xff]
        %v3101 = vld [vmem:[#allocation8 + $0x60] sm:$0xff]
        %v3102 = vld [vmem:[#allocation8 + $0x68] sm:$0xff]
        %v3103 = vld [vmem:[#allocation8 + $0x70] sm:$0xff]
        %v3104 = vld [vmem:[#allocation8 + $0x78] sm:$0xff]
        %v3105 = vld [vmem:[#allocation8 + $0x80] sm:$0xff]
        %v3106 = vld [vmem:[#allocation8 + $0x88] sm:$0xff]
        %v3107 = vld [vmem:[#allocation8 + $0x90] sm:$0xff]
        %v3108 = vld [vmem:[#allocation8 + $0x98] sm:$0xff]
        %v3109 = vld [vmem:[#allocation8 + $0xa0] sm:$0xff]
        %v3110 = vld [vmem:[#allocation8 + $0xa8] sm:$0xff]
        %v3111 = vld [vmem:[#allocation8 + $0xb0] sm:$0xff]
        %v3112 = vld [vmem:[#allocation8 + $0xb8] sm:$0xff]
        %v3113 = vld [vmem:[#allocation8 + $0xc0] sm:$0xff]
        %v3114 = vld [vmem:[#allocation8 + $0xc8] sm:$0xff]
        %v3115 = vld [vmem:[#allocation8 + $0xd0] sm:$0xff]
        %v3116 = vld [vmem:[#allocation8 + $0xd8] sm:$0xff]
        %v3117 = vld [vmem:[#allocation8 + $0xe0] sm:$0xff]
        %v3118 = vld [vmem:[#allocation8 + $0xe8] sm:$0xff]
        %v3119 = vld [vmem:[#allocation8 + $0xf0] sm:$0xff]
        %v3120 = vld [vmem:[#allocation8 + $0xf8] sm:$0xff]
        %v3121 = vld [vmem:[#allocation8 + $0x100] sm:$0xff]
        %v3122 = vld [vmem:[#allocation8 + $0x108] sm:$0xff]
        %v3123 = vld [vmem:[#allocation8 + $0x110] sm:$0xff]
        %v3124 = vld [vmem:[#allocation8 + $0x118] sm:$0xff]
        %v3125 = vld [vmem:[#allocation8 + $0x120] sm:$0xff]
        %v3126 = vld [vmem:[#allocation8 + $0x128] sm:$0xff]
        %v3127 = vld [vmem:[#allocation8 + $0x130] sm:$0xff]
        %v3128 = vld [vmem:[#allocation8 + $0x138] sm:$0xff]
        %v3129 = vld [vmem:[#allocation8 + $0x140] sm:$0xff]
        %v3130 = vld [vmem:[#allocation8 + $0x148] sm:$0xff]
        %v3131 = vld [vmem:[#allocation8 + $0x150] sm:$0xff]
        %v3132 = vld [vmem:[#allocation8 + $0x158] sm:$0xff]
        %v3133 = vld [vmem:[#allocation8 + $0x160] sm:$0xff]
        %v3134 = vld [vmem:[#allocation8 + $0x168] sm:$0xff]
        %v3135 = vld [vmem:[#allocation8 + $0x170] sm:$0xff]
        %v3136 = vld [vmem:[#allocation8 + $0x178] sm:$0xff]
        %v3137 = vld [vmem:[%s651] sm:$0xff]
        %v3138 = vld [vmem:[%s651 + $0x8] sm:$0xff]
        %v3139 = vld [vmem:[%s651 + $0x10] sm:$0xff]
        %v3140 = vld [vmem:[%s651 + $0x18] sm:$0xff]
        %v3141 = vld [vmem:[%s651 + $0x20] sm:$0xff]
        %v3142 = vld [vmem:[%s651 + $0x28] sm:$0xff]
        %v3143 = vld [vmem:[%s651 + $0x30] sm:$0xff]
        %v3144 = vld [vmem:[%s651 + $0x38] sm:$0xff]
        %v3145 = vld [vmem:[%s651 + $0x40] sm:$0xff]
        %v3146 = vld [vmem:[%s651 + $0x48] sm:$0xff]
        %v3147 = vld [vmem:[%s651 + $0x50] sm:$0xff]
        %v3148 = vld [vmem:[%s651 + $0x58] sm:$0xff]
        %v3149 = vld [vmem:[%s651 + $0x60] sm:$0xff]
        %v3150 = vld [vmem:[%s651 + $0x68] sm:$0xff]
        %v3151 = vld [vmem:[%s651 + $0x70] sm:$0xff]
        %v3152 = vld [vmem:[%s651 + $0x78] sm:$0xff]
        %v3153 = vld [vmem:[%s651 + $0x80] sm:$0xff]
        %v3154 = vld [vmem:[%s651 + $0x88] sm:$0xff]
        %v3155 = vld [vmem:[%s651 + $0x90] sm:$0xff]
        %v3156 = vld [vmem:[%s651 + $0x98] sm:$0xff]
        %v3157 = vld [vmem:[%s651 + $0xa0] sm:$0xff]
        %v3158 = vld [vmem:[%s651 + $0xa8] sm:$0xff]
        %v3159 = vld [vmem:[%s651 + $0xb0] sm:$0xff]
        %v3160 = vld [vmem:[%s651 + $0xb8] sm:$0xff]
        %v3161 = vld [vmem:[%s651 + $0xc0] sm:$0xff]
        %v3162 = vld [vmem:[%s651 + $0xc8] sm:$0xff]
        %v3163 = vld [vmem:[%s651 + $0xd0] sm:$0xff]
        %v3164 = vld [vmem:[%s651 + $0xd8] sm:$0xff]
        %v3165 = vld [vmem:[%s651 + $0xe0] sm:$0xff]
        %v3166 = vld [vmem:[%s651 + $0xe8] sm:$0xff]
        %v3167 = vld [vmem:[%s651 + $0xf0] sm:$0xff]
        %v3168 = vld [vmem:[%s651 + $0xf8] sm:$0xff]
        %v3169 = vld [vmem:[%s651 + $0x100] sm:$0xff]
        %v3170 = vld [vmem:[%s651 + $0x108] sm:$0xff]
        %v3171 = vld [vmem:[%s651 + $0x110] sm:$0xff]
        %v3172 = vld [vmem:[%s651 + $0x118] sm:$0xff]
        %v3173 = vld [vmem:[%s651 + $0x120] sm:$0xff]
        %v3174 = vld [vmem:[%s651 + $0x128] sm:$0xff]
        %v3175 = vld [vmem:[%s651 + $0x130] sm:$0xff]
        %v3176 = vld [vmem:[%s651 + $0x138] sm:$0xff]
        %v3177 = vld [vmem:[%s651 + $0x140] sm:$0xff]
        %v3178 = vld [vmem:[%s651 + $0x148] sm:$0xff]
        %v3179 = vld [vmem:[%s651 + $0x150] sm:$0xff]
        %v3180 = vld [vmem:[%s651 + $0x158] sm:$0xff]
        %v3181 = vld [vmem:[%s651 + $0x160] sm:$0xff]
        %v3182 = vld [vmem:[%s651 + $0x168] sm:$0xff]
        %v3183 = vld [vmem:[%s651 + $0x170] sm:$0xff]
        %v3184 = vld [vmem:[%s651 + $0x178] sm:$0xff]
        %v3185 = vld [vmem:[%s651 + $0x180] sm:$0xff]
        %v3186 = vld [vmem:[%s651 + $0x188] sm:$0xff]
        %v3187 = vld [vmem:[%s651 + $0x190] sm:$0xff]
        %v3188 = vld [vmem:[%s651 + $0x198] sm:$0xff]
        %v3189 = vld [vmem:[%s651 + $0x1a0] sm:$0xff]
        %v3190 = vld [vmem:[%s651 + $0x1a8] sm:$0xff]
        %v3191 = vld [vmem:[%s651 + $0x1b0] sm:$0xff]
        %v3192 = vld [vmem:[%s651 + $0x1b8] sm:$0xff]
        %v3193 = vld [vmem:[%s651 + $0x1c0] sm:$0xff]
        %v3194 = vld [vmem:[%s651 + $0x1c8] sm:$0xff]
        %v3195 = vld [vmem:[%s651 + $0x1d0] sm:$0xff]
        %v3196 = vld [vmem:[%s651 + $0x1d8] sm:$0xff]
        %v3197 = vld [vmem:[%s651 + $0x1e0] sm:$0xff]
        %v3198 = vld [vmem:[%s651 + $0x1e8] sm:$0xff]
        %v3199 = vld [vmem:[%s651 + $0x1f0] sm:$0xff]
        %v3200 = vld [vmem:[%s651 + $0x1f8] sm:$0xff]
        %v3201 = vld [vmem:[%s651 + $0x200] sm:$0xff]
        %v3202 = vld [vmem:[%s651 + $0x208] sm:$0xff]
        %v3203 = vld [vmem:[%s651 + $0x210] sm:$0xff]
        %v3204 = vld [vmem:[%s651 + $0x218] sm:$0xff]
        %v3205 = vld [vmem:[%s651 + $0x220] sm:$0xff]
        %v3206 = vld [vmem:[%s651 + $0x228] sm:$0xff]
        %v3207 = vld [vmem:[%s651 + $0x230] sm:$0xff]
        %v3208 = vld [vmem:[%s651 + $0x238] sm:$0xff]
        %v3209 = vld [vmem:[%s651 + $0x240] sm:$0xff]
        %v3210 = vld [vmem:[%s651 + $0x248] sm:$0xff]
        %v3211 = vld [vmem:[%s651 + $0x250] sm:$0xff]
        %v3212 = vld [vmem:[%s651 + $0x258] sm:$0xff]
        %v3213 = vld [vmem:[%s651 + $0x260] sm:$0xff]
        %v3214 = vld [vmem:[%s651 + $0x268] sm:$0xff]
        %v3215 = vld [vmem:[%s651 + $0x270] sm:$0xff]
        %v3216 = vld [vmem:[%s651 + $0x278] sm:$0xff]
        %v3217 = vld [vmem:[%s651 + $0x280] sm:$0xff]
        %v3218 = vld [vmem:[%s651 + $0x288] sm:$0xff]
        %v3219 = vld [vmem:[%s651 + $0x290] sm:$0xff]
        %v3220 = vld [vmem:[%s651 + $0x298] sm:$0xff]
        %v3221 = vld [vmem:[%s651 + $0x2a0] sm:$0xff]
        %v3222 = vld [vmem:[%s651 + $0x2a8] sm:$0xff]
        %v3223 = vld [vmem:[%s651 + $0x2b0] sm:$0xff]
        %v3224 = vld [vmem:[%s651 + $0x2b8] sm:$0xff]
        %v3225 = vld [vmem:[%s651 + $0x2c0] sm:$0xff]
        %v3226 = vld [vmem:[%s651 + $0x2c8] sm:$0xff]
        %v3227 = vld [vmem:[%s651 + $0x2d0] sm:$0xff]
        %v3228 = vld [vmem:[%s651 + $0x2d8] sm:$0xff]
        %v3229 = vld [vmem:[%s651 + $0x2e0] sm:$0xff]
        %v3230 = vld [vmem:[%s651 + $0x2e8] sm:$0xff]
        %v3231 = vld [vmem:[%s651 + $0x2f0] sm:$0xff]
        %v3232 = vld [vmem:[%s651 + $0x2f8] sm:$0xff]
        %s3233 = scalar_lea.vmem [#allocation8], 384
        %v3234 = vld [vmem:[%s3233] sm:$0xff]
        %v3235 = vld [vmem:[%s3233 + $0x8] sm:$0xff]
        %v3236 = vld [vmem:[%s3233 + $0x10] sm:$0xff]
        %v3237 = vld [vmem:[%s3233 + $0x18] sm:$0xff]
        %v3238 = vld [vmem:[%s3233 + $0x20] sm:$0xff]
        %v3239 = vld [vmem:[%s3233 + $0x28] sm:$0xff]
        %v3240 = vld [vmem:[%s3233 + $0x30] sm:$0xff]
        %v3241 = vld [vmem:[%s3233 + $0x38] sm:$0xff]
        %v3242 = vld [vmem:[%s3233 + $0x40] sm:$0xff]
        %v3243 = vld [vmem:[%s3233 + $0x48] sm:$0xff]
        %v3244 = vld [vmem:[%s3233 + $0x50] sm:$0xff]
        %v3245 = vld [vmem:[%s3233 + $0x58] sm:$0xff]
        %v3246 = vld [vmem:[%s3233 + $0x60] sm:$0xff]
        %v3247 = vld [vmem:[%s3233 + $0x68] sm:$0xff]
        %v3248 = vld [vmem:[%s3233 + $0x70] sm:$0xff]
        %v3249 = vld [vmem:[%s3233 + $0x78] sm:$0xff]
        %v3250 = vld [vmem:[%s3233 + $0x80] sm:$0xff]
        %v3251 = vld [vmem:[%s3233 + $0x88] sm:$0xff]
        %v3252 = vld [vmem:[%s3233 + $0x90] sm:$0xff]
        %v3253 = vld [vmem:[%s3233 + $0x98] sm:$0xff]
        %v3254 = vld [vmem:[%s3233 + $0xa0] sm:$0xff]
        %v3255 = vld [vmem:[%s3233 + $0xa8] sm:$0xff]
        %v3256 = vld [vmem:[%s3233 + $0xb0] sm:$0xff]
        %v3257 = vld [vmem:[%s3233 + $0xb8] sm:$0xff]
        %v3258 = vld [vmem:[%s3233 + $0xc0] sm:$0xff]
        %v3259 = vld [vmem:[%s3233 + $0xc8] sm:$0xff]
        %v3260 = vld [vmem:[%s3233 + $0xd0] sm:$0xff]
        %v3261 = vld [vmem:[%s3233 + $0xd8] sm:$0xff]
        %v3262 = vld [vmem:[%s3233 + $0xe0] sm:$0xff]
        %v3263 = vld [vmem:[%s3233 + $0xe8] sm:$0xff]
        %v3264 = vld [vmem:[%s3233 + $0xf0] sm:$0xff]
        %v3265 = vld [vmem:[%s3233 + $0xf8] sm:$0xff]
        %v3266 = vld [vmem:[%s3233 + $0x100] sm:$0xff]
        %v3267 = vld [vmem:[%s3233 + $0x108] sm:$0xff]
        %v3268 = vld [vmem:[%s3233 + $0x110] sm:$0xff]
        %v3269 = vld [vmem:[%s3233 + $0x118] sm:$0xff]
        %v3270 = vld [vmem:[%s3233 + $0x120] sm:$0xff]
        %v3271 = vld [vmem:[%s3233 + $0x128] sm:$0xff]
        %v3272 = vld [vmem:[%s3233 + $0x130] sm:$0xff]
        %v3273 = vld [vmem:[%s3233 + $0x138] sm:$0xff]
        %v3274 = vld [vmem:[%s3233 + $0x140] sm:$0xff]
        %v3275 = vld [vmem:[%s3233 + $0x148] sm:$0xff]
        %v3276 = vld [vmem:[%s3233 + $0x150] sm:$0xff]
        %v3277 = vld [vmem:[%s3233 + $0x158] sm:$0xff]
        %v3278 = vld [vmem:[%s3233 + $0x160] sm:$0xff]
        %v3279 = vld [vmem:[%s3233 + $0x168] sm:$0xff]
        %v3280 = vld [vmem:[%s3233 + $0x170] sm:$0xff]
        %v3281 = vld [vmem:[%s3233 + $0x178] sm:$0xff]
        %3282 = vmatprep.subr.mxu0 0.0
        %3283 = vmatpush1.msra.mxu0 %v3234
        %3284 = vmatprep.subr.mxu0 0.0
        %3285 = vmatpush1.msra.mxu0 %v3235
        %3286 = vmatprep.subr.mxu0 0.0
        %3287 = vmatpush1.msra.mxu0 %v3236
        %3288 = vmatprep.subr.mxu0 0.0
        %3289 = vmatpush1.msra.mxu0 %v3237
        %3290 = vmatprep.subr.mxu0 0.0
        %3291 = vmatpush1.msra.mxu0 %v3238
        %3292 = vmatprep.subr.mxu0 0.0
        %3293 = vmatpush1.msra.mxu0 %v3239
        %3294 = vmatprep.subr.mxu0 0.0
        %3295 = vmatpush1.msra.mxu0 %v3240
        %3296 = vmatprep.subr.mxu0 0.0
        %3297 = vmatpush1.msra.mxu0 %v3241
        %3298 = vmatprep.subr.mxu0 0.0
        %3299 = vmatpush1.msra.mxu0 %v3242
        %3300 = vmatprep.subr.mxu0 0.0
        %3301 = vmatpush1.msra.mxu0 %v3243
        %3302 = vmatprep.subr.mxu0 0.0
        %3303 = vmatpush1.msra.mxu0 %v3244
        %3304 = vmatprep.subr.mxu0 0.0
        %3305 = vmatpush1.msra.mxu0 %v3245
        %3306 = vmatprep.subr.mxu0 0.0
        %3307 = vmatpush1.msra.mxu0 %v3246
        %3308 = vmatprep.subr.mxu0 0.0
        %3309 = vmatpush1.msra.mxu0 %v3247
        %3310 = vmatprep.subr.mxu0 0.0
        %3311 = vmatpush1.msra.mxu0 %v3248
        %3312 = vmatprep.subr.mxu0 0.0
        %3313 = vmatpush1.msra.mxu0 %v3249
        %3314 = vmatprep.subr.mxu0 0.0
        %3315 = vmatpush1.msra.mxu0 %v3250
        %3316 = vmatprep.subr.mxu0 0.0
        %3317 = vmatpush1.msra.mxu0 %v3251
        %3318 = vmatprep.subr.mxu0 0.0
        %3319 = vmatpush1.msra.mxu0 %v3252
        %3320 = vmatprep.subr.mxu0 0.0
        %3321 = vmatpush1.msra.mxu0 %v3253
        %3322 = vmatprep.subr.mxu0 0.0
        %3323 = vmatpush1.msra.mxu0 %v3254
        %3324 = vmatprep.subr.mxu0 0.0
        %3325 = vmatpush1.msra.mxu0 %v3255
        %3326 = vmatprep.subr.mxu0 0.0
        %3327 = vmatpush1.msra.mxu0 %v3256
        %3328 = vmatprep.subr.mxu0 0.0
        %3329 = vmatpush1.msra.mxu0 %v3257
        %3330 = vmatprep.subr.mxu0 0.0
        %3331 = vmatpush1.msra.mxu0 %v3258
        %3332 = vmatprep.subr.mxu0 0.0
        %3333 = vmatpush1.msra.mxu0 %v3259
        %3334 = vmatprep.subr.mxu0 0.0
        %3335 = vmatpush1.msra.mxu0 %v3260
        %3336 = vmatprep.subr.mxu0 0.0
        %3337 = vmatpush1.msra.mxu0 %v3261
        %3338 = vmatprep.subr.mxu0 0.0
        %3339 = vmatpush1.msra.mxu0 %v3262
        %3340 = vmatprep.subr.mxu0 0.0
        %3341 = vmatpush1.msra.mxu0 %v3263
        %3342 = vmatprep.subr.mxu0 0.0
        %3343 = vmatpush1.msra.mxu0 %v3264
        %3344 = vmatprep.subr.mxu0 0.0
        %3345 = vmatpush1.msra.mxu0 %v3265
        %3346 = vmatprep.mubr.f32.mxu0 %v3138
        %3347 = vmatmul.mubr.f32.gmra.mrb[0].mxu0 %v3137
        %v3348 = vpop.f32.mrb[0].mxu0
        %v3349 = vadd.f32 0.0, %v3348
        %v3350 = vpop.f32.mrb[0].mxu0
        %3351 = vmatprep.mubr.f32.mxu0 %v3141
        %3352 = vmatmul.mubr.f32.gmra.mrb[0].mxu0 %v3140
        %v3353 = vpop.f32.mrb[0].mxu0
        %v3354 = vadd.f32 0.0, %v3353
        %v3355 = vpop.f32.mrb[0].mxu0
        %3356 = vmatprep.mubr.f32.mxu0 %v3144
        %3357 = vmatmul.mubr.f32.gmra.mrb[0].mxu0 %v3143
        %v3358 = vpop.f32.mrb[0].mxu0
        %v3359 = vadd.f32 0.0, %v3358
        %v3360 = vpop.f32.mrb[0].mxu0
        %3361 = vmatprep.mubr.f32.mxu0 %v3147
        %3362 = vmatmul.mubr.f32.gmra.mrb[0].mxu0 %v3146
        %v3363 = vpop.f32.mrb[0].mxu0
        %v3364 = vadd.f32 0.0, %v3363
        %v3365 = vpop.f32.mrb[0].mxu0
        %3366 = vmatprep.mubr.f32.mxu0 %v3150
        %3367 = vmatmul.mubr.f32.gmra.mrb[0].mxu0 %v3149
        %v3368 = vpop.f32.mrb[0].mxu0
        %v3369 = vadd.f32 0.0, %v3368
        %v3370 = vpop.f32.mrb[0].mxu0
        %3371 = vmatprep.mubr.f32.mxu0 %v3153
        %3372 = vmatmul.mubr.f32.gmra.mrb[0].mxu0 %v3152
        %v3373 = vpop.f32.mrb[0].mxu0
        %v3374 = vadd.f32 0.0, %v3373
        %v3375 = vpop.f32.mrb[0].mxu0
        %3376 = vmatprep.mubr.f32.mxu0 %v3156
        %3377 = vmatmul.mubr.f32.gmra.mrb[0].mxu0 %v3155
        %v3378 = vpop.f32.mrb[0].mxu0
        %v3379 = vadd.f32 0.0, %v3378
        %v3380 = vpop.f32.mrb[0].mxu0
        %3381 = vmatprep.mubr.f32.mxu0 %v3159
        %3382 = vmatmul.mubr.f32.gmra.mrb[0].mxu0 %v3158
        %v3383 = vpop.f32.mrb[0].mxu0
        %v3384 = vadd.f32 0.0, %v3383
        %v3385 = vpop.f32.mrb[0].mxu0
        %3386 = vmatprep.mubr.f32.mxu0 %v3162
        %3387 = vmatmul.mubr.f32.gmra.mrb[0].mxu0 %v3161
        %v3388 = vpop.f32.mrb[0].mxu0
        %v3389 = vadd.f32 0.0, %v3388
        %v3390 = vpop.f32.mrb[0].mxu0
        %3391 = vmatprep.mubr.f32.mxu0 %v3165
        %3392 = vmatmul.mubr.f32.gmra.mrb[0].mxu0 %v3164
        %v3393 = vpop.f32.mrb[0].mxu0
        %v3394 = vadd.f32 0.0, %v3393
        %v3395 = vpop.f32.mrb[0].mxu0
        %3396 = vmatprep.mubr.f32.mxu0 %v3168
        %3397 = vmatmul.mubr.f32.gmra.mrb[0].mxu0 %v3167
        %v3398 = vpop.f32.mrb[0].mxu0
        %v3399 = vadd.f32 0.0, %v3398
        %v3400 = vpop.f32.mrb[0].mxu0
        %3401 = vmatprep.mubr.f32.mxu0 %v3171
        %3402 = vmatmul.mubr.f32.gmra.mrb[0].mxu0 %v3170
        %v3403 = vpop.f32.mrb[0].mxu0
        %v3404 = vadd.f32 0.0, %v3403
        %v3405 = vpop.f32.mrb[0].mxu0
        %3406 = vmatprep.mubr.f32.mxu0 %v3174
        %3407 = vmatmul.mubr.f32.gmra.mrb[0].mxu0 %v3173
        %v3408 = vpop.f32.mrb[0].mxu0
        %v3409 = vadd.f32 0.0, %v3408
        %v3410 = vpop.f32.mrb[0].mxu0
        %3411 = vmatprep.mubr.f32.mxu0 %v3177
        %3412 = vmatmul.mubr.f32.gmra.mrb[0].mxu0 %v3176
        %v3413 = vpop.f32.mrb[0].mxu0
        %v3414 = vadd.f32 0.0, %v3413
        %v3415 = vpop.f32.mrb[0].mxu0
        %3416 = vmatprep.mubr.f32.mxu0 %v3180
        %3417 = vmatmul.mubr.f32.gmra.mrb[0].mxu0 %v3179
        %v3418 = vpop.f32.mrb[0].mxu0
        %v3419 = vadd.f32 0.0, %v3418
        %v3420 = vpop.f32.mrb[0].mxu0
        %3421 = vmatprep.mubr.f32.mxu0 %v3183
        %3422 = vmatmul.mubr.f32.gmra.mrb[0].mxu0 %v3182
        %v3423 = vpop.f32.mrb[0].mxu0
        %v3424 = vadd.f32 0.0, %v3423
        %v3425 = vpop.f32.mrb[0].mxu0
        %3426 = vmatprep.mubr.f32.mxu0 %v3186
        %3427 = vmatmul.mubr.f32.gmra.mrb[0].mxu0 %v3185
        %v3428 = vpop.f32.mrb[0].mxu0
        %v3429 = vadd.f32 0.0, %v3428
        %v3430 = vpop.f32.mrb[0].mxu0
        %3431 = vmatprep.mubr.f32.mxu0 %v3189
        %3432 = vmatmul.mubr.f32.gmra.mrb[0].mxu0 %v3188
        %v3433 = vpop.f32.mrb[0].mxu0
        %v3434 = vadd.f32 0.0, %v3433
        %v3435 = vpop.f32.mrb[0].mxu0
        %3436 = vmatprep.mubr.f32.mxu0 %v3192
        %3437 = vmatmul.mubr.f32.gmra.mrb[0].mxu0 %v3191
        %v3438 = vpop.f32.mrb[0].mxu0
        %v3439 = vadd.f32 0.0, %v3438
        %v3440 = vpop.f32.mrb[0].mxu0
        %3441 = vmatprep.mubr.f32.mxu0 %v3195
        %3442 = vmatmul.mubr.f32.gmra.mrb[0].mxu0 %v3194
        %v3443 = vpop.f32.mrb[0].mxu0
        %v3444 = vadd.f32 0.0, %v3443
        %v3445 = vpop.f32.mrb[0].mxu0
        %3446 = vmatprep.mubr.f32.mxu0 %v3198
        %3447 = vmatmul.mubr.f32.gmra.mrb[0].mxu0 %v3197
        %v3448 = vpop.f32.mrb[0].mxu0
        %v3449 = vadd.f32 0.0, %v3448
        %v3450 = vpop.f32.mrb[0].mxu0
        %3451 = vmatprep.mubr.f32.mxu0 %v3201
        %3452 = vmatmul.mubr.f32.gmra.mrb[0].mxu0 %v3200
        %v3453 = vpop.f32.mrb[0].mxu0
        %v3454 = vadd.f32 0.0, %v3453
        %v3455 = vpop.f32.mrb[0].mxu0
        %3456 = vmatprep.mubr.f32.mxu0 %v3204
        %3457 = vmatmul.mubr.f32.gmra.mrb[0].mxu0 %v3203
        %v3458 = vpop.f32.mrb[0].mxu0
        %v3459 = vadd.f32 0.0, %v3458
        %v3460 = vpop.f32.mrb[0].mxu0
        %3461 = vmatprep.mubr.f32.mxu0 %v3207
        %3462 = vmatmul.mubr.f32.gmra.mrb[0].mxu0 %v3206
        %v3463 = vpop.f32.mrb[0].mxu0
        %v3464 = vadd.f32 0.0, %v3463
        %v3465 = vpop.f32.mrb[0].mxu0
        %3466 = vmatprep.mubr.f32.mxu0 %v3210
        %3467 = vmatmul.mubr.f32.gmra.mrb[0].mxu0 %v3209
        %v3468 = vpop.f32.mrb[0].mxu0
        %v3469 = vadd.f32 0.0, %v3468
        %v3470 = vpop.f32.mrb[0].mxu0
        %3471 = vmatprep.mubr.f32.mxu0 %v3213
        %3472 = vmatmul.mubr.f32.gmra.mrb[0].mxu0 %v3212
        %v3473 = vpop.f32.mrb[0].mxu0
        %v3474 = vadd.f32 0.0, %v3473
        %v3475 = vpop.f32.mrb[0].mxu0
        %3476 = vmatprep.mubr.f32.mxu0 %v3216
        %3477 = vmatmul.mubr.f32.gmra.mrb[0].mxu0 %v3215
        %v3478 = vpop.f32.mrb[0].mxu0
        %v3479 = vadd.f32 0.0, %v3478
        %v3480 = vpop.f32.mrb[0].mxu0
        %3481 = vmatprep.mubr.f32.mxu0 %v3219
        %3482 = vmatmul.mubr.f32.gmra.mrb[0].mxu0 %v3218
        %v3483 = vpop.f32.mrb[0].mxu0
        %v3484 = vadd.f32 0.0, %v3483
        %v3485 = vpop.f32.mrb[0].mxu0
        %3486 = vmatprep.mubr.f32.mxu0 %v3222
        %3487 = vmatmul.mubr.f32.gmra.mrb[0].mxu0 %v3221
        %v3488 = vpop.f32.mrb[0].mxu0
        %v3489 = vadd.f32 0.0, %v3488
        %v3490 = vpop.f32.mrb[0].mxu0
        %3491 = vmatprep.mubr.f32.mxu0 %v3225
        %3492 = vmatmul.mubr.f32.gmra.mrb[0].mxu0 %v3224
        %v3493 = vpop.f32.mrb[0].mxu0
        %v3494 = vadd.f32 0.0, %v3493
        %v3495 = vpop.f32.mrb[0].mxu0
        %3496 = vmatprep.mubr.f32.mxu0 %v3228
        %3497 = vmatmul.mubr.f32.gmra.mrb[0].mxu0 %v3227
        %v3498 = vpop.f32.mrb[0].mxu0
        %v3499 = vadd.f32 0.0, %v3498
        %v3500 = vpop.f32.mrb[0].mxu0
        %3501 = vmatprep.mubr.f32.mxu0 %v3231
        %3502 = vmatmul.mubr.f32.gmra.mrb[0].mxu0 %v3230
        %v3503 = vpop.f32.mrb[0].mxu0
        %v3504 = vadd.f32 0.0, %v3503
        %v3505 = vpop.f32.mrb[0].mxu0
        %3506 = vdwg.mxu0
        %3507 = vmatprep.subr.mxu0 0.0
        %3508 = vmatpush1.msra.mxu0 %v3266
        %3509 = vmatprep.subr.mxu0 0.0
        %3510 = vmatpush1.msra.mxu0 %v3267
        %3511 = vmatprep.subr.mxu0 0.0
        %3512 = vmatpush1.msra.mxu0 %v3268
        %3513 = vmatprep.subr.mxu0 0.0
        %3514 = vmatpush1.msra.mxu0 %v3269
        %3515 = vmatprep.subr.mxu0 0.0
        %3516 = vmatpush1.msra.mxu0 %v3270
        %3517 = vmatprep.subr.mxu0 0.0
        %3518 = vmatpush1.msra.mxu0 %v3271
        %3519 = vmatprep.subr.mxu0 0.0
        %3520 = vmatpush1.msra.mxu0 %v3272
        %3521 = vmatprep.subr.mxu0 0.0
        %3522 = vmatpush1.msra.mxu0 %v3273
        %3523 = vmatprep.subr.mxu0 0.0
        %3524 = vmatpush1.msra.mxu0 %v3274
        %3525 = vmatprep.subr.mxu0 0.0
        %3526 = vmatpush1.msra.mxu0 %v3275
        %3527 = vmatprep.subr.mxu0 0.0
        %3528 = vmatpush1.msra.mxu0 %v3276
        %3529 = vmatprep.subr.mxu0 0.0
        %3530 = vmatpush1.msra.mxu0 %v3277
        %3531 = vmatprep.subr.mxu0 0.0
        %3532 = vmatpush1.msra.mxu0 %v3278
        %3533 = vmatprep.subr.mxu0 0.0
        %3534 = vmatpush1.msra.mxu0 %v3279
        %3535 = vmatprep.subr.mxu0 0.0
        %3536 = vmatpush1.msra.mxu0 %v3280
        %3537 = vmatprep.subr.mxu0 0.0
        %3538 = vmatpush1.msra.mxu0 %v3281
        %3539 = vmatprep.subr.mxu0 0.0
        %3540 = vmatpush1.msra.mxu0 0.0
        %3541 = vmatprep.subr.mxu0 0.0
        %3542 = vmatpush1.msra.mxu0 0.0
        %3543 = vmatprep.subr.mxu0 0.0
        %3544 = vmatpush1.msra.mxu0 0.0
        %3545 = vmatprep.subr.mxu0 0.0
        %3546 = vmatpush1.msra.mxu0 0.0
        %3547 = vmatprep.subr.mxu0 0.0
        %3548 = vmatpush1.msra.mxu0 0.0
        %3549 = vmatprep.subr.mxu0 0.0
        %3550 = vmatpush1.msra.mxu0 0.0
        %3551 = vmatprep.subr.mxu0 0.0
        %3552 = vmatpush1.msra.mxu0 0.0
        %3553 = vmatprep.subr.mxu0 0.0
        %3554 = vmatpush1.msra.mxu0 0.0
        %3555 = vmatprep.subr.mxu0 0.0
        %3556 = vmatpush1.msra.mxu0 0.0
        %3557 = vmatprep.subr.mxu0 0.0
        %3558 = vmatpush1.msra.mxu0 0.0
        %3559 = vmatprep.subr.mxu0 0.0
        %3560 = vmatpush1.msra.mxu0 0.0
        %3561 = vmatprep.subr.mxu0 0.0
        %3562 = vmatpush1.msra.mxu0 0.0
        %3563 = vmatprep.subr.mxu0 0.0
        %3564 = vmatpush1.msra.mxu0 0.0
        %3565 = vmatprep.subr.mxu0 0.0
        %3566 = vmatpush1.msra.mxu0 0.0
        %3567 = vmatprep.subr.mxu0 0.0
        %3568 = vmatpush1.msra.mxu0 0.0
        %3569 = vmatprep.subr.mxu0 0.0
        %3570 = vmatpush1.msra.mxu0 0.0
        %3571 = vmatprep.mubr.f32.mxu0 0.0
        %3572 = vmatmul.mubr.f32.gmra.mrb[0].mxu0 %v3139
        %v3573 = vpop.f32.mrb[0].mxu0
        %v3574 = vadd.f32 %v3349, %v3573
        %v3575 = vpop.f32.mrb[0].mxu0
        %3576 = vmatprep.mubr.f32.mxu0 0.0
        %3577 = vmatmul.mubr.f32.gmra.mrb[0].mxu0 %v3142
        %v3578 = vpop.f32.mrb[0].mxu0
        %v3579 = vadd.f32 %v3354, %v3578
        %v3580 = vpop.f32.mrb[0].mxu0
        %3581 = vmatprep.mubr.f32.mxu0 0.0
        %3582 = vmatmul.mubr.f32.gmra.mrb[0].mxu0 %v3145
        %v3583 = vpop.f32.mrb[0].mxu0
        %v3584 = vadd.f32 %v3359, %v3583
        %v3585 = vpop.f32.mrb[0].mxu0
        %3586 = vmatprep.mubr.f32.mxu0 0.0
        %3587 = vmatmul.mubr.f32.gmra.mrb[0].mxu0 %v3148
        %v3588 = vpop.f32.mrb[0].mxu0
        %v3589 = vadd.f32 %v3364, %v3588
        %v3590 = vpop.f32.mrb[0].mxu0
        %3591 = vmatprep.mubr.f32.mxu0 0.0
        %3592 = vmatmul.mubr.f32.gmra.mrb[0].mxu0 %v3151
        %v3593 = vpop.f32.mrb[0].mxu0
        %v3594 = vadd.f32 %v3369, %v3593
        %v3595 = vpop.f32.mrb[0].mxu0
        %3596 = vmatprep.mubr.f32.mxu0 0.0
        %3597 = vmatmul.mubr.f32.gmra.mrb[0].mxu0 %v3154
        %v3598 = vpop.f32.mrb[0].mxu0
        %v3599 = vadd.f32 %v3374, %v3598
        %v3600 = vpop.f32.mrb[0].mxu0
        %3601 = vmatprep.mubr.f32.mxu0 0.0
        %3602 = vmatmul.mubr.f32.gmra.mrb[0].mxu0 %v3157
        %v3603 = vpop.f32.mrb[0].mxu0
        %v3604 = vadd.f32 %v3379, %v3603
        %v3605 = vpop.f32.mrb[0].mxu0
        %3606 = vmatprep.mubr.f32.mxu0 0.0
        %3607 = vmatmul.mubr.f32.gmra.mrb[0].mxu0 %v3160
        %v3608 = vpop.f32.mrb[0].mxu0
        %v3609 = vadd.f32 %v3384, %v3608
        %v3610 = vpop.f32.mrb[0].mxu0
        %3611 = vmatprep.mubr.f32.mxu0 0.0
        %3612 = vmatmul.mubr.f32.gmra.mrb[0].mxu0 %v3163
        %v3613 = vpop.f32.mrb[0].mxu0
        %v3614 = vadd.f32 %v3389, %v3613
        %v3615 = vpop.f32.mrb[0].mxu0
        %3616 = vmatprep.mubr.f32.mxu0 0.0
        %3617 = vmatmul.mubr.f32.gmra.mrb[0].mxu0 %v3166
        %v3618 = vpop.f32.mrb[0].mxu0
        %v3619 = vadd.f32 %v3394, %v3618
        %v3620 = vpop.f32.mrb[0].mxu0
        %3621 = vmatprep.mubr.f32.mxu0 0.0
        %3622 = vmatmul.mubr.f32.gmra.mrb[0].mxu0 %v3169
        %v3623 = vpop.f32.mrb[0].mxu0
        %v3624 = vadd.f32 %v3399, %v3623
        %v3625 = vpop.f32.mrb[0].mxu0
        %3626 = vmatprep.mubr.f32.mxu0 0.0
        %3627 = vmatmul.mubr.f32.gmra.mrb[0].mxu0 %v3172
        %v3628 = vpop.f32.mrb[0].mxu0
        %v3629 = vadd.f32 %v3404, %v3628
        %v3630 = vpop.f32.mrb[0].mxu0
        %3631 = vmatprep.mubr.f32.mxu0 0.0
        %3632 = vmatmul.mubr.f32.gmra.mrb[0].mxu0 %v3175
        %v3633 = vpop.f32.mrb[0].mxu0
        %v3634 = vadd.f32 %v3409, %v3633
        %v3635 = vpop.f32.mrb[0].mxu0
        %3636 = vmatprep.mubr.f32.mxu0 0.0
        %3637 = vmatmul.mubr.f32.gmra.mrb[0].mxu0 %v3178
        %v3638 = vpop.f32.mrb[0].mxu0
        %v3639 = vadd.f32 %v3414, %v3638
        %v3640 = vpop.f32.mrb[0].mxu0
        %3641 = vmatprep.mubr.f32.mxu0 0.0
        %3642 = vmatmul.mubr.f32.gmra.mrb[0].mxu0 %v3181
        %v3643 = vpop.f32.mrb[0].mxu0
        %v3644 = vadd.f32 %v3419, %v3643
        %v3645 = vpop.f32.mrb[0].mxu0
        %3646 = vmatprep.mubr.f32.mxu0 0.0
        %3647 = vmatmul.mubr.f32.gmra.mrb[0].mxu0 %v3184
        %v3648 = vpop.f32.mrb[0].mxu0
        %v3649 = vadd.f32 %v3424, %v3648
        %v3650 = vpop.f32.mrb[0].mxu0
        %3651 = vmatprep.mubr.f32.mxu0 0.0
        %3652 = vmatmul.mubr.f32.gmra.mrb[0].mxu0 %v3187
        %v3653 = vpop.f32.mrb[0].mxu0
        %v3654 = vadd.f32 %v3429, %v3653
        %v3655 = vpop.f32.mrb[0].mxu0
        %3656 = vmatprep.mubr.f32.mxu0 0.0
        %3657 = vmatmul.mubr.f32.gmra.mrb[0].mxu0 %v3190
        %v3658 = vpop.f32.mrb[0].mxu0
        %v3659 = vadd.f32 %v3434, %v3658
        %v3660 = vpop.f32.mrb[0].mxu0
        %3661 = vmatprep.mubr.f32.mxu0 0.0
        %3662 = vmatmul.mubr.f32.gmra.mrb[0].mxu0 %v3193
        %v3663 = vpop.f32.mrb[0].mxu0
        %v3664 = vadd.f32 %v3439, %v3663
        %v3665 = vpop.f32.mrb[0].mxu0
        %3666 = vmatprep.mubr.f32.mxu0 0.0
        %3667 = vmatmul.mubr.f32.gmra.mrb[0].mxu0 %v3196
        %v3668 = vpop.f32.mrb[0].mxu0
        %v3669 = vadd.f32 %v3444, %v3668
        %v3670 = vpop.f32.mrb[0].mxu0
        %3671 = vmatprep.mubr.f32.mxu0 0.0
        %3672 = vmatmul.mubr.f32.gmra.mrb[0].mxu0 %v3199
        %v3673 = vpop.f32.mrb[0].mxu0
        %v3674 = vadd.f32 %v3449, %v3673
        %v3675 = vpop.f32.mrb[0].mxu0
        %3676 = vmatprep.mubr.f32.mxu0 0.0
        %3677 = vmatmul.mubr.f32.gmra.mrb[0].mxu0 %v3202
        %v3678 = vpop.f32.mrb[0].mxu0
        %v3679 = vadd.f32 %v3454, %v3678
        %v3680 = vpop.f32.mrb[0].mxu0
        %3681 = vmatprep.mubr.f32.mxu0 0.0
        %3682 = vmatmul.mubr.f32.gmra.mrb[0].mxu0 %v3205
        %v3683 = vpop.f32.mrb[0].mxu0
        %v3684 = vadd.f32 %v3459, %v3683
        %v3685 = vpop.f32.mrb[0].mxu0
        %3686 = vmatprep.mubr.f32.mxu0 0.0
        %3687 = vmatmul.mubr.f32.gmra.mrb[0].mxu0 %v3208
        %v3688 = vpop.f32.mrb[0].mxu0
        %v3689 = vadd.f32 %v3464, %v3688
        %v3690 = vpop.f32.mrb[0].mxu0
        %3691 = vmatprep.mubr.f32.mxu0 0.0
        %3692 = vmatmul.mubr.f32.gmra.mrb[0].mxu0 %v3211
        %v3693 = vpop.f32.mrb[0].mxu0
        %v3694 = vadd.f32 %v3469, %v3693
        %v3695 = vpop.f32.mrb[0].mxu0
        %3696 = vmatprep.mubr.f32.mxu0 0.0
        %3697 = vmatmul.mubr.f32.gmra.mrb[0].mxu0 %v3214
        %v3698 = vpop.f32.mrb[0].mxu0
        %v3699 = vadd.f32 %v3474, %v3698
        %v3700 = vpop.f32.mrb[0].mxu0
        %3701 = vmatprep.mubr.f32.mxu0 0.0
        %3702 = vmatmul.mubr.f32.gmra.mrb[0].mxu0 %v3217
        %v3703 = vpop.f32.mrb[0].mxu0
        %v3704 = vadd.f32 %v3479, %v3703
        %v3705 = vpop.f32.mrb[0].mxu0
        %3706 = vmatprep.mubr.f32.mxu0 0.0
        %3707 = vmatmul.mubr.f32.gmra.mrb[0].mxu0 %v3220
        %v3708 = vpop.f32.mrb[0].mxu0
        %v3709 = vadd.f32 %v3484, %v3708
        %v3710 = vpop.f32.mrb[0].mxu0
        %3711 = vmatprep.mubr.f32.mxu0 0.0
        %3712 = vmatmul.mubr.f32.gmra.mrb[0].mxu0 %v3223
        %v3713 = vpop.f32.mrb[0].mxu0
        %v3714 = vadd.f32 %v3489, %v3713
        %v3715 = vpop.f32.mrb[0].mxu0
        %3716 = vmatprep.mubr.f32.mxu0 0.0
        %3717 = vmatmul.mubr.f32.gmra.mrb[0].mxu0 %v3226
        %v3718 = vpop.f32.mrb[0].mxu0
        %v3719 = vadd.f32 %v3494, %v3718
        %v3720 = vpop.f32.mrb[0].mxu0
        %3721 = vmatprep.mubr.f32.mxu0 0.0
        %3722 = vmatmul.mubr.f32.gmra.mrb[0].mxu0 %v3229
        %v3723 = vpop.f32.mrb[0].mxu0
        %v3724 = vadd.f32 %v3499, %v3723
        %v3725 = vpop.f32.mrb[0].mxu0
        %3726 = vmatprep.mubr.f32.mxu0 0.0
        %3727 = vmatmul.mubr.f32.gmra.mrb[0].mxu0 %v3232
        %v3728 = vpop.f32.mrb[0].mxu0
        %v3729 = vadd.f32 %v3504, %v3728
        %v3730 = vpop.f32.mrb[0].mxu0
        %3731 = vdwg.mxu0
        %3732 = vmatprep.subr.mxu0 0.0
        %3733 = vmatpush1.msra.mxu0 %v3089
        %3734 = vmatprep.subr.mxu0 0.0
        %3735 = vmatpush1.msra.mxu0 %v3090
        %3736 = vmatprep.subr.mxu0 0.0
        %3737 = vmatpush1.msra.mxu0 %v3091
        %3738 = vmatprep.subr.mxu0 0.0
        %3739 = vmatpush1.msra.mxu0 %v3092
        %3740 = vmatprep.subr.mxu0 0.0
        %3741 = vmatpush1.msra.mxu0 %v3093
        %3742 = vmatprep.subr.mxu0 0.0
        %3743 = vmatpush1.msra.mxu0 %v3094
        %3744 = vmatprep.subr.mxu0 0.0
        %3745 = vmatpush1.msra.mxu0 %v3095
        %3746 = vmatprep.subr.mxu0 0.0
        %3747 = vmatpush1.msra.mxu0 %v3096
        %3748 = vmatprep.subr.mxu0 0.0
        %3749 = vmatpush1.msra.mxu0 %v3097
        %3750 = vmatprep.subr.mxu0 0.0
        %3751 = vmatpush1.msra.mxu0 %v3098
        %3752 = vmatprep.subr.mxu0 0.0
        %3753 = vmatpush1.msra.mxu0 %v3099
        %3754 = vmatprep.subr.mxu0 0.0
        %3755 = vmatpush1.msra.mxu0 %v3100
        %3756 = vmatprep.subr.mxu0 0.0
        %3757 = vmatpush1.msra.mxu0 %v3101
        %3758 = vmatprep.subr.mxu0 0.0
        %3759 = vmatpush1.msra.mxu0 %v3102
        %3760 = vmatprep.subr.mxu0 0.0
        %3761 = vmatpush1.msra.mxu0 %v3103
        %3762 = vmatprep.subr.mxu0 0.0
        %3763 = vmatpush1.msra.mxu0 %v3104
        %3764 = vmatprep.subr.mxu0 0.0
        %3765 = vmatpush1.msra.mxu0 %v3105
        %3766 = vmatprep.subr.mxu0 0.0
        %3767 = vmatpush1.msra.mxu0 %v3106
        %3768 = vmatprep.subr.mxu0 0.0
        %3769 = vmatpush1.msra.mxu0 %v3107
        %3770 = vmatprep.subr.mxu0 0.0
        %3771 = vmatpush1.msra.mxu0 %v3108
        %3772 = vmatprep.subr.mxu0 0.0
        %3773 = vmatpush1.msra.mxu0 %v3109
        %3774 = vmatprep.subr.mxu0 0.0
        %3775 = vmatpush1.msra.mxu0 %v3110
        %3776 = vmatprep.subr.mxu0 0.0
        %3777 = vmatpush1.msra.mxu0 %v3111
        %3778 = vmatprep.subr.mxu0 0.0
        %3779 = vmatpush1.msra.mxu0 %v3112
        %3780 = vmatprep.subr.mxu0 0.0
        %3781 = vmatpush1.msra.mxu0 %v3113
        %3782 = vmatprep.subr.mxu0 0.0
        %3783 = vmatpush1.msra.mxu0 %v3114
        %3784 = vmatprep.subr.mxu0 0.0
        %3785 = vmatpush1.msra.mxu0 %v3115
        %3786 = vmatprep.subr.mxu0 0.0
        %3787 = vmatpush1.msra.mxu0 %v3116
        %3788 = vmatprep.subr.mxu0 0.0
        %3789 = vmatpush1.msra.mxu0 %v3117
        %3790 = vmatprep.subr.mxu0 0.0
        %3791 = vmatpush1.msra.mxu0 %v3118
        %3792 = vmatprep.subr.mxu0 0.0
        %3793 = vmatpush1.msra.mxu0 %v3119
        %3794 = vmatprep.subr.mxu0 0.0
        %3795 = vmatpush1.msra.mxu0 %v3120
        %3796 = vmatprep.mubr.f32.mxu0 %v2994
        %3797 = vmatmul.mubr.f32.gmra.mrb[0].mxu0 %v2993
        %v3798 = vpop.f32.mrb[0].mxu0
        %v3799 = vadd.f32 %v3574, %v3798
        %v3800 = vpop.f32.mrb[0].mxu0
        %3801 = vmatprep.mubr.f32.mxu0 %v2997
        %3802 = vmatmul.mubr.f32.gmra.mrb[0].mxu0 %v2996
        %v3803 = vpop.f32.mrb[0].mxu0
        %v3804 = vadd.f32 %v3579, %v3803
        %v3805 = vpop.f32.mrb[0].mxu0
        %3806 = vmatprep.mubr.f32.mxu0 %v3000
        %3807 = vmatmul.mubr.f32.gmra.mrb[0].mxu0 %v2999
        %v3808 = vpop.f32.mrb[0].mxu0
        %v3809 = vadd.f32 %v3584, %v3808
        %v3810 = vpop.f32.mrb[0].mxu0
        %3811 = vmatprep.mubr.f32.mxu0 %v3003
        %3812 = vmatmul.mubr.f32.gmra.mrb[0].mxu0 %v3002
        %v3813 = vpop.f32.mrb[0].mxu0
        %v3814 = vadd.f32 %v3589, %v3813
        %v3815 = vpop.f32.mrb[0].mxu0
        %3816 = vmatprep.mubr.f32.mxu0 %v3006
        %3817 = vmatmul.mubr.f32.gmra.mrb[0].mxu0 %v3005
        %v3818 = vpop.f32.mrb[0].mxu0
        %v3819 = vadd.f32 %v3594, %v3818
        %v3820 = vpop.f32.mrb[0].mxu0
        %3821 = vmatprep.mubr.f32.mxu0 %v3009
        %3822 = vmatmul.mubr.f32.gmra.mrb[0].mxu0 %v3008
        %v3823 = vpop.f32.mrb[0].mxu0
        %v3824 = vadd.f32 %v3599, %v3823
        %v3825 = vpop.f32.mrb[0].mxu0
        %3826 = vmatprep.mubr.f32.mxu0 %v3012
        %3827 = vmatmul.mubr.f32.gmra.mrb[0].mxu0 %v3011
        %v3828 = vpop.f32.mrb[0].mxu0
        %v3829 = vadd.f32 %v3604, %v3828
        %v3830 = vpop.f32.mrb[0].mxu0
        %3831 = vmatprep.mubr.f32.mxu0 %v3015
        %3832 = vmatmul.mubr.f32.gmra.mrb[0].mxu0 %v3014
        %v3833 = vpop.f32.mrb[0].mxu0
        %v3834 = vadd.f32 %v3609, %v3833
        %v3835 = vpop.f32.mrb[0].mxu0
        %3836 = vmatprep.mubr.f32.mxu0 %v3018
        %3837 = vmatmul.mubr.f32.gmra.mrb[0].mxu0 %v3017
        %v3838 = vpop.f32.mrb[0].mxu0
        %v3839 = vadd.f32 %v3614, %v3838
        %v3840 = vpop.f32.mrb[0].mxu0
        %3841 = vmatprep.mubr.f32.mxu0 %v3021
        %3842 = vmatmul.mubr.f32.gmra.mrb[0].mxu0 %v3020
        %v3843 = vpop.f32.mrb[0].mxu0
        %v3844 = vadd.f32 %v3619, %v3843
        %v3845 = vpop.f32.mrb[0].mxu0
        %3846 = vmatprep.mubr.f32.mxu0 %v3024
        %3847 = vmatmul.mubr.f32.gmra.mrb[0].mxu0 %v3023
        %v3848 = vpop.f32.mrb[0].mxu0
        %v3849 = vadd.f32 %v3624, %v3848
        %v3850 = vpop.f32.mrb[0].mxu0
        %3851 = vmatprep.mubr.f32.mxu0 %v3027
        %3852 = vmatmul.mubr.f32.gmra.mrb[0].mxu0 %v3026
        %v3853 = vpop.f32.mrb[0].mxu0
        %v3854 = vadd.f32 %v3629, %v3853
        %v3855 = vpop.f32.mrb[0].mxu0
        %3856 = vmatprep.mubr.f32.mxu0 %v3030
        %3857 = vmatmul.mubr.f32.gmra.mrb[0].mxu0 %v3029
        %v3858 = vpop.f32.mrb[0].mxu0
        %v3859 = vadd.f32 %v3634, %v3858
        %v3860 = vpop.f32.mrb[0].mxu0
        %3861 = vmatprep.mubr.f32.mxu0 %v3033
        %3862 = vmatmul.mubr.f32.gmra.mrb[0].mxu0 %v3032
        %v3863 = vpop.f32.mrb[0].mxu0
        %v3864 = vadd.f32 %v3639, %v3863
        %v3865 = vpop.f32.mrb[0].mxu0
        %3866 = vmatprep.mubr.f32.mxu0 %v3036
        %3867 = vmatmul.mubr.f32.gmra.mrb[0].mxu0 %v3035
        %v3868 = vpop.f32.mrb[0].mxu0
        %v3869 = vadd.f32 %v3644, %v3868
        %v3870 = vpop.f32.mrb[0].mxu0
        %3871 = vmatprep.mubr.f32.mxu0 %v3039
        %3872 = vmatmul.mubr.f32.gmra.mrb[0].mxu0 %v3038
        %v3873 = vpop.f32.mrb[0].mxu0
        %v3874 = vadd.f32 %v3649, %v3873
        %v3875 = vpop.f32.mrb[0].mxu0
        %3876 = vmatprep.mubr.f32.mxu0 %v3042
        %3877 = vmatmul.mubr.f32.gmra.mrb[0].mxu0 %v3041
        %v3878 = vpop.f32.mrb[0].mxu0
        %v3879 = vadd.f32 %v3654, %v3878
        %v3880 = vpop.f32.mrb[0].mxu0
        %3881 = vmatprep.mubr.f32.mxu0 %v3045
        %3882 = vmatmul.mubr.f32.gmra.mrb[0].mxu0 %v3044
        %v3883 = vpop.f32.mrb[0].mxu0
        %v3884 = vadd.f32 %v3659, %v3883
        %v3885 = vpop.f32.mrb[0].mxu0
        %3886 = vmatprep.mubr.f32.mxu0 %v3048
        %3887 = vmatmul.mubr.f32.gmra.mrb[0].mxu0 %v3047
        %v3888 = vpop.f32.mrb[0].mxu0
        %v3889 = vadd.f32 %v3664, %v3888
        %v3890 = vpop.f32.mrb[0].mxu0
        %3891 = vmatprep.mubr.f32.mxu0 %v3051
        %3892 = vmatmul.mubr.f32.gmra.mrb[0].mxu0 %v3050
        %v3893 = vpop.f32.mrb[0].mxu0
        %v3894 = vadd.f32 %v3669, %v3893
        %v3895 = vpop.f32.mrb[0].mxu0
        %3896 = vmatprep.mubr.f32.mxu0 %v3054
        %3897 = vmatmul.mubr.f32.gmra.mrb[0].mxu0 %v3053
        %v3898 = vpop.f32.mrb[0].mxu0
        %v3899 = vadd.f32 %v3674, %v3898
        %v3900 = vpop.f32.mrb[0].mxu0
        %3901 = vmatprep.mubr.f32.mxu0 %v3057
        %3902 = vmatmul.mubr.f32.gmra.mrb[0].mxu0 %v3056
        %v3903 = vpop.f32.mrb[0].mxu0
        %v3904 = vadd.f32 %v3679, %v3903
        %v3905 = vpop.f32.mrb[0].mxu0
        %3906 = vmatprep.mubr.f32.mxu0 %v3060
        %3907 = vmatmul.mubr.f32.gmra.mrb[0].mxu0 %v3059
        %v3908 = vpop.f32.mrb[0].mxu0
        %v3909 = vadd.f32 %v3684, %v3908
        %v3910 = vpop.f32.mrb[0].mxu0
        %3911 = vmatprep.mubr.f32.mxu0 %v3063
        %3912 = vmatmul.mubr.f32.gmra.mrb[0].mxu0 %v3062
        %v3913 = vpop.f32.mrb[0].mxu0
        %v3914 = vadd.f32 %v3689, %v3913
        %v3915 = vpop.f32.mrb[0].mxu0
        %3916 = vmatprep.mubr.f32.mxu0 %v3066
        %3917 = vmatmul.mubr.f32.gmra.mrb[0].mxu0 %v3065
        %v3918 = vpop.f32.mrb[0].mxu0
        %v3919 = vadd.f32 %v3694, %v3918
        %v3920 = vpop.f32.mrb[0].mxu0
        %3921 = vmatprep.mubr.f32.mxu0 %v3069
        %3922 = vmatmul.mubr.f32.gmra.mrb[0].mxu0 %v3068
        %v3923 = vpop.f32.mrb[0].mxu0
        %v3924 = vadd.f32 %v3699, %v3923
        %v3925 = vpop.f32.mrb[0].mxu0
        %3926 = vmatprep.mubr.f32.mxu0 %v3072
        %3927 = vmatmul.mubr.f32.gmra.mrb[0].mxu0 %v3071
        %v3928 = vpop.f32.mrb[0].mxu0
        %v3929 = vadd.f32 %v3704, %v3928
        %v3930 = vpop.f32.mrb[0].mxu0
        %3931 = vmatprep.mubr.f32.mxu0 %v3075
        %3932 = vmatmul.mubr.f32.gmra.mrb[0].mxu0 %v3074
        %v3933 = vpop.f32.mrb[0].mxu0
        %v3934 = vadd.f32 %v3709, %v3933
        %v3935 = vpop.f32.mrb[0].mxu0
        %3936 = vmatprep.mubr.f32.mxu0 %v3078
        %3937 = vmatmul.mubr.f32.gmra.mrb[0].mxu0 %v3077
        %v3938 = vpop.f32.mrb[0].mxu0
        %v3939 = vadd.f32 %v3714, %v3938
        %v3940 = vpop.f32.mrb[0].mxu0
        %3941 = vmatprep.mubr.f32.mxu0 %v3081
        %3942 = vmatmul.mubr.f32.gmra.mrb[0].mxu0 %v3080
        %v3943 = vpop.f32.mrb[0].mxu0
        %v3944 = vadd.f32 %v3719, %v3943
        %v3945 = vpop.f32.mrb[0].mxu0
        %3946 = vmatprep.mubr.f32.mxu0 %v3084
        %3947 = vmatmul.mubr.f32.gmra.mrb[0].mxu0 %v3083
        %v3948 = vpop.f32.mrb[0].mxu0
        %v3949 = vadd.f32 %v3724, %v3948
        %v3950 = vpop.f32.mrb[0].mxu0
        %3951 = vmatprep.mubr.f32.mxu0 %v3087
        %3952 = vmatmul.mubr.f32.gmra.mrb[0].mxu0 %v3086
        %v3953 = vpop.f32.mrb[0].mxu0
        %v3954 = vadd.f32 %v3729, %v3953
        %v3955 = vpop.f32.mrb[0].mxu0
        %3956 = vdwg.mxu0
        %3957 = vmatprep.subr.mxu0 0.0
        %3958 = vmatpush1.msra.mxu0 %v3121
        %3959 = vmatprep.subr.mxu0 0.0
        %3960 = vmatpush1.msra.mxu0 %v3122
        %3961 = vmatprep.subr.mxu0 0.0
        %3962 = vmatpush1.msra.mxu0 %v3123
        %3963 = vmatprep.subr.mxu0 0.0
        %3964 = vmatpush1.msra.mxu0 %v3124
        %3965 = vmatprep.subr.mxu0 0.0
        %3966 = vmatpush1.msra.mxu0 %v3125
        %3967 = vmatprep.subr.mxu0 0.0
        %3968 = vmatpush1.msra.mxu0 %v3126
        %3969 = vmatprep.subr.mxu0 0.0
        %3970 = vmatpush1.msra.mxu0 %v3127
        %3971 = vmatprep.subr.mxu0 0.0
        %3972 = vmatpush1.msra.mxu0 %v3128
        %3973 = vmatprep.subr.mxu0 0.0
        %3974 = vmatpush1.msra.mxu0 %v3129
        %3975 = vmatprep.subr.mxu0 0.0
        %3976 = vmatpush1.msra.mxu0 %v3130
        %3977 = vmatprep.subr.mxu0 0.0
        %3978 = vmatpush1.msra.mxu0 %v3131
        %3979 = vmatprep.subr.mxu0 0.0
        %3980 = vmatpush1.msra.mxu0 %v3132
        %3981 = vmatprep.subr.mxu0 0.0
        %3982 = vmatpush1.msra.mxu0 %v3133
        %3983 = vmatprep.subr.mxu0 0.0
        %3984 = vmatpush1.msra.mxu0 %v3134
        %3985 = vmatprep.subr.mxu0 0.0
        %3986 = vmatpush1.msra.mxu0 %v3135
        %3987 = vmatprep.subr.mxu0 0.0
        %3988 = vmatpush1.msra.mxu0 %v3136
        %3989 = vmatprep.subr.mxu0 0.0
        %3990 = vmatpush1.msra.mxu0 0.0
        %3991 = vmatprep.subr.mxu0 0.0
        %3992 = vmatpush1.msra.mxu0 0.0
        %3993 = vmatprep.subr.mxu0 0.0
        %3994 = vmatpush1.msra.mxu0 0.0
        %3995 = vmatprep.subr.mxu0 0.0
        %3996 = vmatpush1.msra.mxu0 0.0
        %3997 = vmatprep.subr.mxu0 0.0
        %3998 = vmatpush1.msra.mxu0 0.0
        %3999 = vmatprep.subr.mxu0 0.0
        %4000 = vmatpush1.msra.mxu0 0.0
        %4001 = vmatprep.subr.mxu0 0.0
        %4002 = vmatpush1.msra.mxu0 0.0
        %4003 = vmatprep.subr.mxu0 0.0
        %4004 = vmatpush1.msra.mxu0 0.0
        %4005 = vmatprep.subr.mxu0 0.0
        %4006 = vmatpush1.msra.mxu0 0.0
        %4007 = vmatprep.subr.mxu0 0.0
        %4008 = vmatpush1.msra.mxu0 0.0
        %4009 = vmatprep.subr.mxu0 0.0
        %4010 = vmatpush1.msra.mxu0 0.0
        %4011 = vmatprep.subr.mxu0 0.0
        %4012 = vmatpush1.msra.mxu0 0.0
        %4013 = vmatprep.subr.mxu0 0.0
        %4014 = vmatpush1.msra.mxu0 0.0
        %4015 = vmatprep.subr.mxu0 0.0
        %4016 = vmatpush1.msra.mxu0 0.0
        %4017 = vmatprep.subr.mxu0 0.0
        %4018 = vmatpush1.msra.mxu0 0.0
        %4019 = vmatprep.subr.mxu0 0.0
        %4020 = vmatpush1.msra.mxu0 0.0
        %4021 = vmatprep.mubr.f32.mxu0 0.0
        %4022 = vmatmul.mubr.f32.gmra.mrb[0].mxu0 %v2995
        %v4023 = vpop.f32.mrb[0].mxu0
        %v4024 = vadd.f32 %v3799, %v4023
        %v4025 = vpop.f32.mrb[0].mxu0
        %4026 = vmatprep.mubr.f32.mxu0 0.0
        %4027 = vmatmul.mubr.f32.gmra.mrb[0].mxu0 %v2998
        %v4028 = vpop.f32.mrb[0].mxu0
        %v4029 = vadd.f32 %v3804, %v4028
        %v4030 = vpop.f32.mrb[0].mxu0
        %4031 = vmatprep.mubr.f32.mxu0 0.0
        %4032 = vmatmul.mubr.f32.gmra.mrb[0].mxu0 %v3001
        %v4033 = vpop.f32.mrb[0].mxu0
        %v4034 = vadd.f32 %v3809, %v4033
        %v4035 = vpop.f32.mrb[0].mxu0
        %4036 = vmatprep.mubr.f32.mxu0 0.0
        %4037 = vmatmul.mubr.f32.gmra.mrb[0].mxu0 %v3004
        %v4038 = vpop.f32.mrb[0].mxu0
        %v4039 = vadd.f32 %v3814, %v4038
        %v4040 = vpop.f32.mrb[0].mxu0
        %4041 = vmatprep.mubr.f32.mxu0 0.0
        %4042 = vmatmul.mubr.f32.gmra.mrb[0].mxu0 %v3007
        %v4043 = vpop.f32.mrb[0].mxu0
        %v4044 = vadd.f32 %v3819, %v4043
        %v4045 = vpop.f32.mrb[0].mxu0
        %4046 = vmatprep.mubr.f32.mxu0 0.0
        %4047 = vmatmul.mubr.f32.gmra.mrb[0].mxu0 %v3010
        %v4048 = vpop.f32.mrb[0].mxu0
        %v4049 = vadd.f32 %v3824, %v4048
        %v4050 = vpop.f32.mrb[0].mxu0
        %4051 = vmatprep.mubr.f32.mxu0 0.0
        %4052 = vmatmul.mubr.f32.gmra.mrb[0].mxu0 %v3013
        %v4053 = vpop.f32.mrb[0].mxu0
        %v4054 = vadd.f32 %v3829, %v4053
        %v4055 = vpop.f32.mrb[0].mxu0
        %4056 = vmatprep.mubr.f32.mxu0 0.0
        %4057 = vmatmul.mubr.f32.gmra.mrb[0].mxu0 %v3016
        %v4058 = vpop.f32.mrb[0].mxu0
        %v4059 = vadd.f32 %v3834, %v4058
        %v4060 = vpop.f32.mrb[0].mxu0
        %4061 = vmatprep.mubr.f32.mxu0 0.0
        %4062 = vmatmul.mubr.f32.gmra.mrb[0].mxu0 %v3019
        %v4063 = vpop.f32.mrb[0].mxu0
        %v4064 = vadd.f32 %v3839, %v4063
        %v4065 = vpop.f32.mrb[0].mxu0
        %4066 = vmatprep.mubr.f32.mxu0 0.0
        %4067 = vmatmul.mubr.f32.gmra.mrb[0].mxu0 %v3022
        %v4068 = vpop.f32.mrb[0].mxu0
        %v4069 = vadd.f32 %v3844, %v4068
        %v4070 = vpop.f32.mrb[0].mxu0
        %4071 = vmatprep.mubr.f32.mxu0 0.0
        %4072 = vmatmul.mubr.f32.gmra.mrb[0].mxu0 %v3025
        %v4073 = vpop.f32.mrb[0].mxu0
        %v4074 = vadd.f32 %v3849, %v4073
        %v4075 = vpop.f32.mrb[0].mxu0
        %4076 = vmatprep.mubr.f32.mxu0 0.0
        %4077 = vmatmul.mubr.f32.gmra.mrb[0].mxu0 %v3028
        %v4078 = vpop.f32.mrb[0].mxu0
        %v4079 = vadd.f32 %v3854, %v4078
        %v4080 = vpop.f32.mrb[0].mxu0
        %4081 = vmatprep.mubr.f32.mxu0 0.0
        %4082 = vmatmul.mubr.f32.gmra.mrb[0].mxu0 %v3031
        %v4083 = vpop.f32.mrb[0].mxu0
        %v4084 = vadd.f32 %v3859, %v4083
        %v4085 = vpop.f32.mrb[0].mxu0
        %4086 = vmatprep.mubr.f32.mxu0 0.0
        %4087 = vmatmul.mubr.f32.gmra.mrb[0].mxu0 %v3034
        %v4088 = vpop.f32.mrb[0].mxu0
        %v4089 = vadd.f32 %v3864, %v4088
        %v4090 = vpop.f32.mrb[0].mxu0
        %4091 = vmatprep.mubr.f32.mxu0 0.0
        %4092 = vmatmul.mubr.f32.gmra.mrb[0].mxu0 %v3037
        %v4093 = vpop.f32.mrb[0].mxu0
        %v4094 = vadd.f32 %v3869, %v4093
        %v4095 = vpop.f32.mrb[0].mxu0
        %4096 = vmatprep.mubr.f32.mxu0 0.0
        %4097 = vmatmul.mubr.f32.gmra.mrb[0].mxu0 %v3040
        %v4098 = vpop.f32.mrb[0].mxu0
        %v4099 = vadd.f32 %v3874, %v4098
        %v4100 = vpop.f32.mrb[0].mxu0
        %4101 = vmatprep.mubr.f32.mxu0 0.0
        %4102 = vmatmul.mubr.f32.gmra.mrb[0].mxu0 %v3043
        %v4103 = vpop.f32.mrb[0].mxu0
        %v4104 = vadd.f32 %v3879, %v4103
        %v4105 = vpop.f32.mrb[0].mxu0
        %4106 = vmatprep.mubr.f32.mxu0 0.0
        %4107 = vmatmul.mubr.f32.gmra.mrb[0].mxu0 %v3046
        %v4108 = vpop.f32.mrb[0].mxu0
        %v4109 = vadd.f32 %v3884, %v4108
        %v4110 = vpop.f32.mrb[0].mxu0
        %4111 = vmatprep.mubr.f32.mxu0 0.0
        %4112 = vmatmul.mubr.f32.gmra.mrb[0].mxu0 %v3049
        %v4113 = vpop.f32.mrb[0].mxu0
        %v4114 = vadd.f32 %v3889, %v4113
        %v4115 = vpop.f32.mrb[0].mxu0
        %4116 = vmatprep.mubr.f32.mxu0 0.0
        %4117 = vmatmul.mubr.f32.gmra.mrb[0].mxu0 %v3052
        %v4118 = vpop.f32.mrb[0].mxu0
        %v4119 = vadd.f32 %v3894, %v4118
        %v4120 = vpop.f32.mrb[0].mxu0
        %4121 = vmatprep.mubr.f32.mxu0 0.0
        %4122 = vmatmul.mubr.f32.gmra.mrb[0].mxu0 %v3055
        %v4123 = vpop.f32.mrb[0].mxu0
        %v4124 = vadd.f32 %v3899, %v4123
        %v4125 = vpop.f32.mrb[0].mxu0
        %4126 = vmatprep.mubr.f32.mxu0 0.0
        %4127 = vmatmul.mubr.f32.gmra.mrb[0].mxu0 %v3058
        %v4128 = vpop.f32.mrb[0].mxu0
        %v4129 = vadd.f32 %v3904, %v4128
        %v4130 = vpop.f32.mrb[0].mxu0
        %4131 = vmatprep.mubr.f32.mxu0 0.0
        %4132 = vmatmul.mubr.f32.gmra.mrb[0].mxu0 %v3061
        %v4133 = vpop.f32.mrb[0].mxu0
        %v4134 = vadd.f32 %v3909, %v4133
        %v4135 = vpop.f32.mrb[0].mxu0
        %4136 = vmatprep.mubr.f32.mxu0 0.0
        %4137 = vmatmul.mubr.f32.gmra.mrb[0].mxu0 %v3064
        %v4138 = vpop.f32.mrb[0].mxu0
        %v4139 = vadd.f32 %v3914, %v4138
        %v4140 = vpop.f32.mrb[0].mxu0
        %4141 = vmatprep.mubr.f32.mxu0 0.0
        %4142 = vmatmul.mubr.f32.gmra.mrb[0].mxu0 %v3067
        %v4143 = vpop.f32.mrb[0].mxu0
        %v4144 = vadd.f32 %v3919, %v4143
        %v4145 = vpop.f32.mrb[0].mxu0
        %4146 = vmatprep.mubr.f32.mxu0 0.0
        %4147 = vmatmul.mubr.f32.gmra.mrb[0].mxu0 %v3070
        %v4148 = vpop.f32.mrb[0].mxu0
        %v4149 = vadd.f32 %v3924, %v4148
        %v4150 = vpop.f32.mrb[0].mxu0
        %4151 = vmatprep.mubr.f32.mxu0 0.0
        %4152 = vmatmul.mubr.f32.gmra.mrb[0].mxu0 %v3073
        %v4153 = vpop.f32.mrb[0].mxu0
        %v4154 = vadd.f32 %v3929, %v4153
        %v4155 = vpop.f32.mrb[0].mxu0
        %4156 = vmatprep.mubr.f32.mxu0 0.0
        %4157 = vmatmul.mubr.f32.gmra.mrb[0].mxu0 %v3076
        %v4158 = vpop.f32.mrb[0].mxu0
        %v4159 = vadd.f32 %v3934, %v4158
        %v4160 = vpop.f32.mrb[0].mxu0
        %4161 = vmatprep.mubr.f32.mxu0 0.0
        %4162 = vmatmul.mubr.f32.gmra.mrb[0].mxu0 %v3079
        %v4163 = vpop.f32.mrb[0].mxu0
        %v4164 = vadd.f32 %v3939, %v4163
        %v4165 = vpop.f32.mrb[0].mxu0
        %4166 = vmatprep.mubr.f32.mxu0 0.0
        %4167 = vmatmul.mubr.f32.gmra.mrb[0].mxu0 %v3082
        %v4168 = vpop.f32.mrb[0].mxu0
        %v4169 = vadd.f32 %v3944, %v4168
        %v4170 = vpop.f32.mrb[0].mxu0
        %4171 = vmatprep.mubr.f32.mxu0 0.0
        %4172 = vmatmul.mubr.f32.gmra.mrb[0].mxu0 %v3085
        %v4173 = vpop.f32.mrb[0].mxu0
        %v4174 = vadd.f32 %v3949, %v4173
        %v4175 = vpop.f32.mrb[0].mxu0
        %4176 = vmatprep.mubr.f32.mxu0 0.0
        %4177 = vmatmul.mubr.f32.gmra.mrb[0].mxu0 %v3088
        %v4178 = vpop.f32.mrb[0].mxu0
        %v4179 = vadd.f32 %v3954, %v4178
        %v4180 = vpop.f32.mrb[0].mxu0
        %4181 = vdwg.mxu0
        %v4182 = vld [vmem:[%s1937] sm:$0xff]
        %v4183 = vld [vmem:[%s1937 + $0x8] sm:$0xff]
        %v4184 = vld [vmem:[%s1937 + $0x10] sm:$0xff]
        %v4185 = vld [vmem:[%s1937 + $0x18] sm:$0xff]
        %v4186 = vld [vmem:[%s1937 + $0x20] sm:$0xff]
        %v4187 = vld [vmem:[%s1937 + $0x28] sm:$0xff]
        %v4188 = vld [vmem:[%s1937 + $0x30] sm:$0xff]
        %v4189 = vld [vmem:[%s1937 + $0x38] sm:$0xff]
        %v4190 = vld [vmem:[%s1937 + $0x40] sm:$0xff]
        %v4191 = vld [vmem:[%s1937 + $0x48] sm:$0xff]
        %v4192 = vld [vmem:[%s1937 + $0x50] sm:$0xff]
        %v4193 = vld [vmem:[%s1937 + $0x58] sm:$0xff]
        %v4194 = vld [vmem:[%s1937 + $0x60] sm:$0xff]
        %v4195 = vld [vmem:[%s1937 + $0x68] sm:$0xff]
        %v4196 = vld [vmem:[%s1937 + $0x70] sm:$0xff]
        %v4197 = vld [vmem:[%s1937 + $0x78] sm:$0xff]
        %v4198 = vld [vmem:[%s1937 + $0x80] sm:$0xff]
        %v4199 = vld [vmem:[%s1937 + $0x88] sm:$0xff]
        %v4200 = vld [vmem:[%s1937 + $0x90] sm:$0xff]
        %v4201 = vld [vmem:[%s1937 + $0x98] sm:$0xff]
        %v4202 = vld [vmem:[%s1937 + $0xa0] sm:$0xff]
        %v4203 = vld [vmem:[%s1937 + $0xa8] sm:$0xff]
        %v4204 = vld [vmem:[%s1937 + $0xb0] sm:$0xff]
        %v4205 = vld [vmem:[%s1937 + $0xb8] sm:$0xff]
        %v4206 = vld [vmem:[%s1937 + $0xc0] sm:$0xff]
        %v4207 = vld [vmem:[%s1937 + $0xc8] sm:$0xff]
        %v4208 = vld [vmem:[%s1937 + $0xd0] sm:$0xff]
        %v4209 = vld [vmem:[%s1937 + $0xd8] sm:$0xff]
        %v4210 = vld [vmem:[%s1937 + $0xe0] sm:$0xff]
        %v4211 = vld [vmem:[%s1937 + $0xe8] sm:$0xff]
        %v4212 = vld [vmem:[%s1937 + $0xf0] sm:$0xff]
        %v4213 = vld [vmem:[%s1937 + $0xf8] sm:$0xff]
        %v4214 = vld [vmem:[%s1937 + $0x100] sm:$0xff]
        %v4215 = vld [vmem:[%s1937 + $0x108] sm:$0xff]
        %v4216 = vld [vmem:[%s1937 + $0x110] sm:$0xff]
        %v4217 = vld [vmem:[%s1937 + $0x118] sm:$0xff]
        %v4218 = vld [vmem:[%s1937 + $0x120] sm:$0xff]
        %v4219 = vld [vmem:[%s1937 + $0x128] sm:$0xff]
        %v4220 = vld [vmem:[%s1937 + $0x130] sm:$0xff]
        %v4221 = vld [vmem:[%s1937 + $0x138] sm:$0xff]
        %v4222 = vld [vmem:[%s1937 + $0x140] sm:$0xff]
        %v4223 = vld [vmem:[%s1937 + $0x148] sm:$0xff]
        %v4224 = vld [vmem:[%s1937 + $0x150] sm:$0xff]
        %v4225 = vld [vmem:[%s1937 + $0x158] sm:$0xff]
        %v4226 = vld [vmem:[%s1937 + $0x160] sm:$0xff]
        %v4227 = vld [vmem:[%s1937 + $0x168] sm:$0xff]
        %v4228 = vld [vmem:[%s1937 + $0x170] sm:$0xff]
        %v4229 = vld [vmem:[%s1937 + $0x178] sm:$0xff]
        %v4230 = vld [vmem:[%s1937 + $0x180] sm:$0xff]
        %v4231 = vld [vmem:[%s1937 + $0x188] sm:$0xff]
        %v4232 = vld [vmem:[%s1937 + $0x190] sm:$0xff]
        %v4233 = vld [vmem:[%s1937 + $0x198] sm:$0xff]
        %v4234 = vld [vmem:[%s1937 + $0x1a0] sm:$0xff]
        %v4235 = vld [vmem:[%s1937 + $0x1a8] sm:$0xff]
        %v4236 = vld [vmem:[%s1937 + $0x1b0] sm:$0xff]
        %v4237 = vld [vmem:[%s1937 + $0x1b8] sm:$0xff]
        %v4238 = vld [vmem:[%s1937 + $0x1c0] sm:$0xff]
        %v4239 = vld [vmem:[%s1937 + $0x1c8] sm:$0xff]
        %v4240 = vld [vmem:[%s1937 + $0x1d0] sm:$0xff]
        %v4241 = vld [vmem:[%s1937 + $0x1d8] sm:$0xff]
        %v4242 = vld [vmem:[%s1937 + $0x1e0] sm:$0xff]
        %v4243 = vld [vmem:[%s1937 + $0x1e8] sm:$0xff]
        %v4244 = vld [vmem:[%s1937 + $0x1f0] sm:$0xff]
        %v4245 = vld [vmem:[%s1937 + $0x1f8] sm:$0xff]
        %v4246 = vld [vmem:[%s1937 + $0x200] sm:$0xff]
        %v4247 = vld [vmem:[%s1937 + $0x208] sm:$0xff]
        %v4248 = vld [vmem:[%s1937 + $0x210] sm:$0xff]
        %v4249 = vld [vmem:[%s1937 + $0x218] sm:$0xff]
        %v4250 = vld [vmem:[%s1937 + $0x220] sm:$0xff]
        %v4251 = vld [vmem:[%s1937 + $0x228] sm:$0xff]
        %v4252 = vld [vmem:[%s1937 + $0x230] sm:$0xff]
        %v4253 = vld [vmem:[%s1937 + $0x238] sm:$0xff]
        %v4254 = vld [vmem:[%s1937 + $0x240] sm:$0xff]
        %v4255 = vld [vmem:[%s1937 + $0x248] sm:$0xff]
        %v4256 = vld [vmem:[%s1937 + $0x250] sm:$0xff]
        %v4257 = vld [vmem:[%s1937 + $0x258] sm:$0xff]
        %v4258 = vld [vmem:[%s1937 + $0x260] sm:$0xff]
        %v4259 = vld [vmem:[%s1937 + $0x268] sm:$0xff]
        %v4260 = vld [vmem:[%s1937 + $0x270] sm:$0xff]
        %v4261 = vld [vmem:[%s1937 + $0x278] sm:$0xff]
        %v4262 = vld [vmem:[%s1937 + $0x280] sm:$0xff]
        %v4263 = vld [vmem:[%s1937 + $0x288] sm:$0xff]
        %v4264 = vld [vmem:[%s1937 + $0x290] sm:$0xff]
        %v4265 = vld [vmem:[%s1937 + $0x298] sm:$0xff]
        %v4266 = vld [vmem:[%s1937 + $0x2a0] sm:$0xff]
        %v4267 = vld [vmem:[%s1937 + $0x2a8] sm:$0xff]
        %v4268 = vld [vmem:[%s1937 + $0x2b0] sm:$0xff]
        %v4269 = vld [vmem:[%s1937 + $0x2b8] sm:$0xff]
        %v4270 = vld [vmem:[%s1937 + $0x2c0] sm:$0xff]
        %v4271 = vld [vmem:[%s1937 + $0x2c8] sm:$0xff]
        %v4272 = vld [vmem:[%s1937 + $0x2d0] sm:$0xff]
        %v4273 = vld [vmem:[%s1937 + $0x2d8] sm:$0xff]
        %v4274 = vld [vmem:[%s1937 + $0x2e0] sm:$0xff]
        %v4275 = vld [vmem:[%s1937 + $0x2e8] sm:$0xff]
        %v4276 = vld [vmem:[%s1937 + $0x2f0] sm:$0xff]
        %v4277 = vld [vmem:[%s1937 + $0x2f8] sm:$0xff]
        %s4278 = scalar_lea.vmem [#allocation8], 768
        %v4279 = vld [vmem:[%s4278] sm:$0xff]
        %v4280 = vld [vmem:[%s4278 + $0x8] sm:$0xff]
        %v4281 = vld [vmem:[%s4278 + $0x10] sm:$0xff]
        %v4282 = vld [vmem:[%s4278 + $0x18] sm:$0xff]
        %v4283 = vld [vmem:[%s4278 + $0x20] sm:$0xff]
        %v4284 = vld [vmem:[%s4278 + $0x28] sm:$0xff]
        %v4285 = vld [vmem:[%s4278 + $0x30] sm:$0xff]
        %v4286 = vld [vmem:[%s4278 + $0x38] sm:$0xff]
        %v4287 = vld [vmem:[%s4278 + $0x40] sm:$0xff]
        %v4288 = vld [vmem:[%s4278 + $0x48] sm:$0xff]
        %v4289 = vld [vmem:[%s4278 + $0x50] sm:$0xff]
        %v4290 = vld [vmem:[%s4278 + $0x58] sm:$0xff]
        %v4291 = vld [vmem:[%s4278 + $0x60] sm:$0xff]
        %v4292 = vld [vmem:[%s4278 + $0x68] sm:$0xff]
        %v4293 = vld [vmem:[%s4278 + $0x70] sm:$0xff]
        %v4294 = vld [vmem:[%s4278 + $0x78] sm:$0xff]
        %v4295 = vld [vmem:[%s4278 + $0x80] sm:$0xff]
        %v4296 = vld [vmem:[%s4278 + $0x88] sm:$0xff]
        %v4297 = vld [vmem:[%s4278 + $0x90] sm:$0xff]
        %v4298 = vld [vmem:[%s4278 + $0x98] sm:$0xff]
        %v4299 = vld [vmem:[%s4278 + $0xa0] sm:$0xff]
        %v4300 = vld [vmem:[%s4278 + $0xa8] sm:$0xff]
        %v4301 = vld [vmem:[%s4278 + $0xb0] sm:$0xff]
        %v4302 = vld [vmem:[%s4278 + $0xb8] sm:$0xff]
        %v4303 = vld [vmem:[%s4278 + $0xc0] sm:$0xff]
        %v4304 = vld [vmem:[%s4278 + $0xc8] sm:$0xff]
        %v4305 = vld [vmem:[%s4278 + $0xd0] sm:$0xff]
        %v4306 = vld [vmem:[%s4278 + $0xd8] sm:$0xff]
        %v4307 = vld [vmem:[%s4278 + $0xe0] sm:$0xff]
        %v4308 = vld [vmem:[%s4278 + $0xe8] sm:$0xff]
        %v4309 = vld [vmem:[%s4278 + $0xf0] sm:$0xff]
        %v4310 = vld [vmem:[%s4278 + $0xf8] sm:$0xff]
        %v4311 = vld [vmem:[%s4278 + $0x100] sm:$0xff]
        %v4312 = vld [vmem:[%s4278 + $0x108] sm:$0xff]
        %v4313 = vld [vmem:[%s4278 + $0x110] sm:$0xff]
        %v4314 = vld [vmem:[%s4278 + $0x118] sm:$0xff]
        %v4315 = vld [vmem:[%s4278 + $0x120] sm:$0xff]
        %v4316 = vld [vmem:[%s4278 + $0x128] sm:$0xff]
        %v4317 = vld [vmem:[%s4278 + $0x130] sm:$0xff]
        %v4318 = vld [vmem:[%s4278 + $0x138] sm:$0xff]
        %v4319 = vld [vmem:[%s4278 + $0x140] sm:$0xff]
        %v4320 = vld [vmem:[%s4278 + $0x148] sm:$0xff]
        %v4321 = vld [vmem:[%s4278 + $0x150] sm:$0xff]
        %v4322 = vld [vmem:[%s4278 + $0x158] sm:$0xff]
        %v4323 = vld [vmem:[%s4278 + $0x160] sm:$0xff]
        %v4324 = vld [vmem:[%s4278 + $0x168] sm:$0xff]
        %v4325 = vld [vmem:[%s4278 + $0x170] sm:$0xff]
        %v4326 = vld [vmem:[%s4278 + $0x178] sm:$0xff]
        %4327 = vmatprep.subr.mxu0 0.0
        %4328 = vmatpush1.msra.mxu0 %v4279
        %4329 = vmatprep.subr.mxu0 0.0
        %4330 = vmatpush1.msra.mxu0 %v4280
        %4331 = vmatprep.subr.mxu0 0.0
        %4332 = vmatpush1.msra.mxu0 %v4281
        %4333 = vmatprep.subr.mxu0 0.0
        %4334 = vmatpush1.msra.mxu0 %v4282
        %4335 = vmatprep.subr.mxu0 0.0
        %4336 = vmatpush1.msra.mxu0 %v4283
        %4337 = vmatprep.subr.mxu0 0.0
        %4338 = vmatpush1.msra.mxu0 %v4284
        %4339 = vmatprep.subr.mxu0 0.0
        %4340 = vmatpush1.msra.mxu0 %v4285
        %4341 = vmatprep.subr.mxu0 0.0
        %4342 = vmatpush1.msra.mxu0 %v4286
        %4343 = vmatprep.subr.mxu0 0.0
        %4344 = vmatpush1.msra.mxu0 %v4287
        %4345 = vmatprep.subr.mxu0 0.0
        %4346 = vmatpush1.msra.mxu0 %v4288
        %4347 = vmatprep.subr.mxu0 0.0
        %4348 = vmatpush1.msra.mxu0 %v4289
        %4349 = vmatprep.subr.mxu0 0.0
        %4350 = vmatpush1.msra.mxu0 %v4290
        %4351 = vmatprep.subr.mxu0 0.0
        %4352 = vmatpush1.msra.mxu0 %v4291
        %4353 = vmatprep.subr.mxu0 0.0
        %4354 = vmatpush1.msra.mxu0 %v4292
        %4355 = vmatprep.subr.mxu0 0.0
        %4356 = vmatpush1.msra.mxu0 %v4293
        %4357 = vmatprep.subr.mxu0 0.0
        %4358 = vmatpush1.msra.mxu0 %v4294
        %4359 = vmatprep.subr.mxu0 0.0
        %4360 = vmatpush1.msra.mxu0 %v4295
        %4361 = vmatprep.subr.mxu0 0.0
        %4362 = vmatpush1.msra.mxu0 %v4296
        %4363 = vmatprep.subr.mxu0 0.0
        %4364 = vmatpush1.msra.mxu0 %v4297
        %4365 = vmatprep.subr.mxu0 0.0
        %4366 = vmatpush1.msra.mxu0 %v4298
        %4367 = vmatprep.subr.mxu0 0.0
        %4368 = vmatpush1.msra.mxu0 %v4299
        %4369 = vmatprep.subr.mxu0 0.0
        %4370 = vmatpush1.msra.mxu0 %v4300
        %4371 = vmatprep.subr.mxu0 0.0
        %4372 = vmatpush1.msra.mxu0 %v4301
        %4373 = vmatprep.subr.mxu0 0.0
        %4374 = vmatpush1.msra.mxu0 %v4302
        %4375 = vmatprep.subr.mxu0 0.0
        %4376 = vmatpush1.msra.mxu0 %v4303
        %4377 = vmatprep.subr.mxu0 0.0
        %4378 = vmatpush1.msra.mxu0 %v4304
        %4379 = vmatprep.subr.mxu0 0.0
        %4380 = vmatpush1.msra.mxu0 %v4305
        %4381 = vmatprep.subr.mxu0 0.0
        %4382 = vmatpush1.msra.mxu0 %v4306
        %4383 = vmatprep.subr.mxu0 0.0
        %4384 = vmatpush1.msra.mxu0 %v4307
        %4385 = vmatprep.subr.mxu0 0.0
        %4386 = vmatpush1.msra.mxu0 %v4308
        %4387 = vmatprep.subr.mxu0 0.0
        %4388 = vmatpush1.msra.mxu0 %v4309
        %4389 = vmatprep.subr.mxu0 0.0
        %4390 = vmatpush1.msra.mxu0 %v4310
        %4391 = vmatprep.mubr.f32.mxu0 %v4183
        %4392 = vmatmul.mubr.f32.gmra.mrb[0].mxu0 %v4182
        %v4393 = vpop.f32.mrb[0].mxu0
        %v4394 = vadd.f32 0.0, %v4393
        %v4395 = vpop.f32.mrb[0].mxu0
        %4396 = vmatprep.mubr.f32.mxu0 %v4186
        %4397 = vmatmul.mubr.f32.gmra.mrb[0].mxu0 %v4185
        %v4398 = vpop.f32.mrb[0].mxu0
        %v4399 = vadd.f32 0.0, %v4398
        %v4400 = vpop.f32.mrb[0].mxu0
        %4401 = vmatprep.mubr.f32.mxu0 %v4189
        %4402 = vmatmul.mubr.f32.gmra.mrb[0].mxu0 %v4188
        %v4403 = vpop.f32.mrb[0].mxu0
        %v4404 = vadd.f32 0.0, %v4403
        %v4405 = vpop.f32.mrb[0].mxu0
        %4406 = vmatprep.mubr.f32.mxu0 %v4192
        %4407 = vmatmul.mubr.f32.gmra.mrb[0].mxu0 %v4191
        %v4408 = vpop.f32.mrb[0].mxu0
        %v4409 = vadd.f32 0.0, %v4408
        %v4410 = vpop.f32.mrb[0].mxu0
        %4411 = vmatprep.mubr.f32.mxu0 %v4195
        %4412 = vmatmul.mubr.f32.gmra.mrb[0].mxu0 %v4194
        %v4413 = vpop.f32.mrb[0].mxu0
        %v4414 = vadd.f32 0.0, %v4413
        %v4415 = vpop.f32.mrb[0].mxu0
        %4416 = vmatprep.mubr.f32.mxu0 %v4198
        %4417 = vmatmul.mubr.f32.gmra.mrb[0].mxu0 %v4197
        %v4418 = vpop.f32.mrb[0].mxu0
        %v4419 = vadd.f32 0.0, %v4418
        %v4420 = vpop.f32.mrb[0].mxu0
        %4421 = vmatprep.mubr.f32.mxu0 %v4201
        %4422 = vmatmul.mubr.f32.gmra.mrb[0].mxu0 %v4200
        %v4423 = vpop.f32.mrb[0].mxu0
        %v4424 = vadd.f32 0.0, %v4423
        %v4425 = vpop.f32.mrb[0].mxu0
        %4426 = vmatprep.mubr.f32.mxu0 %v4204
        %4427 = vmatmul.mubr.f32.gmra.mrb[0].mxu0 %v4203
        %v4428 = vpop.f32.mrb[0].mxu0
        %v4429 = vadd.f32 0.0, %v4428
        %v4430 = vpop.f32.mrb[0].mxu0
        %4431 = vmatprep.mubr.f32.mxu0 %v4207
        %4432 = vmatmul.mubr.f32.gmra.mrb[0].mxu0 %v4206
        %v4433 = vpop.f32.mrb[0].mxu0
        %v4434 = vadd.f32 0.0, %v4433
        %v4435 = vpop.f32.mrb[0].mxu0
        %4436 = vmatprep.mubr.f32.mxu0 %v4210
        %4437 = vmatmul.mubr.f32.gmra.mrb[0].mxu0 %v4209
        %v4438 = vpop.f32.mrb[0].mxu0
        %v4439 = vadd.f32 0.0, %v4438
        %v4440 = vpop.f32.mrb[0].mxu0
        %4441 = vmatprep.mubr.f32.mxu0 %v4213
        %4442 = vmatmul.mubr.f32.gmra.mrb[0].mxu0 %v4212
        %v4443 = vpop.f32.mrb[0].mxu0
        %v4444 = vadd.f32 0.0, %v4443
        %v4445 = vpop.f32.mrb[0].mxu0
        %4446 = vmatprep.mubr.f32.mxu0 %v4216
        %4447 = vmatmul.mubr.f32.gmra.mrb[0].mxu0 %v4215
        %v4448 = vpop.f32.mrb[0].mxu0
        %v4449 = vadd.f32 0.0, %v4448
        %v4450 = vpop.f32.mrb[0].mxu0
        %4451 = vmatprep.mubr.f32.mxu0 %v4219
        %4452 = vmatmul.mubr.f32.gmra.mrb[0].mxu0 %v4218
        %v4453 = vpop.f32.mrb[0].mxu0
        %v4454 = vadd.f32 0.0, %v4453
        %v4455 = vpop.f32.mrb[0].mxu0
        %4456 = vmatprep.mubr.f32.mxu0 %v4222
        %4457 = vmatmul.mubr.f32.gmra.mrb[0].mxu0 %v4221
        %v4458 = vpop.f32.mrb[0].mxu0
        %v4459 = vadd.f32 0.0, %v4458
        %v4460 = vpop.f32.mrb[0].mxu0
        %4461 = vmatprep.mubr.f32.mxu0 %v4225
        %4462 = vmatmul.mubr.f32.gmra.mrb[0].mxu0 %v4224
        %v4463 = vpop.f32.mrb[0].mxu0
        %v4464 = vadd.f32 0.0, %v4463
        %v4465 = vpop.f32.mrb[0].mxu0
        %4466 = vmatprep.mubr.f32.mxu0 %v4228
        %4467 = vmatmul.mubr.f32.gmra.mrb[0].mxu0 %v4227
        %v4468 = vpop.f32.mrb[0].mxu0
        %v4469 = vadd.f32 0.0, %v4468
        %v4470 = vpop.f32.mrb[0].mxu0
        %4471 = vmatprep.mubr.f32.mxu0 %v4231
        %4472 = vmatmul.mubr.f32.gmra.mrb[0].mxu0 %v4230
        %v4473 = vpop.f32.mrb[0].mxu0
        %v4474 = vadd.f32 0.0, %v4473
        %v4475 = vpop.f32.mrb[0].mxu0
        %4476 = vmatprep.mubr.f32.mxu0 %v4234
        %4477 = vmatmul.mubr.f32.gmra.mrb[0].mxu0 %v4233
        %v4478 = vpop.f32.mrb[0].mxu0
        %v4479 = vadd.f32 0.0, %v4478
        %v4480 = vpop.f32.mrb[0].mxu0
        %4481 = vmatprep.mubr.f32.mxu0 %v4237
        %4482 = vmatmul.mubr.f32.gmra.mrb[0].mxu0 %v4236
        %v4483 = vpop.f32.mrb[0].mxu0
        %v4484 = vadd.f32 0.0, %v4483
        %v4485 = vpop.f32.mrb[0].mxu0
        %4486 = vmatprep.mubr.f32.mxu0 %v4240
        %4487 = vmatmul.mubr.f32.gmra.mrb[0].mxu0 %v4239
        %v4488 = vpop.f32.mrb[0].mxu0
        %v4489 = vadd.f32 0.0, %v4488
        %v4490 = vpop.f32.mrb[0].mxu0
        %4491 = vmatprep.mubr.f32.mxu0 %v4243
        %4492 = vmatmul.mubr.f32.gmra.mrb[0].mxu0 %v4242
        %v4493 = vpop.f32.mrb[0].mxu0
        %v4494 = vadd.f32 0.0, %v4493
        %v4495 = vpop.f32.mrb[0].mxu0
        %4496 = vmatprep.mubr.f32.mxu0 %v4246
        %4497 = vmatmul.mubr.f32.gmra.mrb[0].mxu0 %v4245
        %v4498 = vpop.f32.mrb[0].mxu0
        %v4499 = vadd.f32 0.0, %v4498
        %v4500 = vpop.f32.mrb[0].mxu0
        %4501 = vmatprep.mubr.f32.mxu0 %v4249
        %4502 = vmatmul.mubr.f32.gmra.mrb[0].mxu0 %v4248
        %v4503 = vpop.f32.mrb[0].mxu0
        %v4504 = vadd.f32 0.0, %v4503
        %v4505 = vpop.f32.mrb[0].mxu0
        %4506 = vmatprep.mubr.f32.mxu0 %v4252
        %4507 = vmatmul.mubr.f32.gmra.mrb[0].mxu0 %v4251
        %v4508 = vpop.f32.mrb[0].mxu0
        %v4509 = vadd.f32 0.0, %v4508
        %v4510 = vpop.f32.mrb[0].mxu0
        %4511 = vmatprep.mubr.f32.mxu0 %v4255
        %4512 = vmatmul.mubr.f32.gmra.mrb[0].mxu0 %v4254
        %v4513 = vpop.f32.mrb[0].mxu0
        %v4514 = vadd.f32 0.0, %v4513
        %v4515 = vpop.f32.mrb[0].mxu0
        %4516 = vmatprep.mubr.f32.mxu0 %v4258
        %4517 = vmatmul.mubr.f32.gmra.mrb[0].mxu0 %v4257
        %v4518 = vpop.f32.mrb[0].mxu0
        %v4519 = vadd.f32 0.0, %v4518
        %v4520 = vpop.f32.mrb[0].mxu0
        %4521 = vmatprep.mubr.f32.mxu0 %v4261
        %4522 = vmatmul.mubr.f32.gmra.mrb[0].mxu0 %v4260
        %v4523 = vpop.f32.mrb[0].mxu0
        %v4524 = vadd.f32 0.0, %v4523
        %v4525 = vpop.f32.mrb[0].mxu0
        %4526 = vmatprep.mubr.f32.mxu0 %v4264
        %4527 = vmatmul.mubr.f32.gmra.mrb[0].mxu0 %v4263
        %v4528 = vpop.f32.mrb[0].mxu0
        %v4529 = vadd.f32 0.0, %v4528
        %v4530 = vpop.f32.mrb[0].mxu0
        %4531 = vmatprep.mubr.f32.mxu0 %v4267
        %4532 = vmatmul.mubr.f32.gmra.mrb[0].mxu0 %v4266
        %v4533 = vpop.f32.mrb[0].mxu0
        %v4534 = vadd.f32 0.0, %v4533
        %v4535 = vpop.f32.mrb[0].mxu0
        %4536 = vmatprep.mubr.f32.mxu0 %v4270
        %4537 = vmatmul.mubr.f32.gmra.mrb[0].mxu0 %v4269
        %v4538 = vpop.f32.mrb[0].mxu0
        %v4539 = vadd.f32 0.0, %v4538
        %v4540 = vpop.f32.mrb[0].mxu0
        %4541 = vmatprep.mubr.f32.mxu0 %v4273
        %4542 = vmatmul.mubr.f32.gmra.mrb[0].mxu0 %v4272
        %v4543 = vpop.f32.mrb[0].mxu0
        %v4544 = vadd.f32 0.0, %v4543
        %v4545 = vpop.f32.mrb[0].mxu0
        %4546 = vmatprep.mubr.f32.mxu0 %v4276
        %4547 = vmatmul.mubr.f32.gmra.mrb[0].mxu0 %v4275
        %v4548 = vpop.f32.mrb[0].mxu0
        %v4549 = vadd.f32 0.0, %v4548
        %v4550 = vpop.f32.mrb[0].mxu0
        %4551 = vdwg.mxu0
        %4552 = vmatprep.subr.mxu0 0.0
        %4553 = vmatpush1.msra.mxu0 %v4311
        %4554 = vmatprep.subr.mxu0 0.0
        %4555 = vmatpush1.msra.mxu0 %v4312
        %4556 = vmatprep.subr.mxu0 0.0
        %4557 = vmatpush1.msra.mxu0 %v4313
        %4558 = vmatprep.subr.mxu0 0.0
        %4559 = vmatpush1.msra.mxu0 %v4314
        %4560 = vmatprep.subr.mxu0 0.0
        %4561 = vmatpush1.msra.mxu0 %v4315
        %4562 = vmatprep.subr.mxu0 0.0
        %4563 = vmatpush1.msra.mxu0 %v4316
        %4564 = vmatprep.subr.mxu0 0.0
        %4565 = vmatpush1.msra.mxu0 %v4317
        %4566 = vmatprep.subr.mxu0 0.0
        %4567 = vmatpush1.msra.mxu0 %v4318
        %4568 = vmatprep.subr.mxu0 0.0
        %4569 = vmatpush1.msra.mxu0 %v4319
        %4570 = vmatprep.subr.mxu0 0.0
        %4571 = vmatpush1.msra.mxu0 %v4320
        %4572 = vmatprep.subr.mxu0 0.0
        %4573 = vmatpush1.msra.mxu0 %v4321
        %4574 = vmatprep.subr.mxu0 0.0
        %4575 = vmatpush1.msra.mxu0 %v4322
        %4576 = vmatprep.subr.mxu0 0.0
        %4577 = vmatpush1.msra.mxu0 %v4323
        %4578 = vmatprep.subr.mxu0 0.0
        %4579 = vmatpush1.msra.mxu0 %v4324
        %4580 = vmatprep.subr.mxu0 0.0
        %4581 = vmatpush1.msra.mxu0 %v4325
        %4582 = vmatprep.subr.mxu0 0.0
        %4583 = vmatpush1.msra.mxu0 %v4326
        %4584 = vmatprep.subr.mxu0 0.0
        %4585 = vmatpush1.msra.mxu0 0.0
        %4586 = vmatprep.subr.mxu0 0.0
        %4587 = vmatpush1.msra.mxu0 0.0
        %4588 = vmatprep.subr.mxu0 0.0
        %4589 = vmatpush1.msra.mxu0 0.0
        %4590 = vmatprep.subr.mxu0 0.0
        %4591 = vmatpush1.msra.mxu0 0.0
        %4592 = vmatprep.subr.mxu0 0.0
        %4593 = vmatpush1.msra.mxu0 0.0
        %4594 = vmatprep.subr.mxu0 0.0
        %4595 = vmatpush1.msra.mxu0 0.0
        %4596 = vmatprep.subr.mxu0 0.0
        %4597 = vmatpush1.msra.mxu0 0.0
        %4598 = vmatprep.subr.mxu0 0.0
        %4599 = vmatpush1.msra.mxu0 0.0
        %4600 = vmatprep.subr.mxu0 0.0
        %4601 = vmatpush1.msra.mxu0 0.0
        %4602 = vmatprep.subr.mxu0 0.0
        %4603 = vmatpush1.msra.mxu0 0.0
        %4604 = vmatprep.subr.mxu0 0.0
        %4605 = vmatpush1.msra.mxu0 0.0
        %4606 = vmatprep.subr.mxu0 0.0
        %4607 = vmatpush1.msra.mxu0 0.0
        %4608 = vmatprep.subr.mxu0 0.0
        %4609 = vmatpush1.msra.mxu0 0.0
        %4610 = vmatprep.subr.mxu0 0.0
        %4611 = vmatpush1.msra.mxu0 0.0
        %4612 = vmatprep.subr.mxu0 0.0
        %4613 = vmatpush1.msra.mxu0 0.0
        %4614 = vmatprep.subr.mxu0 0.0
        %4615 = vmatpush1.msra.mxu0 0.0
        %4616 = vmatprep.mubr.f32.mxu0 0.0
        %4617 = vmatmul.mubr.f32.gmra.mrb[0].mxu0 %v4184
        %v4618 = vpop.f32.mrb[0].mxu0
        %v4619 = vadd.f32 %v4394, %v4618
        %v4620 = vpop.f32.mrb[0].mxu0
        %4621 = vmatprep.mubr.f32.mxu0 0.0
        %4622 = vmatmul.mubr.f32.gmra.mrb[0].mxu0 %v4187
        %v4623 = vpop.f32.mrb[0].mxu0
        %v4624 = vadd.f32 %v4399, %v4623
        %v4625 = vpop.f32.mrb[0].mxu0
        %4626 = vmatprep.mubr.f32.mxu0 0.0
        %4627 = vmatmul.mubr.f32.gmra.mrb[0].mxu0 %v4190
        %v4628 = vpop.f32.mrb[0].mxu0
        %v4629 = vadd.f32 %v4404, %v4628
        %v4630 = vpop.f32.mrb[0].mxu0
        %4631 = vmatprep.mubr.f32.mxu0 0.0
        %4632 = vmatmul.mubr.f32.gmra.mrb[0].mxu0 %v4193
        %v4633 = vpop.f32.mrb[0].mxu0
        %v4634 = vadd.f32 %v4409, %v4633
        %v4635 = vpop.f32.mrb[0].mxu0
        %4636 = vmatprep.mubr.f32.mxu0 0.0
        %4637 = vmatmul.mubr.f32.gmra.mrb[0].mxu0 %v4196
        %v4638 = vpop.f32.mrb[0].mxu0
        %v4639 = vadd.f32 %v4414, %v4638
        %v4640 = vpop.f32.mrb[0].mxu0
        %4641 = vmatprep.mubr.f32.mxu0 0.0
        %4642 = vmatmul.mubr.f32.gmra.mrb[0].mxu0 %v4199
        %v4643 = vpop.f32.mrb[0].mxu0
        %v4644 = vadd.f32 %v4419, %v4643
        %v4645 = vpop.f32.mrb[0].mxu0
        %4646 = vmatprep.mubr.f32.mxu0 0.0
        %4647 = vmatmul.mubr.f32.gmra.mrb[0].mxu0 %v4202
        %v4648 = vpop.f32.mrb[0].mxu0
        %v4649 = vadd.f32 %v4424, %v4648
        %v4650 = vpop.f32.mrb[0].mxu0
        %4651 = vmatprep.mubr.f32.mxu0 0.0
        %4652 = vmatmul.mubr.f32.gmra.mrb[0].mxu0 %v4205
        %v4653 = vpop.f32.mrb[0].mxu0
        %v4654 = vadd.f32 %v4429, %v4653
        %v4655 = vpop.f32.mrb[0].mxu0
        %4656 = vmatprep.mubr.f32.mxu0 0.0
        %4657 = vmatmul.mubr.f32.gmra.mrb[0].mxu0 %v4208
        %v4658 = vpop.f32.mrb[0].mxu0
        %v4659 = vadd.f32 %v4434, %v4658
        %v4660 = vpop.f32.mrb[0].mxu0
        %4661 = vmatprep.mubr.f32.mxu0 0.0
        %4662 = vmatmul.mubr.f32.gmra.mrb[0].mxu0 %v4211
        %v4663 = vpop.f32.mrb[0].mxu0
        %v4664 = vadd.f32 %v4439, %v4663
        %v4665 = vpop.f32.mrb[0].mxu0
        %4666 = vmatprep.mubr.f32.mxu0 0.0
        %4667 = vmatmul.mubr.f32.gmra.mrb[0].mxu0 %v4214
        %v4668 = vpop.f32.mrb[0].mxu0
        %v4669 = vadd.f32 %v4444, %v4668
        %v4670 = vpop.f32.mrb[0].mxu0
        %4671 = vmatprep.mubr.f32.mxu0 0.0
        %4672 = vmatmul.mubr.f32.gmra.mrb[0].mxu0 %v4217
        %v4673 = vpop.f32.mrb[0].mxu0
        %v4674 = vadd.f32 %v4449, %v4673
        %v4675 = vpop.f32.mrb[0].mxu0
        %4676 = vmatprep.mubr.f32.mxu0 0.0
        %4677 = vmatmul.mubr.f32.gmra.mrb[0].mxu0 %v4220
        %v4678 = vpop.f32.mrb[0].mxu0
        %v4679 = vadd.f32 %v4454, %v4678
        %v4680 = vpop.f32.mrb[0].mxu0
        %4681 = vmatprep.mubr.f32.mxu0 0.0
        %4682 = vmatmul.mubr.f32.gmra.mrb[0].mxu0 %v4223
        %v4683 = vpop.f32.mrb[0].mxu0
        %v4684 = vadd.f32 %v4459, %v4683
        %v4685 = vpop.f32.mrb[0].mxu0
        %4686 = vmatprep.mubr.f32.mxu0 0.0
        %4687 = vmatmul.mubr.f32.gmra.mrb[0].mxu0 %v4226
        %v4688 = vpop.f32.mrb[0].mxu0
        %v4689 = vadd.f32 %v4464, %v4688
        %v4690 = vpop.f32.mrb[0].mxu0
        %4691 = vmatprep.mubr.f32.mxu0 0.0
        %4692 = vmatmul.mubr.f32.gmra.mrb[0].mxu0 %v4229
        %v4693 = vpop.f32.mrb[0].mxu0
        %v4694 = vadd.f32 %v4469, %v4693
        %v4695 = vpop.f32.mrb[0].mxu0
        %4696 = vmatprep.mubr.f32.mxu0 0.0
        %4697 = vmatmul.mubr.f32.gmra.mrb[0].mxu0 %v4232
        %v4698 = vpop.f32.mrb[0].mxu0
        %v4699 = vadd.f32 %v4474, %v4698
        %v4700 = vpop.f32.mrb[0].mxu0
        %4701 = vmatprep.mubr.f32.mxu0 0.0
        %4702 = vmatmul.mubr.f32.gmra.mrb[0].mxu0 %v4235
        %v4703 = vpop.f32.mrb[0].mxu0
        %v4704 = vadd.f32 %v4479, %v4703
        %v4705 = vpop.f32.mrb[0].mxu0
        %4706 = vmatprep.mubr.f32.mxu0 0.0
        %4707 = vmatmul.mubr.f32.gmra.mrb[0].mxu0 %v4238
        %v4708 = vpop.f32.mrb[0].mxu0
        %v4709 = vadd.f32 %v4484, %v4708
        %v4710 = vpop.f32.mrb[0].mxu0
        %4711 = vmatprep.mubr.f32.mxu0 0.0
        %4712 = vmatmul.mubr.f32.gmra.mrb[0].mxu0 %v4241
        %v4713 = vpop.f32.mrb[0].mxu0
        %v4714 = vadd.f32 %v4489, %v4713
        %v4715 = vpop.f32.mrb[0].mxu0
        %4716 = vmatprep.mubr.f32.mxu0 0.0
        %4717 = vmatmul.mubr.f32.gmra.mrb[0].mxu0 %v4244
        %v4718 = vpop.f32.mrb[0].mxu0
        %v4719 = vadd.f32 %v4494, %v4718
        %v4720 = vpop.f32.mrb[0].mxu0
        %4721 = vmatprep.mubr.f32.mxu0 0.0
        %4722 = vmatmul.mubr.f32.gmra.mrb[0].mxu0 %v4247
        %v4723 = vpop.f32.mrb[0].mxu0
        %v4724 = vadd.f32 %v4499, %v4723
        %v4725 = vpop.f32.mrb[0].mxu0
        %4726 = vmatprep.mubr.f32.mxu0 0.0
        %4727 = vmatmul.mubr.f32.gmra.mrb[0].mxu0 %v4250
        %v4728 = vpop.f32.mrb[0].mxu0
        %v4729 = vadd.f32 %v4504, %v4728
        %v4730 = vpop.f32.mrb[0].mxu0
        %4731 = vmatprep.mubr.f32.mxu0 0.0
        %4732 = vmatmul.mubr.f32.gmra.mrb[0].mxu0 %v4253
        %v4733 = vpop.f32.mrb[0].mxu0
        %v4734 = vadd.f32 %v4509, %v4733
        %v4735 = vpop.f32.mrb[0].mxu0
        %4736 = vmatprep.mubr.f32.mxu0 0.0
        %4737 = vmatmul.mubr.f32.gmra.mrb[0].mxu0 %v4256
        %v4738 = vpop.f32.mrb[0].mxu0
        %v4739 = vadd.f32 %v4514, %v4738
        %v4740 = vpop.f32.mrb[0].mxu0
        %4741 = vmatprep.mubr.f32.mxu0 0.0
        %4742 = vmatmul.mubr.f32.gmra.mrb[0].mxu0 %v4259
        %v4743 = vpop.f32.mrb[0].mxu0
        %v4744 = vadd.f32 %v4519, %v4743
        %v4745 = vpop.f32.mrb[0].mxu0
        %4746 = vmatprep.mubr.f32.mxu0 0.0
        %4747 = vmatmul.mubr.f32.gmra.mrb[0].mxu0 %v4262
        %v4748 = vpop.f32.mrb[0].mxu0
        %v4749 = vadd.f32 %v4524, %v4748
        %v4750 = vpop.f32.mrb[0].mxu0
        %4751 = vmatprep.mubr.f32.mxu0 0.0
        %4752 = vmatmul.mubr.f32.gmra.mrb[0].mxu0 %v4265
        %v4753 = vpop.f32.mrb[0].mxu0
        %v4754 = vadd.f32 %v4529, %v4753
        %v4755 = vpop.f32.mrb[0].mxu0
        %4756 = vmatprep.mubr.f32.mxu0 0.0
        %4757 = vmatmul.mubr.f32.gmra.mrb[0].mxu0 %v4268
        %v4758 = vpop.f32.mrb[0].mxu0
        %v4759 = vadd.f32 %v4534, %v4758
        %v4760 = vpop.f32.mrb[0].mxu0
        %4761 = vmatprep.mubr.f32.mxu0 0.0
        %4762 = vmatmul.mubr.f32.gmra.mrb[0].mxu0 %v4271
        %v4763 = vpop.f32.mrb[0].mxu0
        %v4764 = vadd.f32 %v4539, %v4763
        %v4765 = vpop.f32.mrb[0].mxu0
        %4766 = vmatprep.mubr.f32.mxu0 0.0
        %4767 = vmatmul.mubr.f32.gmra.mrb[0].mxu0 %v4274
        %v4768 = vpop.f32.mrb[0].mxu0
        %v4769 = vadd.f32 %v4544, %v4768
        %v4770 = vpop.f32.mrb[0].mxu0
        %4771 = vmatprep.mubr.f32.mxu0 0.0
        %4772 = vmatmul.mubr.f32.gmra.mrb[0].mxu0 %v4277
        %v4773 = vpop.f32.mrb[0].mxu0
        %v4774 = vadd.f32 %v4549, %v4773
        %v4775 = vpop.f32.mrb[0].mxu0
        %4776 = vdwg.mxu0
        %v4777 = vadd.f32 %v4024, %v4619
        %v4778 = vadd.f32 %v4029, %v4624
        %v4779 = vadd.f32 %v4034, %v4629
        %v4780 = vadd.f32 %v4039, %v4634
        %v4781 = vadd.f32 %v4044, %v4639
        %v4782 = vadd.f32 %v4049, %v4644
        %v4783 = vadd.f32 %v4054, %v4649
        %v4784 = vadd.f32 %v4059, %v4654
        %v4785 = vadd.f32 %v4064, %v4659
        %v4786 = vadd.f32 %v4069, %v4664
        %v4787 = vadd.f32 %v4074, %v4669
        %v4788 = vadd.f32 %v4079, %v4674
        %v4789 = vadd.f32 %v4084, %v4679
        %v4790 = vadd.f32 %v4089, %v4684
        %v4791 = vadd.f32 %v4094, %v4689
        %v4792 = vadd.f32 %v4099, %v4694
        %v4793 = vadd.f32 %v4104, %v4699
        %v4794 = vadd.f32 %v4109, %v4704
        %v4795 = vadd.f32 %v4114, %v4709
        %v4796 = vadd.f32 %v4119, %v4714
        %v4797 = vadd.f32 %v4124, %v4719
        %v4798 = vadd.f32 %v4129, %v4724
        %v4799 = vadd.f32 %v4134, %v4729
        %v4800 = vadd.f32 %v4139, %v4734
        %v4801 = vadd.f32 %v4144, %v4739
        %v4802 = vadd.f32 %v4149, %v4744
        %v4803 = vadd.f32 %v4154, %v4749
        %v4804 = vadd.f32 %v4159, %v4754
        %v4805 = vadd.f32 %v4164, %v4759
        %v4806 = vadd.f32 %v4169, %v4764
        %v4807 = vadd.f32 %v4174, %v4769
        %v4808 = vadd.f32 %v4179, %v4774
        %v4810 = vlaneseq
        %v4811 = vshrl.u32 %v4810, 7
        %v4812 = vsub.s32 0, %v4811
        %v4813 = vrot.slane %v378, %v4812
        %v4815 = vmul.f32 %v4777, %v4813
        %v4816 = vmul.f32 %v4778, %v4813
        %v4817 = vmul.f32 %v4779, %v4813
        %v4818 = vmul.f32 %v4780, %v4813
        %v4819 = vmul.f32 %v4781, %v4813
        %v4820 = vmul.f32 %v4782, %v4813
        %v4821 = vmul.f32 %v4783, %v4813
        %v4822 = vmul.f32 %v4784, %v4813
        %v4823 = vmul.f32 %v4785, %v4813
        %v4824 = vmul.f32 %v4786, %v4813
        %v4825 = vmul.f32 %v4787, %v4813
        %v4826 = vmul.f32 %v4788, %v4813
        %v4827 = vmul.f32 %v4789, %v4813
        %v4828 = vmul.f32 %v4790, %v4813
        %v4829 = vmul.f32 %v4791, %v4813
        %v4830 = vmul.f32 %v4792, %v4813
        %v4831 = vmul.f32 %v4793, %v4813
        %v4832 = vmul.f32 %v4794, %v4813
        %v4833 = vmul.f32 %v4795, %v4813
        %v4834 = vmul.f32 %v4796, %v4813
        %v4835 = vmul.f32 %v4797, %v4813
        %v4836 = vmul.f32 %v4798, %v4813
        %v4837 = vmul.f32 %v4799, %v4813
        %v4838 = vmul.f32 %v4800, %v4813
        %v4839 = vmul.f32 %v4801, %v4813
        %v4840 = vmul.f32 %v4802, %v4813
        %v4841 = vmul.f32 %v4803, %v4813
        %v4842 = vmul.f32 %v4804, %v4813
        %v4843 = vmul.f32 %v4805, %v4813
        %v4844 = vmul.f32 %v4806, %v4813
        %v4845 = vmul.f32 %v4807, %v4813
        %v4846 = vmul.f32 %v4808, %v4813
        %v4848 = vlaneseq
        %v4849 = vshrl.u32 %v4848, 7
        %v4850 = vsub.s32 0, %v4849
        %v4851 = vrot.slane %v379, %v4850
        %v4853 = vadd.f32 %v4815, %v4851
        %v4854 = vadd.f32 %v4816, %v4851
        %v4855 = vadd.f32 %v4817, %v4851
        %v4856 = vadd.f32 %v4818, %v4851
        %v4857 = vadd.f32 %v4819, %v4851
        %v4858 = vadd.f32 %v4820, %v4851
        %v4859 = vadd.f32 %v4821, %v4851
        %v4860 = vadd.f32 %v4822, %v4851
        %v4861 = vadd.f32 %v4823, %v4851
        %v4862 = vadd.f32 %v4824, %v4851
        %v4863 = vadd.f32 %v4825, %v4851
        %v4864 = vadd.f32 %v4826, %v4851
        %v4865 = vadd.f32 %v4827, %v4851
        %v4866 = vadd.f32 %v4828, %v4851
        %v4867 = vadd.f32 %v4829, %v4851
        %v4868 = vadd.f32 %v4830, %v4851
        %v4869 = vadd.f32 %v4831, %v4851
        %v4870 = vadd.f32 %v4832, %v4851
        %v4871 = vadd.f32 %v4833, %v4851
        %v4872 = vadd.f32 %v4834, %v4851
        %v4873 = vadd.f32 %v4835, %v4851
        %v4874 = vadd.f32 %v4836, %v4851
        %v4875 = vadd.f32 %v4837, %v4851
        %v4876 = vadd.f32 %v4838, %v4851
        %v4877 = vadd.f32 %v4839, %v4851
        %v4878 = vadd.f32 %v4840, %v4851
        %v4879 = vadd.f32 %v4841, %v4851
        %v4880 = vadd.f32 %v4842, %v4851
        %v4881 = vadd.f32 %v4843, %v4851
        %v4882 = vadd.f32 %v4844, %v4851
        %v4883 = vadd.f32 %v4845, %v4851
        %v4884 = vadd.f32 %v4846, %v4851
        %v4885 = vadd.f32 %v4853, %v393
        %v4886 = vadd.f32 %v4854, %v394
        %v4887 = vadd.f32 %v4855, %v395
        %v4888 = vadd.f32 %v4856, %v396
        %v4889 = vadd.f32 %v4857, %v397
        %v4890 = vadd.f32 %v4858, %v398
        %v4891 = vadd.f32 %v4859, %v399
        %v4892 = vadd.f32 %v4860, %v400
        %v4893 = vadd.f32 %v4861, %v401
        %v4894 = vadd.f32 %v4862, %v402
        %v4895 = vadd.f32 %v4863, %v403
        %v4896 = vadd.f32 %v4864, %v404
        %v4897 = vadd.f32 %v4865, %v405
        %v4898 = vadd.f32 %v4866, %v406
        %v4899 = vadd.f32 %v4867, %v407
        %v4900 = vadd.f32 %v4868, %v408
        %v4901 = vadd.f32 %v4869, %v409
        %v4902 = vadd.f32 %v4870, %v410
        %v4903 = vadd.f32 %v4871, %v411
        %v4904 = vadd.f32 %v4872, %v412
        %v4905 = vadd.f32 %v4873, %v413
        %v4906 = vadd.f32 %v4874, %v414
        %v4907 = vadd.f32 %v4875, %v415
        %v4908 = vadd.f32 %v4876, %v416
        %v4909 = vadd.f32 %v4877, %v417
        %v4910 = vadd.f32 %v4878, %v418
        %v4911 = vadd.f32 %v4879, %v419
        %v4912 = vadd.f32 %v4880, %v420
        %v4913 = vadd.f32 %v4881, %v421
        %v4914 = vadd.f32 %v4882, %v422
        %v4915 = vadd.f32 %v4883, %v423
        %v4916 = vadd.f32 %v4884, %v424
        %v4917 = vmax.f32 %v4885, 0.0
        %v4918 = vmax.f32 %v4886, 0.0
        %v4919 = vmax.f32 %v4887, 0.0
        %v4920 = vmax.f32 %v4888, 0.0
        %v4921 = vmax.f32 %v4889, 0.0
        %v4922 = vmax.f32 %v4890, 0.0
        %v4923 = vmax.f32 %v4891, 0.0
        %v4924 = vmax.f32 %v4892, 0.0
        %v4925 = vmax.f32 %v4893, 0.0
        %v4926 = vmax.f32 %v4894, 0.0
        %v4927 = vmax.f32 %v4895, 0.0
        %v4928 = vmax.f32 %v4896, 0.0
        %v4929 = vmax.f32 %v4897, 0.0
        %v4930 = vmax.f32 %v4898, 0.0
        %v4931 = vmax.f32 %v4899, 0.0
        %v4932 = vmax.f32 %v4900, 0.0
        %v4933 = vmax.f32 %v4901, 0.0
        %v4934 = vmax.f32 %v4902, 0.0
        %v4935 = vmax.f32 %v4903, 0.0
        %v4936 = vmax.f32 %v4904, 0.0
        %v4937 = vmax.f32 %v4905, 0.0
        %v4938 = vmax.f32 %v4906, 0.0
        %v4939 = vmax.f32 %v4907, 0.0
        %v4940 = vmax.f32 %v4908, 0.0
        %v4941 = vmax.f32 %v4909, 0.0
        %v4942 = vmax.f32 %v4910, 0.0
        %v4943 = vmax.f32 %v4911, 0.0
        %v4944 = vmax.f32 %v4912, 0.0
        %v4945 = vmax.f32 %v4913, 0.0
        %v4946 = vmax.f32 %v4914, 0.0
        %v4947 = vmax.f32 %v4915, 0.0
        %v4948 = vmax.f32 %v4916, 0.0
        %4949 = vst [vmem:[%s375] sm:$0xff] %v4917
        %4950 = vst [vmem:[%s375 + $0x8] sm:$0xff] %v4918
        %4951 = vst [vmem:[%s375 + $0x10] sm:$0xff] %v4919
        %4952 = vst [vmem:[%s375 + $0x18] sm:$0xff] %v4920
        %4953 = vst [vmem:[%s375 + $0x20] sm:$0xff] %v4921
        %4954 = vst [vmem:[%s375 + $0x28] sm:$0xff] %v4922
        %4955 = vst [vmem:[%s375 + $0x30] sm:$0xff] %v4923
        %4956 = vst [vmem:[%s375 + $0x38] sm:$0xff] %v4924
        %4957 = vst [vmem:[%s375 + $0x40] sm:$0xff] %v4925
        %4958 = vst [vmem:[%s375 + $0x48] sm:$0xff] %v4926
        %4959 = vst [vmem:[%s375 + $0x50] sm:$0xff] %v4927
        %4960 = vst [vmem:[%s375 + $0x58] sm:$0xff] %v4928
        %4961 = vst [vmem:[%s375 + $0x60] sm:$0xff] %v4929
        %4962 = vst [vmem:[%s375 + $0x68] sm:$0xff] %v4930
        %4963 = vst [vmem:[%s375 + $0x70] sm:$0xff] %v4931
        %4964 = vst [vmem:[%s375 + $0x78] sm:$0xff] %v4932
        %4965 = vst [vmem:[%s375 + $0x80] sm:$0xff] %v4933
        %4966 = vst [vmem:[%s375 + $0x88] sm:$0xff] %v4934
        %4967 = vst [vmem:[%s375 + $0x90] sm:$0xff] %v4935
        %4968 = vst [vmem:[%s375 + $0x98] sm:$0xff] %v4936
        %4969 = vst [vmem:[%s375 + $0xa0] sm:$0xff] %v4937
        %4970 = vst [vmem:[%s375 + $0xa8] sm:$0xff] %v4938
        %4971 = vst [vmem:[%s375 + $0xb0] sm:$0xff] %v4939
        %4972 = vst [vmem:[%s375 + $0xb8] sm:$0xff] %v4940
        %4973 = vst [vmem:[%s375 + $0xc0] sm:$0xff] %v4941
        %4974 = vst [vmem:[%s375 + $0xc8] sm:$0xff] %v4942
        %4975 = vst [vmem:[%s375 + $0xd0] sm:$0xff] %v4943
        %4976 = vst [vmem:[%s375 + $0xd8] sm:$0xff] %v4944
        %4977 = vst [vmem:[%s375 + $0xe0] sm:$0xff] %v4945
        %4978 = vst [vmem:[%s375 + $0xe8] sm:$0xff] %v4946
        %4979 = vst [vmem:[%s375 + $0xf0] sm:$0xff] %v4947
        %4980 = vst [vmem:[%s375 + $0xf8] sm:$0xff] %v4948
        %s4981 = sand.u32 %s187, 1
        %s4982 = scalar_lea.sflag [#allocation5], %s4981
        %s4983 = sand.u32 %s187, 1
        %s4984 = smul.addr %s4983, 256
        %s4985 = scalar_lea.vmem [#allocation15], %s4984
        // Predicated region
        $region77: #{basic_block.1} parent=47 // pred_check
          %p4986 = pneg %p197
        $region78: #{basic_block.1} parent=47 // pred_check_branch
          %4988 = sbr.rel (%p4986) target = $region80
        $region79: #{basic_block.1} parent=47 // pred_region
          %s4990 = ssub.s32 4096, 4096
          %4991 = vsyncadd %s4982, %s4990
          %s4992 = smul.addr %s27, 32
          %s4993 = smul.addr %s4992, 128
          %s4994 = scalar_lea.hbm %s7, %s4993
          %s4995 = sshll.u32 %s4985, 4
          %s4996 = int_to_ptr.vmem [resolvable:$true] %s4995
          %5001 = dma.vmem_to_hbm [thread:$0]  %s4996, 4096, %s4994, %s4982, 128, 128, 8
        $region80: #{basic_block.1} parent=47 // pred_fallthru
          _
      $region48: #{basic_block.1} parent=5 // pred_fallthru
        _
      %p5002 = scmp.le.s32.totalorder 2, %s22
      // Predicated region
      $region81: #{basic_block.1} parent=5 // pred_check
        %p5003 = pneg %p5002
      $region82: #{basic_block.1} parent=5 // pred_check_branch
        %5005 = sbr.rel (%p5003) target = $region84
      $region83: #{basic_block.1} parent=5 // pred_region
        %s5006 = ssub.s32 %s22, 2
        // Predicated region
        $region85: #{basic_block.1} parent=83 // pred_check
          %p5007 = pneg %p203
        $region86: #{basic_block.1} parent=83 // pred_check_branch
          %5009 = sbr.rel (%p5007) target = $region88
        $region87: #{basic_block.1} parent=83 // pred_region
          %s5010 = sand.u32 %s188, 1
          %s5011 = scalar_lea.sflag [#allocation5], %s5010
          %s5012 = sand.u32 %s188, 1
          %s5013 = smul.addr %s5012, 256
          %s5014 = scalar_lea.vmem [#allocation15], %s5013
          %5015 = dma.done %s5011, 4096
        $region88: #{basic_block.1} parent=83 // pred_fallthru
          _
      $region84: #{basic_block.1} parent=5 // pred_fallthru
        _
    $region6: #{basic_block.1} parent=1 // loop_footer
      %s26 = sadd.s32 1, %s22
    $region7: #{basic_block.1} parent=1 // loop_footer_branch
      %21 = sbr.rel target = $region3
    $region8: #{basic_block.1} parent=1 // loop_exit
      _
    %5016 = vsyncpa [#allocation4], 1
    %s5017 = scalar_lea.sflag [#allocation4], 1
    %5018 = vsyncpa %s5017, 1
    %5019 = vsyncpa [#allocation7], 1
    %5020 = vsyncpa [#allocation10], 1
    %5021 = vsyncpa [#allocation13], 1
    %5022 = vsyncpa [#allocation5], 1
    %s5023 = scalar_lea.sflag [#allocation5], 1
    %5024 = vsyncpa %s5023, 1

</llo_original>
